<compile_context>
chip_gen: v5e
topology: v5e:2x2
jax: 0.10.0
libtpu: 0.0.40
codegen_flags: <defaults>
</compile_context>

<pallas_src>
import numpy as np

import jax
import jax.numpy as jnp
from jax.experimental import pallas as pl
from jax.experimental.pallas import tpu as pltpu

BN_EPS = 1e-5
SLOPE = 0.01


# ----------------------------------------------------------------------------
# One-time parameter packing (hoisted out of the forward path)
# ----------------------------------------------------------------------------

# (dh, ra) -> original kernel tap kh used when output row 2h+dh reads input
# row h+ra.  (0,1) absent: even output rows only depend on input row h.
_KH = {(0, 0): 1, (1, 0): 2, (1, 1): 0}
_KW = {(0, 0): 1, (1, 0): 2, (1, 1): 0}   # same thing along the width axis


def _pack_convT_rowgemm(w_pt, w_in):
    """Pack PyTorch ConvTranspose2d weight (Cin,Cout,3,3), k=3,s=2,p=1,op=1,
    into row-GEMM matrices W0, W1 of shape (w_in*Cin, 2*(2*w_in)*Cout).

    GEMM: y[h] = x[h] @ W0 + x[h+1] @ W1, where x rows are flattened as
    lane = w*Cin + c and y lanes are packed as dh*(2W*Cout) + wo*Cout + cout
    (output spatial rows 2h+dh)."""
    w = np.asarray(w_pt, dtype=np.float32)
    cin, cout = w.shape[0], w.shape[1]
    wo_sp = 2 * w_in
    mats = []
    for ra in (0, 1):
        m = np.zeros((w_in, cin, 2, wo_sp, cout), np.float32)
        for dh in (0, 1):
            kh = _KH.get((dh, ra))
            if kh is None:
                continue
            for wo in range(wo_sp):
                dw, wb = wo % 2, wo // 2
                for rb in (0, 1):
                    kw = _KW.get((dw, rb))
                    if kw is None:
                        continue
                    wi = wb + rb
                    if wi >= w_in:          # right-edge / output_padding column
                        continue
                    m[wi, :, dh, wo, :] = w[:, :, kh, kw]
        mats.append(jnp.asarray(m.reshape(w_in * cin, 2 * wo_sp * cout)))
    return mats


def prepare_decoder_params(params):
    """params: 4 tuples (w (Cin,Cout,3,3), b (Cout,)[, gamma, beta]).
    Returns the flat tuple of kernel operands (everything after z)."""
    widths = [1, 2, 4, 8]                    # input spatial size per stage
    ops = []
    for i, (p, w_in) in enumerate(zip(params, widths)):
        w, b = p[0], p[1]
        cout = int(np.asarray(w).shape[1])
        n = 2 * (2 * w_in) * cout            # GEMM output lane width
        w0, w1 = _pack_convT_rowgemm(w, w_in)
        b_packed = jnp.asarray(
            np.tile(np.asarray(b, np.float32), 2 * (2 * w_in)).reshape(1, n))
        if i == 0:
            ops += [w0]                      # stage 1 input is 1x1: row h+1 is pad
        else:
            ops += [w0, w1]
        ops += [b_packed]
        if len(p) == 4:                      # BatchNorm stage
            gamma, beta = np.asarray(p[2], np.float32), np.asarray(p[3], np.float32)
            g_t = jnp.asarray(np.tile(gamma, 2 * (2 * w_in)).reshape(1, n))
            be_t = jnp.asarray(np.tile(beta, 2 * (2 * w_in)).reshape(1, n))
            lane_chan = np.arange(n) % cout
            p_mat = jnp.asarray(
                (lane_chan[:, None] == lane_chan[None, :]).astype(np.float32))
            ops += [g_t, be_t, p_mat]
    return tuple(ops)


# ----------------------------------------------------------------------------
# The fused decoder kernel (single pallas_call, no grid)
# ----------------------------------------------------------------------------

def _sq_lrelu(x):
    lr = jnp.where(x >= 0.0, x, SLOPE * x)
    return lr * lr


def _decoder_kernel(z_ref,
                    w10, b1, g1, be1, p1,
                    w20, w21, b2, g2, be2, p2,
                    w30, w31, b3, g3, be3, p3,
                    w40, w41, b4,
                    out_ref,
                    a1, a2, a3):
    B = z_ref.shape[0]
    f32 = jnp.float32

    def colsum(mats):
        # sum over all rows of all per-batch matrices, on the MXU
        s = None
        for m in mats:
            if m.shape[0] == 1:
                c = m
            else:
                ones = jnp.ones((1, m.shape[0]), f32)
                c = jnp.dot(ones, m, preferred_element_type=f32)
            s = c if s is None else s + c
        return s

    def bn_sq_lrelu(ys, p_ref, g_ref, be_ref, count):
        # training-mode BatchNorm2d (biased batch stats), two-pass centered
        # variance; per-channel reduce + broadcast via the 0/1 matrix P (MXU).
        inv = 1.0 / count
        mean = jnp.dot(colsum(ys), p_ref[...], preferred_element_type=f32) * inv
        cent = [y - mean for y in ys]
        var = jnp.dot(colsum([c * c for c in cent]), p_ref[...],
                      preferred_element_type=f32) * inv
        scale = g_ref[...] * jax.lax.rsqrt(var + BN_EPS)
        shift = be_ref[...]
        return [_sq_lrelu(c * scale + shift) for c in cent]

    def row_gemm(in_ref, h_in, w0_ref, w1_ref, bias_ref):
        # in_ref: (B, h_in+1, W*Cin) spatial-row layout, last row = zero pad
        ys = []
        for b in range(B):
            x0 = in_ref[b, pl.ds(0, h_in), :]
            x1 = in_ref[b, pl.ds(1, h_in), :]
            y = (jnp.dot(x0, w0_ref[...], preferred_element_type=f32)
                 + jnp.dot(x1, w1_ref[...], preferred_element_type=f32)
                 + bias_ref[...])
            ys.append(y)
        return ys

    def scatter(acts, dst_ref, h_in, half):
        # acts[b]: (h_in, 2*half); dst_ref: (B, 2*h_in+1, half)
        for b in range(B):
            dst_ref[b, pl.ds(2 * h_in, 1), :] = jnp.zeros((1, half), f32)  # pad row
            for h in range(h_in):
                for dh in range(2):
                    dst_ref[b, pl.ds(2 * h + dh, 1), :] = (
                        acts[b][h:h + 1, dh * half:(dh + 1) * half])

    # ---- stage 1: (B, L, 1, 1) -> (B, 64, 2, 2) ----------------------------
    zv = z_ref[...]
    ys = [jnp.dot(zv[b:b + 1, :], w10[...], preferred_element_type=f32) + b1[...]
          for b in range(B)]
    acts = bn_sq_lrelu(ys, p1, g1, be1, count=B * 2 * 2)
    scatter(acts, a1, h_in=1, half=128)          # 2*64 lanes per spatial row

    # ---- stage 2: (B, 64, 2, 2) -> (B, 32, 4, 4) ---------------------------
    ys = row_gemm(a1, 2, w20, w21, b2)
    acts = bn_sq_lrelu(ys, p2, g2, be2, count=B * 4 * 4)
    scatter(acts, a2, h_in=2, half=128)          # 4*32 lanes per spatial row

    # ---- stage 3: (B, 32, 4, 4) -> (B, 16, 8, 8) ---------------------------
    ys = row_gemm(a2, 4, w30, w31, b3)
    acts = bn_sq_lrelu(ys, p3, g3, be3, count=B * 8 * 8)
    scatter(acts, a3, h_in=4, half=128)          # 8*16 lanes per spatial row

    # ---- stage 4: (B, 16, 8, 8) -> (B, 3, 16, 16), no BatchNorm ------------
    ys = row_gemm(a3, 8, w40, w41, b4)
    for b in range(B):
        out_ref[pl.ds(b * 8, 8), :] = _sq_lrelu(ys[b])   # lanes: dh*48+ow*3+c


# ----------------------------------------------------------------------------
# Wrapper
# ----------------------------------------------------------------------------

def decoder_v2_forward(z, packed):
    """z: (B, latent_dims).  packed: prepare_decoder_params(...).  -> NCHW."""
    B = z.shape[0]
    n_in = 1 + len(packed)
    vmem = pltpu.MemorySpace.VMEM
    out2d = pl.pallas_call(
        _decoder_kernel,
        out_shape=jax.ShapeDtypeStruct((B * 8, 96), jnp.float32),
        in_specs=[pl.BlockSpec(memory_space=vmem)] * n_in,
        out_specs=pl.BlockSpec(memory_space=vmem),
        scratch_shapes=[
            pltpu.VMEM((B, 3, 128), jnp.float32),   # stage-1 out, rows 0..1 + pad
            pltpu.VMEM((B, 5, 128), jnp.float32),   # stage-2 out, rows 0..3 + pad
            pltpu.VMEM((B, 9, 128), jnp.float32),   # stage-3 out, rows 0..7 + pad
        ],
    )(z, *packed)
    # (B*8, 96) -> (B, 8, 2, 16, 3) -> (B, 16, 16, 3) NHWC -> NCHW
    x = out2d.reshape(B, 8, 2, 16, 3).reshape(B, 16, 16, 3)
    return jnp.transpose(x, (0, 3, 1, 2))


# ----------------------------------------------------------------------------
# Pure-JAX reference (for a correctness cross-check only)
# ----------------------------------------------------------------------------

def _ref_conv_transpose(x, w_pt, b):
    B, H, W, cin = x.shape
    cout = w_pt.shape[1]
    z = jnp.zeros((B, 2 * H, 2 * W, cin), x.dtype).at[:, ::2, ::2, :].set(x)
    zp = jnp.pad(z, ((0, 0), (1, 1), (1, 1), (0, 0)))
    wf = jnp.transpose(w_pt[:, :, ::-1, ::-1], (2, 3, 0, 1))  # HWIO, flipped
    y = jax.lax.conv_general_dilated(
        zp, wf, window_strides=(1, 1), padding="VALID",
        dimension_numbers=("NHWC", "HWIO", "NHWC"))
    return y + b.reshape(1, 1, 1, cout)


def _ref_decoder(z, params):
    B, L = z.shape
    x = z.reshape(B, 1, 1, L)
    for p in params:
        y = _ref_conv_transpose(x, p[0], p[1])
        if len(p) == 4:
            g, be = p[2], p[3]
            mean = jnp.mean(y, axis=(0, 1, 2), keepdims=True)
            var = jnp.mean((y - mean) ** 2, axis=(0, 1, 2), keepdims=True)
            y = ((y - mean) * (g.reshape(1, 1, 1, -1) * jax.lax.rsqrt(var + BN_EPS))
                 + be.reshape(1, 1, 1, -1))
        x = _sq_lrelu(y)
    return jnp.transpose(x, (0, 3, 1, 2))


# ----------------------------------------------------------------------------
# Main
# ----------------------------------------------------------------------------

if __name__ == "__main__":
    key = jax.random.PRNGKey(0)
    keys = jax.random.split(key, 10)

    B, latent_dims = 2, 4
    chans = [latent_dims, 64, 32, 16, 3]          # spatial 1 -> 2 -> 4 -> 8 -> 16

    z = jax.random.normal(keys[0], (B, latent_dims), jnp.float32)

    params = []
    for li in range(4):
        cin, cout = chans[li], chans[li + 1]
        fan = cin * 9
        w = jax.random.normal(keys[1 + li], (cin, cout, 3, 3),
                              jnp.float32) * (1.0 / fan ** 0.5)
        b = jax.random.normal(keys[5 + li], (cout,), jnp.float32) * 0.01
        if li < 3:
            params.append((w, b, jnp.ones((cout,), jnp.float32),
                           jnp.zeros((cout,), jnp.float32)))   # BN default init
        else:
            params.append((w, b))                              # last stage: no BN

    packed = prepare_decoder_params(params)                    # one-time prep
    fwd = jax.jit(decoder_v2_forward)

    out = jax.block_until_ready(fwd(z, packed))

    assert out.shape == (B, 3, 16, 16) and out.dtype == jnp.float32
    assert bool(jnp.all(jnp.isfinite(out)))

    ref = jax.block_until_ready(_ref_decoder(z, params))
    max_err = float(jnp.max(jnp.abs(out - ref)))
    assert max_err < 2e-3, f"mismatch vs reference: {max_err}"

    print("KERNEL_OK")
</pallas_src>

<mosaic_0001>
module attributes {stable_mosaic.version = 11 : i64} {
  func.func @_decoder_kernel(%arg0: memref<2x4xf32, #tpu.memory_space<vmem>>, %arg1: memref<4x256xf32, #tpu.memory_space<vmem>>, %arg2: memref<1x256xf32, #tpu.memory_space<vmem>>, %arg3: memref<1x256xf32, #tpu.memory_space<vmem>>, %arg4: memref<1x256xf32, #tpu.memory_space<vmem>>, %arg5: memref<256x256xf32, #tpu.memory_space<vmem>>, %arg6: memref<128x256xf32, #tpu.memory_space<vmem>>, %arg7: memref<128x256xf32, #tpu.memory_space<vmem>>, %arg8: memref<1x256xf32, #tpu.memory_space<vmem>>, %arg9: memref<1x256xf32, #tpu.memory_space<vmem>>, %arg10: memref<1x256xf32, #tpu.memory_space<vmem>>, %arg11: memref<256x256xf32, #tpu.memory_space<vmem>>, %arg12: memref<128x256xf32, #tpu.memory_space<vmem>>, %arg13: memref<128x256xf32, #tpu.memory_space<vmem>>, %arg14: memref<1x256xf32, #tpu.memory_space<vmem>>, %arg15: memref<1x256xf32, #tpu.memory_space<vmem>>, %arg16: memref<1x256xf32, #tpu.memory_space<vmem>>, %arg17: memref<256x256xf32, #tpu.memory_space<vmem>>, %arg18: memref<128x96xf32, #tpu.memory_space<vmem>>, %arg19: memref<128x96xf32, #tpu.memory_space<vmem>>, %arg20: memref<1x96xf32, #tpu.memory_space<vmem>>, %arg21: memref<16x96xf32, #tpu.memory_space<vmem>>, %arg22: memref<2x3x128xf32, #tpu.memory_space<vmem>>, %arg23: memref<2x5x128xf32, #tpu.memory_space<vmem>>, %arg24: memref<2x9x128xf32, #tpu.memory_space<vmem>>) attributes {dimension_semantics = [], scalar_prefetch = 0 : i64, scratch_operands = 3 : i64, tpu.core_type = #tpu.core_type<tc>} {
    %c0 = arith.constant 0 : index
    %c0_0 = arith.constant 0 : index
    %0 = vector.load %arg0[%c0, %c0_0] : memref<2x4xf32, #tpu.memory_space<vmem>>, vector<2x4xf32>
    %1 = vector.extract_strided_slice %0 {offsets = [0, 0], sizes = [1, 4], strides = [1, 1]} : vector<2x4xf32> to vector<1x4xf32>
    %c0_1 = arith.constant 0 : index
    %c0_2 = arith.constant 0 : index
    %2 = vector.load %arg1[%c0_1, %c0_2] : memref<4x256xf32, #tpu.memory_space<vmem>>, vector<4x256xf32>
    %cst = arith.constant dense<0.000000e+00> : vector<1x256xf32>
    %3 = tpu.matmul %1, %2, %cst {dimension_numbers = #tpu.dot_dimension_numbers<[1], [0], [0], [1], [0, 0, 1, 1], [], []>} : vector<1x4xf32>, vector<4x256xf32>, vector<1x256xf32> -> vector<1x256xf32>
    %c0_3 = arith.constant 0 : index
    %c0_4 = arith.constant 0 : index
    %4 = vector.load %arg2[%c0_3, %c0_4] : memref<1x256xf32, #tpu.memory_space<vmem>>, vector<1x256xf32>
    %5 = arith.addf %3, %4 : vector<1x256xf32>
    %6 = vector.extract_strided_slice %0 {offsets = [1, 0], sizes = [1, 4], strides = [1, 1]} : vector<2x4xf32> to vector<1x4xf32>
    %c0_5 = arith.constant 0 : index
    %c0_6 = arith.constant 0 : index
    %7 = vector.load %arg1[%c0_5, %c0_6] : memref<4x256xf32, #tpu.memory_space<vmem>>, vector<4x256xf32>
    %cst_7 = arith.constant dense<0.000000e+00> : vector<1x256xf32>
    %8 = tpu.matmul %6, %7, %cst_7 {dimension_numbers = #tpu.dot_dimension_numbers<[1], [0], [0], [1], [0, 0, 1, 1], [], []>} : vector<1x4xf32>, vector<4x256xf32>, vector<1x256xf32> -> vector<1x256xf32>
    %c0_8 = arith.constant 0 : index
    %c0_9 = arith.constant 0 : index
    %9 = vector.load %arg2[%c0_8, %c0_9] : memref<1x256xf32, #tpu.memory_space<vmem>>, vector<1x256xf32>
    %10 = arith.addf %8, %9 : vector<1x256xf32>
    %11 = arith.addf %5, %10 : vector<1x256xf32>
    %c0_10 = arith.constant 0 : index
    %c0_11 = arith.constant 0 : index
    %12 = vector.load %arg5[%c0_10, %c0_11] : memref<256x256xf32, #tpu.memory_space<vmem>>, vector<256x256xf32>
    %cst_12 = arith.constant dense<0.000000e+00> : vector<1x256xf32>
    %13 = tpu.matmul %11, %12, %cst_12 {dimension_numbers = #tpu.dot_dimension_numbers<[1], [0], [0], [1], [0, 0, 1, 1], [], []>} : vector<1x256xf32>, vector<256x256xf32>, vector<1x256xf32> -> vector<1x256xf32>
    %cst_13 = arith.constant 1.250000e-01 : f32
    %14 = vector.broadcast %cst_13 : f32 to vector<1x256xf32>
    %15 = arith.mulf %13, %14 : vector<1x256xf32>
    %16 = arith.subf %5, %15 : vector<1x256xf32>
    %17 = arith.subf %10, %15 : vector<1x256xf32>
    %18 = arith.mulf %16, %16 : vector<1x256xf32>
    %19 = arith.mulf %17, %17 : vector<1x256xf32>
    %20 = arith.addf %18, %19 : vector<1x256xf32>
    %c0_14 = arith.constant 0 : index
    %c0_15 = arith.constant 0 : index
    %21 = vector.load %arg5[%c0_14, %c0_15] : memref<256x256xf32, #tpu.memory_space<vmem>>, vector<256x256xf32>
    %cst_16 = arith.constant dense<0.000000e+00> : vector<1x256xf32>
    %22 = tpu.matmul %20, %21, %cst_16 {dimension_numbers = #tpu.dot_dimension_numbers<[1], [0], [0], [1], [0, 0, 1, 1], [], []>} : vector<1x256xf32>, vector<256x256xf32>, vector<1x256xf32> -> vector<1x256xf32>
    %cst_17 = arith.constant 1.250000e-01 : f32
    %23 = vector.broadcast %cst_17 : f32 to vector<1x256xf32>
    %24 = arith.mulf %22, %23 : vector<1x256xf32>
    %c0_18 = arith.constant 0 : index
    %c0_19 = arith.constant 0 : index
    %25 = vector.load %arg3[%c0_18, %c0_19] : memref<1x256xf32, #tpu.memory_space<vmem>>, vector<1x256xf32>
    %cst_20 = arith.constant 9.99999974E-6 : f32
    %26 = vector.broadcast %cst_20 : f32 to vector<1x256xf32>
    %27 = arith.addf %24, %26 : vector<1x256xf32>
    %28 = math.rsqrt %27 : vector<1x256xf32>
    %29 = arith.mulf %25, %28 : vector<1x256xf32>
    %c0_21 = arith.constant 0 : index
    %c0_22 = arith.constant 0 : index
    %30 = vector.load %arg4[%c0_21, %c0_22] : memref<1x256xf32, #tpu.memory_space<vmem>>, vector<1x256xf32>
    %31 = arith.mulf %16, %29 : vector<1x256xf32>
    %32 = arith.addf %31, %30 : vector<1x256xf32>
    %cst_23 = arith.constant 0.000000e+00 : f32
    %33 = vector.broadcast %cst_23 : f32 to vector<1x256xf32>
    %34 = arith.cmpf oge, %32, %33 : vector<1x256xf32>
    %cst_24 = arith.constant 0.00999999977 : f32
    %35 = vector.broadcast %cst_24 : f32 to vector<1x256xf32>
    %36 = arith.mulf %35, %32 : vector<1x256xf32>
    %37 = arith.select %34, %32, %36 : vector<1x256xi1>, vector<1x256xf32>
    %38 = arith.mulf %37, %37 : vector<1x256xf32>
    %39 = arith.mulf %17, %29 : vector<1x256xf32>
    %40 = arith.addf %39, %30 : vector<1x256xf32>
    %cst_25 = arith.constant 0.000000e+00 : f32
    %41 = vector.broadcast %cst_25 : f32 to vector<1x256xf32>
    %42 = arith.cmpf oge, %40, %41 : vector<1x256xf32>
    %cst_26 = arith.constant 0.00999999977 : f32
    %43 = vector.broadcast %cst_26 : f32 to vector<1x256xf32>
    %44 = arith.mulf %43, %40 : vector<1x256xf32>
    %45 = arith.select %42, %40, %44 : vector<1x256xi1>, vector<1x256xf32>
    %46 = arith.mulf %45, %45 : vector<1x256xf32>
    %cst_27 = arith.constant 0.000000e+00 : f32
    %47 = vector.broadcast %cst_27 : f32 to vector<1x128xf32>
    %c0_28 = arith.constant 0 : index
    %c2 = arith.constant 2 : index
    %c0_29 = arith.constant 0 : index
    %48 = vector.load %arg22[%c0_28, %c2, %c0_29] : memref<2x3x128xf32, #tpu.memory_space<vmem>>, vector<1x1x128xf32>
    %49 = vector.shape_cast %48 : vector<1x1x128xf32> to vector<1x128xf32>
    %50 = vector.shape_cast %47 : vector<1x128xf32> to vector<1x1x128xf32>
    tpu.vector_store %arg22[%c0_28, %c2, %c0_29], %50 {strides = array<i32>} : memref<2x3x128xf32, #tpu.memory_space<vmem>>, vector<1x1x128xf32>,
    %51 = vector.extract_strided_slice %38 {offsets = [0, 0], sizes = [1, 128], strides = [1, 1]} : vector<1x256xf32> to vector<1x128xf32>
    %c0_30 = arith.constant 0 : index
    %c0_31 = arith.constant 0 : index
    %c0_32 = arith.constant 0 : index
    %52 = vector.load %arg22[%c0_30, %c0_31, %c0_32] : memref<2x3x128xf32, #tpu.memory_space<vmem>>, vector<1x1x128xf32>
    %53 = vector.shape_cast %52 : vector<1x1x128xf32> to vector<1x128xf32>
    %54 = vector.shape_cast %51 : vector<1x128xf32> to vector<1x1x128xf32>
    tpu.vector_store %arg22[%c0_30, %c0_31, %c0_32], %54 {strides = array<i32>} : memref<2x3x128xf32, #tpu.memory_space<vmem>>, vector<1x1x128xf32>,
    %55 = vector.extract_strided_slice %38 {offsets = [0, 128], sizes = [1, 128], strides = [1, 1]} : vector<1x256xf32> to vector<1x128xf32>
    %c0_33 = arith.constant 0 : index
    %c1 = arith.constant 1 : index
    %c0_34 = arith.constant 0 : index
    %56 = vector.load %arg22[%c0_33, %c1, %c0_34] : memref<2x3x128xf32, #tpu.memory_space<vmem>>, vector<1x1x128xf32>
    %57 = vector.shape_cast %56 : vector<1x1x128xf32> to vector<1x128xf32>
    %58 = vector.shape_cast %55 : vector<1x128xf32> to vector<1x1x128xf32>
    tpu.vector_store %arg22[%c0_33, %c1, %c0_34], %58 {strides = array<i32>} : memref<2x3x128xf32, #tpu.memory_space<vmem>>, vector<1x1x128xf32>,
    %cst_35 = arith.constant 0.000000e+00 : f32
    %59 = vector.broadcast %cst_35 : f32 to vector<1x128xf32>
    %c1_36 = arith.constant 1 : index
    %c2_37 = arith.constant 2 : index
    %c0_38 = arith.constant 0 : index
    %60 = vector.load %arg22[%c1_36, %c2_37, %c0_38] : memref<2x3x128xf32, #tpu.memory_space<vmem>>, vector<1x1x128xf32>
    %61 = vector.shape_cast %60 : vector<1x1x128xf32> to vector<1x128xf32>
    %62 = vector.shape_cast %59 : vector<1x128xf32> to vector<1x1x128xf32>
    tpu.vector_store %arg22[%c1_36, %c2_37, %c0_38], %62 {strides = array<i32>} : memref<2x3x128xf32, #tpu.memory_space<vmem>>, vector<1x1x128xf32>,
    %63 = vector.extract_strided_slice %46 {offsets = [0, 0], sizes = [1, 128], strides = [1, 1]} : vector<1x256xf32> to vector<1x128xf32>
    %c1_39 = arith.constant 1 : index
    %c0_40 = arith.constant 0 : index
    %c0_41 = arith.constant 0 : index
    %64 = vector.load %arg22[%c1_39, %c0_40, %c0_41] : memref<2x3x128xf32, #tpu.memory_space<vmem>>, vector<1x1x128xf32>
    %65 = vector.shape_cast %64 : vector<1x1x128xf32> to vector<1x128xf32>
    %66 = vector.shape_cast %63 : vector<1x128xf32> to vector<1x1x128xf32>
    tpu.vector_store %arg22[%c1_39, %c0_40, %c0_41], %66 {strides = array<i32>} : memref<2x3x128xf32, #tpu.memory_space<vmem>>, vector<1x1x128xf32>,
    %67 = vector.extract_strided_slice %46 {offsets = [0, 128], sizes = [1, 128], strides = [1, 1]} : vector<1x256xf32> to vector<1x128xf32>
    %c1_42 = arith.constant 1 : index
    %c1_43 = arith.constant 1 : index
    %c0_44 = arith.constant 0 : index
    %68 = vector.load %arg22[%c1_42, %c1_43, %c0_44] : memref<2x3x128xf32, #tpu.memory_space<vmem>>, vector<1x1x128xf32>
    %69 = vector.shape_cast %68 : vector<1x1x128xf32> to vector<1x128xf32>
    %70 = vector.shape_cast %67 : vector<1x128xf32> to vector<1x1x128xf32>
    tpu.vector_store %arg22[%c1_42, %c1_43, %c0_44], %70 {strides = array<i32>} : memref<2x3x128xf32, #tpu.memory_space<vmem>>, vector<1x1x128xf32>,
    %c0_45 = arith.constant 0 : index
    %c0_46 = arith.constant 0 : index
    %c0_47 = arith.constant 0 : index
    %71 = vector.load %arg22[%c0_45, %c0_46, %c0_47] : memref<2x3x128xf32, #tpu.memory_space<vmem>>, vector<1x2x128xf32>
    %72 = vector.shape_cast %71 : vector<1x2x128xf32> to vector<2x128xf32>
    %c0_48 = arith.constant 0 : index
    %c1_49 = arith.constant 1 : index
    %c0_50 = arith.constant 0 : index
    %73 = vector.load %arg22[%c0_48, %c1_49, %c0_50] : memref<2x3x128xf32, #tpu.memory_space<vmem>>, vector<1x2x128xf32>
    %74 = vector.shape_cast %73 : vector<1x2x128xf32> to vector<2x128xf32>
    %c0_51 = arith.constant 0 : index
    %c0_52 = arith.constant 0 : index
    %75 = vector.load %arg6[%c0_51, %c0_52] : memref<128x256xf32, #tpu.memory_space<vmem>>, vector<128x256xf32>
    %cst_53 = arith.constant dense<0.000000e+00> : vector<2x256xf32>
    %76 = tpu.matmul %72, %75, %cst_53 {dimension_numbers = #tpu.dot_dimension_numbers<[1], [0], [0], [1], [0, 0, 1, 1], [], []>} : vector<2x128xf32>, vector<128x256xf32>, vector<2x256xf32> -> vector<2x256xf32>
    %c0_54 = arith.constant 0 : index
    %c0_55 = arith.constant 0 : index
    %77 = vector.load %arg7[%c0_54, %c0_55] : memref<128x256xf32, #tpu.memory_space<vmem>>, vector<128x256xf32>
    %cst_56 = arith.constant dense<0.000000e+00> : vector<2x256xf32>
    %78 = tpu.matmul %74, %77, %cst_56 {dimension_numbers = #tpu.dot_dimension_numbers<[1], [0], [0], [1], [0, 0, 1, 1], [], []>} : vector<2x128xf32>, vector<128x256xf32>, vector<2x256xf32> -> vector<2x256xf32>
    %79 = arith.addf %76, %78 : vector<2x256xf32>
    %c0_57 = arith.constant 0 : index
    %c0_58 = arith.constant 0 : index
    %80 = vector.load %arg8[%c0_57, %c0_58] : memref<1x256xf32, #tpu.memory_space<vmem>>, vector<1x256xf32>
    %81 = vector.broadcast %80 : vector<1x256xf32> to vector<2x256xf32>
    %82 = arith.addf %79, %81 : vector<2x256xf32>
    %c1_59 = arith.constant 1 : index
    %c0_60 = arith.constant 0 : index
    %c0_61 = arith.constant 0 : index
    %83 = vector.load %arg22[%c1_59, %c0_60, %c0_61] : memref<2x3x128xf32, #tpu.memory_space<vmem>>, vector<1x2x128xf32>
    %84 = vector.shape_cast %83 : vector<1x2x128xf32> to vector<2x128xf32>
    %c1_62 = arith.constant 1 : index
    %c1_63 = arith.constant 1 : index
    %c0_64 = arith.constant 0 : index
    %85 = vector.load %arg22[%c1_62, %c1_63, %c0_64] : memref<2x3x128xf32, #tpu.memory_space<vmem>>, vector<1x2x128xf32>
    %86 = vector.shape_cast %85 : vector<1x2x128xf32> to vector<2x128xf32>
    %c0_65 = arith.constant 0 : index
    %c0_66 = arith.constant 0 : index
    %87 = vector.load %arg6[%c0_65, %c0_66] : memref<128x256xf32, #tpu.memory_space<vmem>>, vector<128x256xf32>
    %cst_67 = arith.constant dense<0.000000e+00> : vector<2x256xf32>
    %88 = tpu.matmul %84, %87, %cst_67 {dimension_numbers = #tpu.dot_dimension_numbers<[1], [0], [0], [1], [0, 0, 1, 1], [], []>} : vector<2x128xf32>, vector<128x256xf32>, vector<2x256xf32> -> vector<2x256xf32>
    %c0_68 = arith.constant 0 : index
    %c0_69 = arith.constant 0 : index
    %89 = vector.load %arg7[%c0_68, %c0_69] : memref<128x256xf32, #tpu.memory_space<vmem>>, vector<128x256xf32>
    %cst_70 = arith.constant dense<0.000000e+00> : vector<2x256xf32>
    %90 = tpu.matmul %86, %89, %cst_70 {dimension_numbers = #tpu.dot_dimension_numbers<[1], [0], [0], [1], [0, 0, 1, 1], [], []>} : vector<2x128xf32>, vector<128x256xf32>, vector<2x256xf32> -> vector<2x256xf32>
    %91 = arith.addf %88, %90 : vector<2x256xf32>
    %c0_71 = arith.constant 0 : index
    %c0_72 = arith.constant 0 : index
    %92 = vector.load %arg8[%c0_71, %c0_72] : memref<1x256xf32, #tpu.memory_space<vmem>>, vector<1x256xf32>
    %93 = vector.broadcast %92 : vector<1x256xf32> to vector<2x256xf32>
    %94 = arith.addf %91, %93 : vector<2x256xf32>
    %cst_73 = arith.constant 1.000000e+00 : f32
    %95 = vector.broadcast %cst_73 : f32 to vector<1x2xf32>
    %cst_74 = arith.constant dense<0.000000e+00> : vector<1x256xf32>
    %96 = tpu.matmul %95, %82, %cst_74 {dimension_numbers = #tpu.dot_dimension_numbers<[1], [0], [0], [1], [0, 0, 1, 1], [], []>} : vector<1x2xf32>, vector<2x256xf32>, vector<1x256xf32> -> vector<1x256xf32>
    %cst_75 = arith.constant 1.000000e+00 : f32
    %97 = vector.broadcast %cst_75 : f32 to vector<1x2xf32>
    %cst_76 = arith.constant dense<0.000000e+00> : vector<1x256xf32>
    %98 = tpu.matmul %97, %94, %cst_76 {dimension_numbers = #tpu.dot_dimension_numbers<[1], [0], [0], [1], [0, 0, 1, 1], [], []>} : vector<1x2xf32>, vector<2x256xf32>, vector<1x256xf32> -> vector<1x256xf32>
    %99 = arith.addf %96, %98 : vector<1x256xf32>
    %c0_77 = arith.constant 0 : index
    %c0_78 = arith.constant 0 : index
    %100 = vector.load %arg11[%c0_77, %c0_78] : memref<256x256xf32, #tpu.memory_space<vmem>>, vector<256x256xf32>
    %cst_79 = arith.constant dense<0.000000e+00> : vector<1x256xf32>
    %101 = tpu.matmul %99, %100, %cst_79 {dimension_numbers = #tpu.dot_dimension_numbers<[1], [0], [0], [1], [0, 0, 1, 1], [], []>} : vector<1x256xf32>, vector<256x256xf32>, vector<1x256xf32> -> vector<1x256xf32>
    %cst_80 = arith.constant 3.125000e-02 : f32
    %102 = vector.broadcast %cst_80 : f32 to vector<1x256xf32>
    %103 = arith.mulf %101, %102 : vector<1x256xf32>
    %104 = vector.broadcast %103 : vector<1x256xf32> to vector<2x256xf32>
    %105 = arith.subf %82, %104 : vector<2x256xf32>
    %106 = vector.broadcast %103 : vector<1x256xf32> to vector<2x256xf32>
    %107 = arith.subf %94, %106 : vector<2x256xf32>
    %108 = arith.mulf %105, %105 : vector<2x256xf32>
    %109 = arith.mulf %107, %107 : vector<2x256xf32>
    %cst_81 = arith.constant 1.000000e+00 : f32
    %110 = vector.broadcast %cst_81 : f32 to vector<1x2xf32>
    %cst_82 = arith.constant dense<0.000000e+00> : vector<1x256xf32>
    %111 = tpu.matmul %110, %108, %cst_82 {dimension_numbers = #tpu.dot_dimension_numbers<[1], [0], [0], [1], [0, 0, 1, 1], [], []>} : vector<1x2xf32>, vector<2x256xf32>, vector<1x256xf32> -> vector<1x256xf32>
    %cst_83 = arith.constant 1.000000e+00 : f32
    %112 = vector.broadcast %cst_83 : f32 to vector<1x2xf32>
    %cst_84 = arith.constant dense<0.000000e+00> : vector<1x256xf32>
    %113 = tpu.matmul %112, %109, %cst_84 {dimension_numbers = #tpu.dot_dimension_numbers<[1], [0], [0], [1], [0, 0, 1, 1], [], []>} : vector<1x2xf32>, vector<2x256xf32>, vector<1x256xf32> -> vector<1x256xf32>
    %114 = arith.addf %111, %113 : vector<1x256xf32>
    %c0_85 = arith.constant 0 : index
    %c0_86 = arith.constant 0 : index
    %115 = vector.load %arg11[%c0_85, %c0_86] : memref<256x256xf32, #tpu.memory_space<vmem>>, vector<256x256xf32>
    %cst_87 = arith.constant dense<0.000000e+00> : vector<1x256xf32>
    %116 = tpu.matmul %114, %115, %cst_87 {dimension_numbers = #tpu.dot_dimension_numbers<[1], [0], [0], [1], [0, 0, 1, 1], [], []>} : vector<1x256xf32>, vector<256x256xf32>, vector<1x256xf32> -> vector<1x256xf32>
    %cst_88 = arith.constant 3.125000e-02 : f32
    %117 = vector.broadcast %cst_88 : f32 to vector<1x256xf32>
    %118 = arith.mulf %116, %117 : vector<1x256xf32>
    %c0_89 = arith.constant 0 : index
    %c0_90 = arith.constant 0 : index
    %119 = vector.load %arg9[%c0_89, %c0_90] : memref<1x256xf32, #tpu.memory_space<vmem>>, vector<1x256xf32>
    %cst_91 = arith.constant 9.99999974E-6 : f32
    %120 = vector.broadcast %cst_91 : f32 to vector<1x256xf32>
    %121 = arith.addf %118, %120 : vector<1x256xf32>
    %122 = math.rsqrt %121 : vector<1x256xf32>
    %123 = arith.mulf %119, %122 : vector<1x256xf32>
    %c0_92 = arith.constant 0 : index
    %c0_93 = arith.constant 0 : index
    %124 = vector.load %arg10[%c0_92, %c0_93] : memref<1x256xf32, #tpu.memory_space<vmem>>, vector<1x256xf32>
    %125 = vector.broadcast %123 : vector<1x256xf32> to vector<2x256xf32>
    %126 = arith.mulf %105, %125 : vector<2x256xf32>
    %127 = vector.broadcast %124 : vector<1x256xf32> to vector<2x256xf32>
    %128 = arith.addf %126, %127 : vector<2x256xf32>
    %cst_94 = arith.constant 0.000000e+00 : f32
    %129 = vector.broadcast %cst_94 : f32 to vector<2x256xf32>
    %130 = arith.cmpf oge, %128, %129 : vector<2x256xf32>
    %cst_95 = arith.constant 0.00999999977 : f32
    %131 = vector.broadcast %cst_95 : f32 to vector<2x256xf32>
    %132 = arith.mulf %131, %128 : vector<2x256xf32>
    %133 = arith.select %130, %128, %132 : vector<2x256xi1>, vector<2x256xf32>
    %134 = arith.mulf %133, %133 : vector<2x256xf32>
    %135 = vector.broadcast %123 : vector<1x256xf32> to vector<2x256xf32>
    %136 = arith.mulf %107, %135 : vector<2x256xf32>
    %137 = vector.broadcast %124 : vector<1x256xf32> to vector<2x256xf32>
    %138 = arith.addf %136, %137 : vector<2x256xf32>
    %cst_96 = arith.constant 0.000000e+00 : f32
    %139 = vector.broadcast %cst_96 : f32 to vector<2x256xf32>
    %140 = arith.cmpf oge, %138, %139 : vector<2x256xf32>
    %cst_97 = arith.constant 0.00999999977 : f32
    %141 = vector.broadcast %cst_97 : f32 to vector<2x256xf32>
    %142 = arith.mulf %141, %138 : vector<2x256xf32>
    %143 = arith.select %140, %138, %142 : vector<2x256xi1>, vector<2x256xf32>
    %144 = arith.mulf %143, %143 : vector<2x256xf32>
    %cst_98 = arith.constant 0.000000e+00 : f32
    %145 = vector.broadcast %cst_98 : f32 to vector<1x128xf32>
    %c0_99 = arith.constant 0 : index
    %c4 = arith.constant 4 : index
    %c0_100 = arith.constant 0 : index
    %146 = vector.load %arg23[%c0_99, %c4, %c0_100] : memref<2x5x128xf32, #tpu.memory_space<vmem>>, vector<1x1x128xf32>
    %147 = vector.shape_cast %146 : vector<1x1x128xf32> to vector<1x128xf32>
    %148 = vector.shape_cast %145 : vector<1x128xf32> to vector<1x1x128xf32>
    tpu.vector_store %arg23[%c0_99, %c4, %c0_100], %148 {strides = array<i32>} : memref<2x5x128xf32, #tpu.memory_space<vmem>>, vector<1x1x128xf32>,
    %149 = vector.extract_strided_slice %134 {offsets = [0, 0], sizes = [1, 128], strides = [1, 1]} : vector<2x256xf32> to vector<1x128xf32>
    %c0_101 = arith.constant 0 : index
    %c0_102 = arith.constant 0 : index
    %c0_103 = arith.constant 0 : index
    %150 = vector.load %arg23[%c0_101, %c0_102, %c0_103] : memref<2x5x128xf32, #tpu.memory_space<vmem>>, vector<1x1x128xf32>
    %151 = vector.shape_cast %150 : vector<1x1x128xf32> to vector<1x128xf32>
    %152 = vector.shape_cast %149 : vector<1x128xf32> to vector<1x1x128xf32>
    tpu.vector_store %arg23[%c0_101, %c0_102, %c0_103], %152 {strides = array<i32>} : memref<2x5x128xf32, #tpu.memory_space<vmem>>, vector<1x1x128xf32>,
    %153 = vector.extract_strided_slice %134 {offsets = [0, 128], sizes = [1, 128], strides = [1, 1]} : vector<2x256xf32> to vector<1x128xf32>
    %c0_104 = arith.constant 0 : index
    %c1_105 = arith.constant 1 : index
    %c0_106 = arith.constant 0 : index
    %154 = vector.load %arg23[%c0_104, %c1_105, %c0_106] : memref<2x5x128xf32, #tpu.memory_space<vmem>>, vector<1x1x128xf32>
    %155 = vector.shape_cast %154 : vector<1x1x128xf32> to vector<1x128xf32>
    %156 = vector.shape_cast %153 : vector<1x128xf32> to vector<1x1x128xf32>
    tpu.vector_store %arg23[%c0_104, %c1_105, %c0_106], %156 {strides = array<i32>} : memref<2x5x128xf32, #tpu.memory_space<vmem>>, vector<1x1x128xf32>,
    %157 = vector.extract_strided_slice %134 {offsets = [1, 0], sizes = [1, 128], strides = [1, 1]} : vector<2x256xf32> to vector<1x128xf32>
    %c0_107 = arith.constant 0 : index
    %c2_108 = arith.constant 2 : index
    %c0_109 = arith.constant 0 : index
    %158 = vector.load %arg23[%c0_107, %c2_108, %c0_109] : memref<2x5x128xf32, #tpu.memory_space<vmem>>, vector<1x1x128xf32>
    %159 = vector.shape_cast %158 : vector<1x1x128xf32> to vector<1x128xf32>
    %160 = vector.shape_cast %157 : vector<1x128xf32> to vector<1x1x128xf32>
    tpu.vector_store %arg23[%c0_107, %c2_108, %c0_109], %160 {strides = array<i32>} : memref<2x5x128xf32, #tpu.memory_space<vmem>>, vector<1x1x128xf32>,
    %161 = vector.extract_strided_slice %134 {offsets = [1, 128], sizes = [1, 128], strides = [1, 1]} : vector<2x256xf32> to vector<1x128xf32>
    %c0_110 = arith.constant 0 : index
    %c3 = arith.constant 3 : index
    %c0_111 = arith.constant 0 : index
    %162 = vector.load %arg23[%c0_110, %c3, %c0_111] : memref<2x5x128xf32, #tpu.memory_space<vmem>>, vector<1x1x128xf32>
    %163 = vector.shape_cast %162 : vector<1x1x128xf32> to vector<1x128xf32>
    %164 = vector.shape_cast %161 : vector<1x128xf32> to vector<1x1x128xf32>
    tpu.vector_store %arg23[%c0_110, %c3, %c0_111], %164 {strides = array<i32>} : memref<2x5x128xf32, #tpu.memory_space<vmem>>, vector<1x1x128xf32>,
    %cst_112 = arith.constant 0.000000e+00 : f32
    %165 = vector.broadcast %cst_112 : f32 to vector<1x128xf32>
    %c1_113 = arith.constant 1 : index
    %c4_114 = arith.constant 4 : index
    %c0_115 = arith.constant 0 : index
    %166 = vector.load %arg23[%c1_113, %c4_114, %c0_115] : memref<2x5x128xf32, #tpu.memory_space<vmem>>, vector<1x1x128xf32>
    %167 = vector.shape_cast %166 : vector<1x1x128xf32> to vector<1x128xf32>
    %168 = vector.shape_cast %165 : vector<1x128xf32> to vector<1x1x128xf32>
    tpu.vector_store %arg23[%c1_113, %c4_114, %c0_115], %168 {strides = array<i32>} : memref<2x5x128xf32, #tpu.memory_space<vmem>>, vector<1x1x128xf32>,
    %169 = vector.extract_strided_slice %144 {offsets = [0, 0], sizes = [1, 128], strides = [1, 1]} : vector<2x256xf32> to vector<1x128xf32>
    %c1_116 = arith.constant 1 : index
    %c0_117 = arith.constant 0 : index
    %c0_118 = arith.constant 0 : index
    %170 = vector.load %arg23[%c1_116, %c0_117, %c0_118] : memref<2x5x128xf32, #tpu.memory_space<vmem>>, vector<1x1x128xf32>
    %171 = vector.shape_cast %170 : vector<1x1x128xf32> to vector<1x128xf32>
    %172 = vector.shape_cast %169 : vector<1x128xf32> to vector<1x1x128xf32>
    tpu.vector_store %arg23[%c1_116, %c0_117, %c0_118], %172 {strides = array<i32>} : memref<2x5x128xf32, #tpu.memory_space<vmem>>, vector<1x1x128xf32>,
    %173 = vector.extract_strided_slice %144 {offsets = [0, 128], sizes = [1, 128], strides = [1, 1]} : vector<2x256xf32> to vector<1x128xf32>
    %c1_119 = arith.constant 1 : index
    %c1_120 = arith.constant 1 : index
    %c0_121 = arith.constant 0 : index
    %174 = vector.load %arg23[%c1_119, %c1_120, %c0_121] : memref<2x5x128xf32, #tpu.memory_space<vmem>>, vector<1x1x128xf32>
    %175 = vector.shape_cast %174 : vector<1x1x128xf32> to vector<1x128xf32>
    %176 = vector.shape_cast %173 : vector<1x128xf32> to vector<1x1x128xf32>
    tpu.vector_store %arg23[%c1_119, %c1_120, %c0_121], %176 {strides = array<i32>} : memref<2x5x128xf32, #tpu.memory_space<vmem>>, vector<1x1x128xf32>,
    %177 = vector.extract_strided_slice %144 {offsets = [1, 0], sizes = [1, 128], strides = [1, 1]} : vector<2x256xf32> to vector<1x128xf32>
    %c1_122 = arith.constant 1 : index
    %c2_123 = arith.constant 2 : index
    %c0_124 = arith.constant 0 : index
    %178 = vector.load %arg23[%c1_122, %c2_123, %c0_124] : memref<2x5x128xf32, #tpu.memory_space<vmem>>, vector<1x1x128xf32>
    %179 = vector.shape_cast %178 : vector<1x1x128xf32> to vector<1x128xf32>
    %180 = vector.shape_cast %177 : vector<1x128xf32> to vector<1x1x128xf32>
    tpu.vector_store %arg23[%c1_122, %c2_123, %c0_124], %180 {strides = array<i32>} : memref<2x5x128xf32, #tpu.memory_space<vmem>>, vector<1x1x128xf32>,
    %181 = vector.extract_strided_slice %144 {offsets = [1, 128], sizes = [1, 128], strides = [1, 1]} : vector<2x256xf32> to vector<1x128xf32>
    %c1_125 = arith.constant 1 : index
    %c3_126 = arith.constant 3 : index
    %c0_127 = arith.constant 0 : index
    %182 = vector.load %arg23[%c1_125, %c3_126, %c0_127] : memref<2x5x128xf32, #tpu.memory_space<vmem>>, vector<1x1x128xf32>
    %183 = vector.shape_cast %182 : vector<1x1x128xf32> to vector<1x128xf32>
    %184 = vector.shape_cast %181 : vector<1x128xf32> to vector<1x1x128xf32>
    tpu.vector_store %arg23[%c1_125, %c3_126, %c0_127], %184 {strides = array<i32>} : memref<2x5x128xf32, #tpu.memory_space<vmem>>, vector<1x1x128xf32>,
    %c0_128 = arith.constant 0 : index
    %c0_129 = arith.constant 0 : index
    %c0_130 = arith.constant 0 : index
    %185 = vector.load %arg23[%c0_128, %c0_129, %c0_130] : memref<2x5x128xf32, #tpu.memory_space<vmem>>, vector<1x4x128xf32>
    %186 = vector.shape_cast %185 : vector<1x4x128xf32> to vector<4x128xf32>
    %c0_131 = arith.constant 0 : index
    %c1_132 = arith.constant 1 : index
    %c0_133 = arith.constant 0 : index
    %187 = vector.load %arg23[%c0_131, %c1_132, %c0_133] : memref<2x5x128xf32, #tpu.memory_space<vmem>>, vector<1x4x128xf32>
    %188 = vector.shape_cast %187 : vector<1x4x128xf32> to vector<4x128xf32>
    %c0_134 = arith.constant 0 : index
    %c0_135 = arith.constant 0 : index
    %189 = vector.load %arg12[%c0_134, %c0_135] : memref<128x256xf32, #tpu.memory_space<vmem>>, vector<128x256xf32>
    %cst_136 = arith.constant dense<0.000000e+00> : vector<4x256xf32>
    %190 = tpu.matmul %186, %189, %cst_136 {dimension_numbers = #tpu.dot_dimension_numbers<[1], [0], [0], [1], [0, 0, 1, 1], [], []>} : vector<4x128xf32>, vector<128x256xf32>, vector<4x256xf32> -> vector<4x256xf32>
    %c0_137 = arith.constant 0 : index
    %c0_138 = arith.constant 0 : index
    %191 = vector.load %arg13[%c0_137, %c0_138] : memref<128x256xf32, #tpu.memory_space<vmem>>, vector<128x256xf32>
    %cst_139 = arith.constant dense<0.000000e+00> : vector<4x256xf32>
    %192 = tpu.matmul %188, %191, %cst_139 {dimension_numbers = #tpu.dot_dimension_numbers<[1], [0], [0], [1], [0, 0, 1, 1], [], []>} : vector<4x128xf32>, vector<128x256xf32>, vector<4x256xf32> -> vector<4x256xf32>
    %193 = arith.addf %190, %192 : vector<4x256xf32>
    %c0_140 = arith.constant 0 : index
    %c0_141 = arith.constant 0 : index
    %194 = vector.load %arg14[%c0_140, %c0_141] : memref<1x256xf32, #tpu.memory_space<vmem>>, vector<1x256xf32>
    %195 = vector.broadcast %194 : vector<1x256xf32> to vector<4x256xf32>
    %196 = arith.addf %193, %195 : vector<4x256xf32>
    %c1_142 = arith.constant 1 : index
    %c0_143 = arith.constant 0 : index
    %c0_144 = arith.constant 0 : index
    %197 = vector.load %arg23[%c1_142, %c0_143, %c0_144] : memref<2x5x128xf32, #tpu.memory_space<vmem>>, vector<1x4x128xf32>
    %198 = vector.shape_cast %197 : vector<1x4x128xf32> to vector<4x128xf32>
    %c1_145 = arith.constant 1 : index
    %c1_146 = arith.constant 1 : index
    %c0_147 = arith.constant 0 : index
    %199 = vector.load %arg23[%c1_145, %c1_146, %c0_147] : memref<2x5x128xf32, #tpu.memory_space<vmem>>, vector<1x4x128xf32>
    %200 = vector.shape_cast %199 : vector<1x4x128xf32> to vector<4x128xf32>
    %c0_148 = arith.constant 0 : index
    %c0_149 = arith.constant 0 : index
    %201 = vector.load %arg12[%c0_148, %c0_149] : memref<128x256xf32, #tpu.memory_space<vmem>>, vector<128x256xf32>
    %cst_150 = arith.constant dense<0.000000e+00> : vector<4x256xf32>
    %202 = tpu.matmul %198, %201, %cst_150 {dimension_numbers = #tpu.dot_dimension_numbers<[1], [0], [0], [1], [0, 0, 1, 1], [], []>} : vector<4x128xf32>, vector<128x256xf32>, vector<4x256xf32> -> vector<4x256xf32>
    %c0_151 = arith.constant 0 : index
    %c0_152 = arith.constant 0 : index
    %203 = vector.load %arg13[%c0_151, %c0_152] : memref<128x256xf32, #tpu.memory_space<vmem>>, vector<128x256xf32>
    %cst_153 = arith.constant dense<0.000000e+00> : vector<4x256xf32>
    %204 = tpu.matmul %200, %203, %cst_153 {dimension_numbers = #tpu.dot_dimension_numbers<[1], [0], [0], [1], [0, 0, 1, 1], [], []>} : vector<4x128xf32>, vector<128x256xf32>, vector<4x256xf32> -> vector<4x256xf32>
    %205 = arith.addf %202, %204 : vector<4x256xf32>
    %c0_154 = arith.constant 0 : index
    %c0_155 = arith.constant 0 : index
    %206 = vector.load %arg14[%c0_154, %c0_155] : memref<1x256xf32, #tpu.memory_space<vmem>>, vector<1x256xf32>
    %207 = vector.broadcast %206 : vector<1x256xf32> to vector<4x256xf32>
    %208 = arith.addf %205, %207 : vector<4x256xf32>
    %cst_156 = arith.constant 1.000000e+00 : f32
    %209 = vector.broadcast %cst_156 : f32 to vector<1x4xf32>
    %cst_157 = arith.constant dense<0.000000e+00> : vector<1x256xf32>
    %210 = tpu.matmul %209, %196, %cst_157 {dimension_numbers = #tpu.dot_dimension_numbers<[1], [0], [0], [1], [0, 0, 1, 1], [], []>} : vector<1x4xf32>, vector<4x256xf32>, vector<1x256xf32> -> vector<1x256xf32>
    %cst_158 = arith.constant 1.000000e+00 : f32
    %211 = vector.broadcast %cst_158 : f32 to vector<1x4xf32>
    %cst_159 = arith.constant dense<0.000000e+00> : vector<1x256xf32>
    %212 = tpu.matmul %211, %208, %cst_159 {dimension_numbers = #tpu.dot_dimension_numbers<[1], [0], [0], [1], [0, 0, 1, 1], [], []>} : vector<1x4xf32>, vector<4x256xf32>, vector<1x256xf32> -> vector<1x256xf32>
    %213 = arith.addf %210, %212 : vector<1x256xf32>
    %c0_160 = arith.constant 0 : index
    %c0_161 = arith.constant 0 : index
    %214 = vector.load %arg17[%c0_160, %c0_161] : memref<256x256xf32, #tpu.memory_space<vmem>>, vector<256x256xf32>
    %cst_162 = arith.constant dense<0.000000e+00> : vector<1x256xf32>
    %215 = tpu.matmul %213, %214, %cst_162 {dimension_numbers = #tpu.dot_dimension_numbers<[1], [0], [0], [1], [0, 0, 1, 1], [], []>} : vector<1x256xf32>, vector<256x256xf32>, vector<1x256xf32> -> vector<1x256xf32>
    %cst_163 = arith.constant 7.812500e-03 : f32
    %216 = vector.broadcast %cst_163 : f32 to vector<1x256xf32>
    %217 = arith.mulf %215, %216 : vector<1x256xf32>
    %218 = vector.broadcast %217 : vector<1x256xf32> to vector<4x256xf32>
    %219 = arith.subf %196, %218 : vector<4x256xf32>
    %220 = vector.broadcast %217 : vector<1x256xf32> to vector<4x256xf32>
    %221 = arith.subf %208, %220 : vector<4x256xf32>
    %222 = arith.mulf %219, %219 : vector<4x256xf32>
    %223 = arith.mulf %221, %221 : vector<4x256xf32>
    %cst_164 = arith.constant 1.000000e+00 : f32
    %224 = vector.broadcast %cst_164 : f32 to vector<1x4xf32>
    %cst_165 = arith.constant dense<0.000000e+00> : vector<1x256xf32>
    %225 = tpu.matmul %224, %222, %cst_165 {dimension_numbers = #tpu.dot_dimension_numbers<[1], [0], [0], [1], [0, 0, 1, 1], [], []>} : vector<1x4xf32>, vector<4x256xf32>, vector<1x256xf32> -> vector<1x256xf32>
    %cst_166 = arith.constant 1.000000e+00 : f32
    %226 = vector.broadcast %cst_166 : f32 to vector<1x4xf32>
    %cst_167 = arith.constant dense<0.000000e+00> : vector<1x256xf32>
    %227 = tpu.matmul %226, %223, %cst_167 {dimension_numbers = #tpu.dot_dimension_numbers<[1], [0], [0], [1], [0, 0, 1, 1], [], []>} : vector<1x4xf32>, vector<4x256xf32>, vector<1x256xf32> -> vector<1x256xf32>
    %228 = arith.addf %225, %227 : vector<1x256xf32>
    %c0_168 = arith.constant 0 : index
    %c0_169 = arith.constant 0 : index
    %229 = vector.load %arg17[%c0_168, %c0_169] : memref<256x256xf32, #tpu.memory_space<vmem>>, vector<256x256xf32>
    %cst_170 = arith.constant dense<0.000000e+00> : vector<1x256xf32>
    %230 = tpu.matmul %228, %229, %cst_170 {dimension_numbers = #tpu.dot_dimension_numbers<[1], [0], [0], [1], [0, 0, 1, 1], [], []>} : vector<1x256xf32>, vector<256x256xf32>, vector<1x256xf32> -> vector<1x256xf32>
    %cst_171 = arith.constant 7.812500e-03 : f32
    %231 = vector.broadcast %cst_171 : f32 to vector<1x256xf32>
    %232 = arith.mulf %230, %231 : vector<1x256xf32>
    %c0_172 = arith.constant 0 : index
    %c0_173 = arith.constant 0 : index
    %233 = vector.load %arg15[%c0_172, %c0_173] : memref<1x256xf32, #tpu.memory_space<vmem>>, vector<1x256xf32>
    %cst_174 = arith.constant 9.99999974E-6 : f32
    %234 = vector.broadcast %cst_174 : f32 to vector<1x256xf32>
    %235 = arith.addf %232, %234 : vector<1x256xf32>
    %236 = math.rsqrt %235 : vector<1x256xf32>
    %237 = arith.mulf %233, %236 : vector<1x256xf32>
    %c0_175 = arith.constant 0 : index
    %c0_176 = arith.constant 0 : index
    %238 = vector.load %arg16[%c0_175, %c0_176] : memref<1x256xf32, #tpu.memory_space<vmem>>, vector<1x256xf32>
    %239 = vector.broadcast %237 : vector<1x256xf32> to vector<4x256xf32>
    %240 = arith.mulf %219, %239 : vector<4x256xf32>
    %241 = vector.broadcast %238 : vector<1x256xf32> to vector<4x256xf32>
    %242 = arith.addf %240, %241 : vector<4x256xf32>
    %cst_177 = arith.constant 0.000000e+00 : f32
    %243 = vector.broadcast %cst_177 : f32 to vector<4x256xf32>
    %244 = arith.cmpf oge, %242, %243 : vector<4x256xf32>
    %cst_178 = arith.constant 0.00999999977 : f32
    %245 = vector.broadcast %cst_178 : f32 to vector<4x256xf32>
    %246 = arith.mulf %245, %242 : vector<4x256xf32>
    %247 = arith.select %244, %242, %246 : vector<4x256xi1>, vector<4x256xf32>
    %248 = arith.mulf %247, %247 : vector<4x256xf32>
    %249 = vector.broadcast %237 : vector<1x256xf32> to vector<4x256xf32>
    %250 = arith.mulf %221, %249 : vector<4x256xf32>
    %251 = vector.broadcast %238 : vector<1x256xf32> to vector<4x256xf32>
    %252 = arith.addf %250, %251 : vector<4x256xf32>
    %cst_179 = arith.constant 0.000000e+00 : f32
    %253 = vector.broadcast %cst_179 : f32 to vector<4x256xf32>
    %254 = arith.cmpf oge, %252, %253 : vector<4x256xf32>
    %cst_180 = arith.constant 0.00999999977 : f32
    %255 = vector.broadcast %cst_180 : f32 to vector<4x256xf32>
    %256 = arith.mulf %255, %252 : vector<4x256xf32>
    %257 = arith.select %254, %252, %256 : vector<4x256xi1>, vector<4x256xf32>
    %258 = arith.mulf %257, %257 : vector<4x256xf32>
    %cst_181 = arith.constant 0.000000e+00 : f32
    %259 = vector.broadcast %cst_181 : f32 to vector<1x128xf32>
    %c0_182 = arith.constant 0 : index
    %c8 = arith.constant 8 : index
    %c0_183 = arith.constant 0 : index
    %260 = vector.load %arg24[%c0_182, %c8, %c0_183] : memref<2x9x128xf32, #tpu.memory_space<vmem>>, vector<1x1x128xf32>
    %261 = vector.shape_cast %260 : vector<1x1x128xf32> to vector<1x128xf32>
    %262 = vector.shape_cast %259 : vector<1x128xf32> to vector<1x1x128xf32>
    tpu.vector_store %arg24[%c0_182, %c8, %c0_183], %262 {strides = array<i32>} : memref<2x9x128xf32, #tpu.memory_space<vmem>>, vector<1x1x128xf32>,
    %263 = vector.extract_strided_slice %248 {offsets = [0, 0], sizes = [1, 128], strides = [1, 1]} : vector<4x256xf32> to vector<1x128xf32>
    %c0_184 = arith.constant 0 : index
    %c0_185 = arith.constant 0 : index
    %c0_186 = arith.constant 0 : index
    %264 = vector.load %arg24[%c0_184, %c0_185, %c0_186] : memref<2x9x128xf32, #tpu.memory_space<vmem>>, vector<1x1x128xf32>
    %265 = vector.shape_cast %264 : vector<1x1x128xf32> to vector<1x128xf32>
    %266 = vector.shape_cast %263 : vector<1x128xf32> to vector<1x1x128xf32>
    tpu.vector_store %arg24[%c0_184, %c0_185, %c0_186], %266 {strides = array<i32>} : memref<2x9x128xf32, #tpu.memory_space<vmem>>, vector<1x1x128xf32>,
    %267 = vector.extract_strided_slice %248 {offsets = [0, 128], sizes = [1, 128], strides = [1, 1]} : vector<4x256xf32> to vector<1x128xf32>
    %c0_187 = arith.constant 0 : index
    %c1_188 = arith.constant 1 : index
    %c0_189 = arith.constant 0 : index
    %268 = vector.load %arg24[%c0_187, %c1_188, %c0_189] : memref<2x9x128xf32, #tpu.memory_space<vmem>>, vector<1x1x128xf32>
    %269 = vector.shape_cast %268 : vector<1x1x128xf32> to vector<1x128xf32>
    %270 = vector.shape_cast %267 : vector<1x128xf32> to vector<1x1x128xf32>
    tpu.vector_store %arg24[%c0_187, %c1_188, %c0_189], %270 {strides = array<i32>} : memref<2x9x128xf32, #tpu.memory_space<vmem>>, vector<1x1x128xf32>,
    %271 = vector.extract_strided_slice %248 {offsets = [1, 0], sizes = [1, 128], strides = [1, 1]} : vector<4x256xf32> to vector<1x128xf32>
    %c0_190 = arith.constant 0 : index
    %c2_191 = arith.constant 2 : index
    %c0_192 = arith.constant 0 : index
    %272 = vector.load %arg24[%c0_190, %c2_191, %c0_192] : memref<2x9x128xf32, #tpu.memory_space<vmem>>, vector<1x1x128xf32>
    %273 = vector.shape_cast %272 : vector<1x1x128xf32> to vector<1x128xf32>
    %274 = vector.shape_cast %271 : vector<1x128xf32> to vector<1x1x128xf32>
    tpu.vector_store %arg24[%c0_190, %c2_191, %c0_192], %274 {strides = array<i32>} : memref<2x9x128xf32, #tpu.memory_space<vmem>>, vector<1x1x128xf32>,
    %275 = vector.extract_strided_slice %248 {offsets = [1, 128], sizes = [1, 128], strides = [1, 1]} : vector<4x256xf32> to vector<1x128xf32>
    %c0_193 = arith.constant 0 : index
    %c3_194 = arith.constant 3 : index
    %c0_195 = arith.constant 0 : index
    %276 = vector.load %arg24[%c0_193, %c3_194, %c0_195] : memref<2x9x128xf32, #tpu.memory_space<vmem>>, vector<1x1x128xf32>
    %277 = vector.shape_cast %276 : vector<1x1x128xf32> to vector<1x128xf32>
    %278 = vector.shape_cast %275 : vector<1x128xf32> to vector<1x1x128xf32>
    tpu.vector_store %arg24[%c0_193, %c3_194, %c0_195], %278 {strides = array<i32>} : memref<2x9x128xf32, #tpu.memory_space<vmem>>, vector<1x1x128xf32>,
    %279 = vector.extract_strided_slice %248 {offsets = [2, 0], sizes = [1, 128], strides = [1, 1]} : vector<4x256xf32> to vector<1x128xf32>
    %c0_196 = arith.constant 0 : index
    %c4_197 = arith.constant 4 : index
    %c0_198 = arith.constant 0 : index
    %280 = vector.load %arg24[%c0_196, %c4_197, %c0_198] : memref<2x9x128xf32, #tpu.memory_space<vmem>>, vector<1x1x128xf32>
    %281 = vector.shape_cast %280 : vector<1x1x128xf32> to vector<1x128xf32>
    %282 = vector.shape_cast %279 : vector<1x128xf32> to vector<1x1x128xf32>
    tpu.vector_store %arg24[%c0_196, %c4_197, %c0_198], %282 {strides = array<i32>} : memref<2x9x128xf32, #tpu.memory_space<vmem>>, vector<1x1x128xf32>,
    %283 = vector.extract_strided_slice %248 {offsets = [2, 128], sizes = [1, 128], strides = [1, 1]} : vector<4x256xf32> to vector<1x128xf32>
    %c0_199 = arith.constant 0 : index
    %c5 = arith.constant 5 : index
    %c0_200 = arith.constant 0 : index
    %284 = vector.load %arg24[%c0_199, %c5, %c0_200] : memref<2x9x128xf32, #tpu.memory_space<vmem>>, vector<1x1x128xf32>
    %285 = vector.shape_cast %284 : vector<1x1x128xf32> to vector<1x128xf32>
    %286 = vector.shape_cast %283 : vector<1x128xf32> to vector<1x1x128xf32>
    tpu.vector_store %arg24[%c0_199, %c5, %c0_200], %286 {strides = array<i32>} : memref<2x9x128xf32, #tpu.memory_space<vmem>>, vector<1x1x128xf32>,
    %287 = vector.extract_strided_slice %248 {offsets = [3, 0], sizes = [1, 128], strides = [1, 1]} : vector<4x256xf32> to vector<1x128xf32>
    %c0_201 = arith.constant 0 : index
    %c6 = arith.constant 6 : index
    %c0_202 = arith.constant 0 : index
    %288 = vector.load %arg24[%c0_201, %c6, %c0_202] : memref<2x9x128xf32, #tpu.memory_space<vmem>>, vector<1x1x128xf32>
    %289 = vector.shape_cast %288 : vector<1x1x128xf32> to vector<1x128xf32>
    %290 = vector.shape_cast %287 : vector<1x128xf32> to vector<1x1x128xf32>
    tpu.vector_store %arg24[%c0_201, %c6, %c0_202], %290 {strides = array<i32>} : memref<2x9x128xf32, #tpu.memory_space<vmem>>, vector<1x1x128xf32>,
    %291 = vector.extract_strided_slice %248 {offsets = [3, 128], sizes = [1, 128], strides = [1, 1]} : vector<4x256xf32> to vector<1x128xf32>
    %c0_203 = arith.constant 0 : index
    %c7 = arith.constant 7 : index
    %c0_204 = arith.constant 0 : index
    %292 = vector.load %arg24[%c0_203, %c7, %c0_204] : memref<2x9x128xf32, #tpu.memory_space<vmem>>, vector<1x1x128xf32>
    %293 = vector.shape_cast %292 : vector<1x1x128xf32> to vector<1x128xf32>
    %294 = vector.shape_cast %291 : vector<1x128xf32> to vector<1x1x128xf32>
    tpu.vector_store %arg24[%c0_203, %c7, %c0_204], %294 {strides = array<i32>} : memref<2x9x128xf32, #tpu.memory_space<vmem>>, vector<1x1x128xf32>,
    %cst_205 = arith.constant 0.000000e+00 : f32
    %295 = vector.broadcast %cst_205 : f32 to vector<1x128xf32>
    %c1_206 = arith.constant 1 : index
    %c8_207 = arith.constant 8 : index
    %c0_208 = arith.constant 0 : index
    %296 = vector.load %arg24[%c1_206, %c8_207, %c0_208] : memref<2x9x128xf32, #tpu.memory_space<vmem>>, vector<1x1x128xf32>
    %297 = vector.shape_cast %296 : vector<1x1x128xf32> to vector<1x128xf32>
    %298 = vector.shape_cast %295 : vector<1x128xf32> to vector<1x1x128xf32>
    tpu.vector_store %arg24[%c1_206, %c8_207, %c0_208], %298 {strides = array<i32>} : memref<2x9x128xf32, #tpu.memory_space<vmem>>, vector<1x1x128xf32>,
    %299 = vector.extract_strided_slice %258 {offsets = [0, 0], sizes = [1, 128], strides = [1, 1]} : vector<4x256xf32> to vector<1x128xf32>
    %c1_209 = arith.constant 1 : index
    %c0_210 = arith.constant 0 : index
    %c0_211 = arith.constant 0 : index
    %300 = vector.load %arg24[%c1_209, %c0_210, %c0_211] : memref<2x9x128xf32, #tpu.memory_space<vmem>>, vector<1x1x128xf32>
    %301 = vector.shape_cast %300 : vector<1x1x128xf32> to vector<1x128xf32>
    %302 = vector.shape_cast %299 : vector<1x128xf32> to vector<1x1x128xf32>
    tpu.vector_store %arg24[%c1_209, %c0_210, %c0_211], %302 {strides = array<i32>} : memref<2x9x128xf32, #tpu.memory_space<vmem>>, vector<1x1x128xf32>,
    %303 = vector.extract_strided_slice %258 {offsets = [0, 128], sizes = [1, 128], strides = [1, 1]} : vector<4x256xf32> to vector<1x128xf32>
    %c1_212 = arith.constant 1 : index
    %c1_213 = arith.constant 1 : index
    %c0_214 = arith.constant 0 : index
    %304 = vector.load %arg24[%c1_212, %c1_213, %c0_214] : memref<2x9x128xf32, #tpu.memory_space<vmem>>, vector<1x1x128xf32>
    %305 = vector.shape_cast %304 : vector<1x1x128xf32> to vector<1x128xf32>
    %306 = vector.shape_cast %303 : vector<1x128xf32> to vector<1x1x128xf32>
    tpu.vector_store %arg24[%c1_212, %c1_213, %c0_214], %306 {strides = array<i32>} : memref<2x9x128xf32, #tpu.memory_space<vmem>>, vector<1x1x128xf32>,
    %307 = vector.extract_strided_slice %258 {offsets = [1, 0], sizes = [1, 128], strides = [1, 1]} : vector<4x256xf32> to vector<1x128xf32>
    %c1_215 = arith.constant 1 : index
    %c2_216 = arith.constant 2 : index
    %c0_217 = arith.constant 0 : index
    %308 = vector.load %arg24[%c1_215, %c2_216, %c0_217] : memref<2x9x128xf32, #tpu.memory_space<vmem>>, vector<1x1x128xf32>
    %309 = vector.shape_cast %308 : vector<1x1x128xf32> to vector<1x128xf32>
    %310 = vector.shape_cast %307 : vector<1x128xf32> to vector<1x1x128xf32>
    tpu.vector_store %arg24[%c1_215, %c2_216, %c0_217], %310 {strides = array<i32>} : memref<2x9x128xf32, #tpu.memory_space<vmem>>, vector<1x1x128xf32>,
    %311 = vector.extract_strided_slice %258 {offsets = [1, 128], sizes = [1, 128], strides = [1, 1]} : vector<4x256xf32> to vector<1x128xf32>
    %c1_218 = arith.constant 1 : index
    %c3_219 = arith.constant 3 : index
    %c0_220 = arith.constant 0 : index
    %312 = vector.load %arg24[%c1_218, %c3_219, %c0_220] : memref<2x9x128xf32, #tpu.memory_space<vmem>>, vector<1x1x128xf32>
    %313 = vector.shape_cast %312 : vector<1x1x128xf32> to vector<1x128xf32>
    %314 = vector.shape_cast %311 : vector<1x128xf32> to vector<1x1x128xf32>
    tpu.vector_store %arg24[%c1_218, %c3_219, %c0_220], %314 {strides = array<i32>} : memref<2x9x128xf32, #tpu.memory_space<vmem>>, vector<1x1x128xf32>,
    %315 = vector.extract_strided_slice %258 {offsets = [2, 0], sizes = [1, 128], strides = [1, 1]} : vector<4x256xf32> to vector<1x128xf32>
    %c1_221 = arith.constant 1 : index
    %c4_222 = arith.constant 4 : index
    %c0_223 = arith.constant 0 : index
    %316 = vector.load %arg24[%c1_221, %c4_222, %c0_223] : memref<2x9x128xf32, #tpu.memory_space<vmem>>, vector<1x1x128xf32>
    %317 = vector.shape_cast %316 : vector<1x1x128xf32> to vector<1x128xf32>
    %318 = vector.shape_cast %315 : vector<1x128xf32> to vector<1x1x128xf32>
    tpu.vector_store %arg24[%c1_221, %c4_222, %c0_223], %318 {strides = array<i32>} : memref<2x9x128xf32, #tpu.memory_space<vmem>>, vector<1x1x128xf32>,
    %319 = vector.extract_strided_slice %258 {offsets = [2, 128], sizes = [1, 128], strides = [1, 1]} : vector<4x256xf32> to vector<1x128xf32>
    %c1_224 = arith.constant 1 : index
    %c5_225 = arith.constant 5 : index
    %c0_226 = arith.constant 0 : index
    %320 = vector.load %arg24[%c1_224, %c5_225, %c0_226] : memref<2x9x128xf32, #tpu.memory_space<vmem>>, vector<1x1x128xf32>
    %321 = vector.shape_cast %320 : vector<1x1x128xf32> to vector<1x128xf32>
    %322 = vector.shape_cast %319 : vector<1x128xf32> to vector<1x1x128xf32>
    tpu.vector_store %arg24[%c1_224, %c5_225, %c0_226], %322 {strides = array<i32>} : memref<2x9x128xf32, #tpu.memory_space<vmem>>, vector<1x1x128xf32>,
    %323 = vector.extract_strided_slice %258 {offsets = [3, 0], sizes = [1, 128], strides = [1, 1]} : vector<4x256xf32> to vector<1x128xf32>
    %c1_227 = arith.constant 1 : index
    %c6_228 = arith.constant 6 : index
    %c0_229 = arith.constant 0 : index
    %324 = vector.load %arg24[%c1_227, %c6_228, %c0_229] : memref<2x9x128xf32, #tpu.memory_space<vmem>>, vector<1x1x128xf32>
    %325 = vector.shape_cast %324 : vector<1x1x128xf32> to vector<1x128xf32>
    %326 = vector.shape_cast %323 : vector<1x128xf32> to vector<1x1x128xf32>
    tpu.vector_store %arg24[%c1_227, %c6_228, %c0_229], %326 {strides = array<i32>} : memref<2x9x128xf32, #tpu.memory_space<vmem>>, vector<1x1x128xf32>,
    %327 = vector.extract_strided_slice %258 {offsets = [3, 128], sizes = [1, 128], strides = [1, 1]} : vector<4x256xf32> to vector<1x128xf32>
    %c1_230 = arith.constant 1 : index
    %c7_231 = arith.constant 7 : index
    %c0_232 = arith.constant 0 : index
    %328 = vector.load %arg24[%c1_230, %c7_231, %c0_232] : memref<2x9x128xf32, #tpu.memory_space<vmem>>, vector<1x1x128xf32>
    %329 = vector.shape_cast %328 : vector<1x1x128xf32> to vector<1x128xf32>
    %330 = vector.shape_cast %327 : vector<1x128xf32> to vector<1x1x128xf32>
    tpu.vector_store %arg24[%c1_230, %c7_231, %c0_232], %330 {strides = array<i32>} : memref<2x9x128xf32, #tpu.memory_space<vmem>>, vector<1x1x128xf32>,
    %c0_233 = arith.constant 0 : index
    %c0_234 = arith.constant 0 : index
    %c0_235 = arith.constant 0 : index
    %331 = vector.load %arg24[%c0_233, %c0_234, %c0_235] : memref<2x9x128xf32, #tpu.memory_space<vmem>>, vector<1x8x128xf32>
    %332 = vector.shape_cast %331 : vector<1x8x128xf32> to vector<8x128xf32>
    %c0_236 = arith.constant 0 : index
    %c1_237 = arith.constant 1 : index
    %c0_238 = arith.constant 0 : index
    %333 = vector.load %arg24[%c0_236, %c1_237, %c0_238] : memref<2x9x128xf32, #tpu.memory_space<vmem>>, vector<1x8x128xf32>
    %334 = vector.shape_cast %333 : vector<1x8x128xf32> to vector<8x128xf32>
    %c0_239 = arith.constant 0 : index
    %c0_240 = arith.constant 0 : index
    %335 = vector.load %arg18[%c0_239, %c0_240] : memref<128x96xf32, #tpu.memory_space<vmem>>, vector<128x96xf32>
    %cst_241 = arith.constant dense<0.000000e+00> : vector<8x96xf32>
    %336 = tpu.matmul %332, %335, %cst_241 {dimension_numbers = #tpu.dot_dimension_numbers<[1], [0], [0], [1], [0, 0, 1, 1], [], []>} : vector<8x128xf32>, vector<128x96xf32>, vector<8x96xf32> -> vector<8x96xf32>
    %c0_242 = arith.constant 0 : index
    %c0_243 = arith.constant 0 : index
    %337 = vector.load %arg19[%c0_242, %c0_243] : memref<128x96xf32, #tpu.memory_space<vmem>>, vector<128x96xf32>
    %cst_244 = arith.constant dense<0.000000e+00> : vector<8x96xf32>
    %338 = tpu.matmul %334, %337, %cst_244 {dimension_numbers = #tpu.dot_dimension_numbers<[1], [0], [0], [1], [0, 0, 1, 1], [], []>} : vector<8x128xf32>, vector<128x96xf32>, vector<8x96xf32> -> vector<8x96xf32>
    %339 = arith.addf %336, %338 : vector<8x96xf32>
    %c0_245 = arith.constant 0 : index
    %c0_246 = arith.constant 0 : index
    %340 = vector.load %arg20[%c0_245, %c0_246] : memref<1x96xf32, #tpu.memory_space<vmem>>, vector<1x96xf32>
    %341 = vector.broadcast %340 : vector<1x96xf32> to vector<8x96xf32>
    %342 = arith.addf %339, %341 : vector<8x96xf32>
    %c1_247 = arith.constant 1 : index
    %c0_248 = arith.constant 0 : index
    %c0_249 = arith.constant 0 : index
    %343 = vector.load %arg24[%c1_247, %c0_248, %c0_249] : memref<2x9x128xf32, #tpu.memory_space<vmem>>, vector<1x8x128xf32>
    %344 = vector.shape_cast %343 : vector<1x8x128xf32> to vector<8x128xf32>
    %c1_250 = arith.constant 1 : index
    %c1_251 = arith.constant 1 : index
    %c0_252 = arith.constant 0 : index
    %345 = vector.load %arg24[%c1_250, %c1_251, %c0_252] : memref<2x9x128xf32, #tpu.memory_space<vmem>>, vector<1x8x128xf32>
    %346 = vector.shape_cast %345 : vector<1x8x128xf32> to vector<8x128xf32>
    %c0_253 = arith.constant 0 : index
    %c0_254 = arith.constant 0 : index
    %347 = vector.load %arg18[%c0_253, %c0_254] : memref<128x96xf32, #tpu.memory_space<vmem>>, vector<128x96xf32>
    %cst_255 = arith.constant dense<0.000000e+00> : vector<8x96xf32>
    %348 = tpu.matmul %344, %347, %cst_255 {dimension_numbers = #tpu.dot_dimension_numbers<[1], [0], [0], [1], [0, 0, 1, 1], [], []>} : vector<8x128xf32>, vector<128x96xf32>, vector<8x96xf32> -> vector<8x96xf32>
    %c0_256 = arith.constant 0 : index
    %c0_257 = arith.constant 0 : index
    %349 = vector.load %arg19[%c0_256, %c0_257] : memref<128x96xf32, #tpu.memory_space<vmem>>, vector<128x96xf32>
    %cst_258 = arith.constant dense<0.000000e+00> : vector<8x96xf32>
    %350 = tpu.matmul %346, %349, %cst_258 {dimension_numbers = #tpu.dot_dimension_numbers<[1], [0], [0], [1], [0, 0, 1, 1], [], []>} : vector<8x128xf32>, vector<128x96xf32>, vector<8x96xf32> -> vector<8x96xf32>
    %351 = arith.addf %348, %350 : vector<8x96xf32>
    %c0_259 = arith.constant 0 : index
    %c0_260 = arith.constant 0 : index
    %352 = vector.load %arg20[%c0_259, %c0_260] : memref<1x96xf32, #tpu.memory_space<vmem>>, vector<1x96xf32>
    %353 = vector.broadcast %352 : vector<1x96xf32> to vector<8x96xf32>
    %354 = arith.addf %351, %353 : vector<8x96xf32>
    %cst_261 = arith.constant 0.000000e+00 : f32
    %355 = vector.broadcast %cst_261 : f32 to vector<8x96xf32>
    %356 = arith.cmpf oge, %342, %355 : vector<8x96xf32>
    %cst_262 = arith.constant 0.00999999977 : f32
    %357 = vector.broadcast %cst_262 : f32 to vector<8x96xf32>
    %358 = arith.mulf %357, %342 : vector<8x96xf32>
    %359 = arith.select %356, %342, %358 : vector<8x96xi1>, vector<8x96xf32>
    %360 = arith.mulf %359, %359 : vector<8x96xf32>
    %c0_263 = arith.constant 0 : index
    %c0_264 = arith.constant 0 : index
    %361 = vector.load %arg21[%c0_263, %c0_264] : memref<16x96xf32, #tpu.memory_space<vmem>>, vector<8x96xf32>
    tpu.vector_store %arg21[%c0_263, %c0_264], %360 {strides = array<i32>} : memref<16x96xf32, #tpu.memory_space<vmem>>, vector<8x96xf32>,
    %cst_265 = arith.constant 0.000000e+00 : f32
    %362 = vector.broadcast %cst_265 : f32 to vector<8x96xf32>
    %363 = arith.cmpf oge, %354, %362 : vector<8x96xf32>
    %cst_266 = arith.constant 0.00999999977 : f32
    %364 = vector.broadcast %cst_266 : f32 to vector<8x96xf32>
    %365 = arith.mulf %364, %354 : vector<8x96xf32>
    %366 = arith.select %363, %354, %365 : vector<8x96xi1>, vector<8x96xf32>
    %367 = arith.mulf %366, %366 : vector<8x96xf32>
    %c8_267 = arith.constant 8 : index
    %c0_268 = arith.constant 0 : index
    %368 = vector.load %arg21[%c8_267, %c0_268] : memref<16x96xf32, #tpu.memory_space<vmem>>, vector<8x96xf32>
    tpu.vector_store %arg21[%c8_267, %c0_268], %367 {strides = array<i32>} : memref<16x96xf32, #tpu.memory_space<vmem>>, vector<8x96xf32>,
    return
  }
}

</mosaic_0001>

<llo_original>
// kernel: decoder_v2_forward.1
$region0: #{decoder_v2_forward.1}
  #allocation0 [shape = 'u32[]', space=smem, size = 0x4, offset = 0x4, fixed_abs, tag = 'smem constant byte address 0x4 - core index']
  #allocation1 [shape = 'u32[72,128]{1,0:T(1,128)}', space=vmem, size = 0x9000, scoped, tag = 'internal scratch']
  #allocation2 [shape = 'f32[2,3,128]{2,1,0:T(4,128)}', space=vmem, size = 0x1000, scoped, tag = 'scratch operand']
  #allocation3 [shape = 'f32[2,5,128]{2,1,0:T(8,128)}', space=vmem, size = 0x2000, scoped, tag = 'scratch operand']
  #allocation4 [shape = 'f32[2,9,128]{2,1,0:T(8,128)}', space=vmem, size = 0x4000, scoped, tag = 'scratch operand']
  %s0 = inlined_call_operand.vmem [shape: f32[2,4], index: 0, kind: input, shape index: {}]
  %s1 = inlined_call_operand.vmem [shape: f32[4,256], index: 1, kind: input, shape index: {}]
  %s2 = inlined_call_operand.vmem [shape: f32[1,256], index: 2, kind: input, shape index: {}]
  %s3 = inlined_call_operand.vmem [shape: f32[1,256], index: 3, kind: input, shape index: {}]
  %s4 = inlined_call_operand.vmem [shape: f32[1,256], index: 4, kind: input, shape index: {}]
  %s5 = inlined_call_operand.hbm [shape: f32[256,256], index: 5, kind: input, shape index: {}]
  %s6 = inlined_call_operand.vmem [shape: f32[128,256], index: 6, kind: input, shape index: {}]
  %s7 = inlined_call_operand.hbm [shape: f32[128,256], index: 7, kind: input, shape index: {}]
  %s8 = inlined_call_operand.vmem [shape: f32[1,256], index: 8, kind: input, shape index: {}]
  %s9 = inlined_call_operand.vmem [shape: f32[1,256], index: 9, kind: input, shape index: {}]
  %s10 = inlined_call_operand.vmem [shape: f32[1,256], index: 10, kind: input, shape index: {}]
  %s11 = inlined_call_operand.hbm [shape: f32[256,256], index: 11, kind: input, shape index: {}]
  %s12 = inlined_call_operand.hbm [shape: f32[128,256], index: 12, kind: input, shape index: {}]
  %s13 = inlined_call_operand.hbm [shape: f32[128,256], index: 13, kind: input, shape index: {}]
  %s14 = inlined_call_operand.vmem [shape: f32[1,256], index: 14, kind: input, shape index: {}]
  %s15 = inlined_call_operand.vmem [shape: f32[1,256], index: 15, kind: input, shape index: {}]
  %s16 = inlined_call_operand.vmem [shape: f32[1,256], index: 16, kind: input, shape index: {}]
  %s17 = inlined_call_operand.hbm [shape: f32[256,256], index: 17, kind: input, shape index: {}]
  %s18 = inlined_call_operand.vmem [shape: f32[128,96], index: 18, kind: input, shape index: {}]
  %s19 = inlined_call_operand.vmem [shape: f32[128,96], index: 19, kind: input, shape index: {}]
  %s20 = inlined_call_operand.vmem [shape: f32[1,96], index: 20, kind: input, shape index: {}]
  %s21 = inlined_call_operand.vmem [shape: f32[16,96], index: 21, kind: output, shape index: {}]
  %s22 = sld [smem:[#allocation0]]
  $region118: #{decoder_v2_forward.1} parent=0
    _
  %s24 = ssub.s32 1, %s22
  %s25 = scalar_select 0, %s24, %s22
  $region1: #{decoder_v2_forward.1} parent=0
    #allocation5 [shape = 'u8[262144]{0}', space=vmem, size = 0x40000, scoped, tag = 'input window, operand 5, single buffered']
    #allocation6 [shape = 's32[1]{0}', space=sflag, size = 0x4, scoped, tag = 'scoped memory for decoder_v2_forward.1']
    #allocation7 [shape = 'u8[131072]{0}', space=vmem, size = 0x20000, scoped, tag = 'input window, operand 7, single buffered']
    #allocation8 [shape = 's32[1]{0}', space=sflag, size = 0x4, scoped, tag = 'scoped memory for decoder_v2_forward.1']
    #allocation9 [shape = 'u8[262144]{0}', space=vmem, size = 0x40000, scoped, tag = 'input window, operand 11, single buffered']
    #allocation10 [shape = 'u8[131072]{0}', space=vmem, size = 0x20000, scoped, tag = 'input window, operand 12, single buffered']
    #allocation11 [shape = 's32[1]{0}', space=sflag, size = 0x4, scoped, tag = 'scoped memory for decoder_v2_forward.1']
    #allocation12 [shape = 'u8[131072]{0}', space=vmem, size = 0x20000, scoped, tag = 'input window, operand 13, single buffered']
    #allocation13 [shape = 'u8[262144]{0}', space=vmem, size = 0x40000, scoped, tag = 'input window, operand 17, single buffered']
    #allocation14 [shape = 's32[1]{0}', space=sflag, size = 0x4, scoped, tag = 'scoped memory for decoder_v2_forward.1']
    %26 = vsyncpa [#allocation6], 0
    %27 = vsyncpa [#allocation8], 0
    %28 = vsyncpa [#allocation11], 0
    %29 = vsyncpa [#allocation14], 0
    // Predicated region
    $region2: #{decoder_v2_forward.1} parent=1 // pred_check
      _
    $region3: #{decoder_v2_forward.1} parent=1 // pred_check_branch
      %31 = sbr.rel (0) target = $region5
    $region4: #{decoder_v2_forward.1} parent=1 // pred_region
      _
    $region5: #{decoder_v2_forward.1} parent=1 // pred_fallthru
      _
    // Predicated region
    $region6: #{decoder_v2_forward.1} parent=1 // pred_check
      _
    $region7: #{decoder_v2_forward.1} parent=1 // pred_check_branch
      %33 = sbr.rel (0) target = $region9
    $region8: #{decoder_v2_forward.1} parent=1 // pred_region
      _
    $region9: #{decoder_v2_forward.1} parent=1 // pred_fallthru
      _
    // Predicated region
    $region10: #{decoder_v2_forward.1} parent=1 // pred_check
      _
    $region11: #{decoder_v2_forward.1} parent=1 // pred_check_branch
      %35 = sbr.rel (0) target = $region13
    $region12: #{decoder_v2_forward.1} parent=1 // pred_region
      _
    $region13: #{decoder_v2_forward.1} parent=1 // pred_fallthru
      _
    // Predicated region
    $region14: #{decoder_v2_forward.1} parent=1 // pred_check
      _
    $region15: #{decoder_v2_forward.1} parent=1 // pred_check_branch
      %37 = sbr.rel (0) target = $region17
    $region16: #{decoder_v2_forward.1} parent=1 // pred_region
      _
    $region17: #{decoder_v2_forward.1} parent=1 // pred_fallthru
      _
    // Predicated region
    $region18: #{decoder_v2_forward.1} parent=1 // pred_check
      _
    $region19: #{decoder_v2_forward.1} parent=1 // pred_check_branch
      %39 = sbr.rel (0) target = $region21
    $region20: #{decoder_v2_forward.1} parent=1 // pred_region
      _
    $region21: #{decoder_v2_forward.1} parent=1 // pred_fallthru
      _
    // Predicated region
    $region22: #{decoder_v2_forward.1} parent=1 // pred_check
      _
    $region23: #{decoder_v2_forward.1} parent=1 // pred_check_branch
      %41 = sbr.rel (0) target = $region25
    $region24: #{decoder_v2_forward.1} parent=1 // pred_region
      %43 = vsyncadd [#allocation6], 0
      %s44 = sshll.u32 %s5, 4
      %s45 = int_to_ptr.hbm [resolvable:$true] %s44
      %s46 = sshll.u32 [#allocation5], 4
      %s47 = int_to_ptr.vmem [resolvable:$true] %s46
      %52 = dma.hbm_to_vmem [thread:$0]  %s45, 8192, %s47, [#allocation6], 256, 256, 16
    $region25: #{decoder_v2_forward.1} parent=1 // pred_fallthru
      _
    // Predicated region
    $region26: #{decoder_v2_forward.1} parent=1 // pred_check
      _
    $region27: #{decoder_v2_forward.1} parent=1 // pred_check_branch
      %54 = sbr.rel (0) target = $region29
    $region28: #{decoder_v2_forward.1} parent=1 // pred_region
      _
    $region29: #{decoder_v2_forward.1} parent=1 // pred_fallthru
      _
    // Predicated region
    $region30: #{decoder_v2_forward.1} parent=1 // pred_check
      _
    $region31: #{decoder_v2_forward.1} parent=1 // pred_check_branch
      %56 = sbr.rel (0) target = $region33
    $region32: #{decoder_v2_forward.1} parent=1 // pred_region
      %58 = vsyncadd [#allocation8], 0
      %s59 = sshll.u32 %s7, 4
      %s60 = int_to_ptr.hbm [resolvable:$true] %s59
      %s61 = sshll.u32 [#allocation7], 4
      %s62 = int_to_ptr.vmem [resolvable:$true] %s61
      %67 = dma.hbm_to_vmem [thread:$0]  %s60, 4096, %s62, [#allocation8], 256, 256, 16
    $region33: #{decoder_v2_forward.1} parent=1 // pred_fallthru
      _
    // Predicated region
    $region34: #{decoder_v2_forward.1} parent=1 // pred_check
      _
    $region35: #{decoder_v2_forward.1} parent=1 // pred_check_branch
      %69 = sbr.rel (0) target = $region37
    $region36: #{decoder_v2_forward.1} parent=1 // pred_region
      _
    $region37: #{decoder_v2_forward.1} parent=1 // pred_fallthru
      _
    // Predicated region
    $region38: #{decoder_v2_forward.1} parent=1 // pred_check
      _
    $region39: #{decoder_v2_forward.1} parent=1 // pred_check_branch
      %71 = sbr.rel (0) target = $region41
    $region40: #{decoder_v2_forward.1} parent=1 // pred_region
      _
    $region41: #{decoder_v2_forward.1} parent=1 // pred_fallthru
      _
    // Predicated region
    $region42: #{decoder_v2_forward.1} parent=1 // pred_check
      _
    $region43: #{decoder_v2_forward.1} parent=1 // pred_check_branch
      %73 = sbr.rel (0) target = $region45
    $region44: #{decoder_v2_forward.1} parent=1 // pred_region
      _
    $region45: #{decoder_v2_forward.1} parent=1 // pred_fallthru
      _
    // Predicated region
    $region46: #{decoder_v2_forward.1} parent=1 // pred_check
      _
    $region47: #{decoder_v2_forward.1} parent=1 // pred_check_branch
      %75 = sbr.rel (0) target = $region49
    $region48: #{decoder_v2_forward.1} parent=1 // pred_region
      %77 = vsyncadd [#allocation8], 0
      %s78 = sshll.u32 %s11, 4
      %s79 = int_to_ptr.hbm [resolvable:$true] %s78
      %s80 = sshll.u32 [#allocation9], 4
      %s81 = int_to_ptr.vmem [resolvable:$true] %s80
      %86 = dma.hbm_to_vmem [thread:$0]  %s79, 8192, %s81, [#allocation8], 256, 256, 16
    $region49: #{decoder_v2_forward.1} parent=1 // pred_fallthru
      _
    // Predicated region
    $region50: #{decoder_v2_forward.1} parent=1 // pred_check
      _
    $region51: #{decoder_v2_forward.1} parent=1 // pred_check_branch
      %88 = sbr.rel (0) target = $region53
    $region52: #{decoder_v2_forward.1} parent=1 // pred_region
      %90 = vsyncadd [#allocation11], 0
      %s91 = sshll.u32 %s12, 4
      %s92 = int_to_ptr.hbm [resolvable:$true] %s91
      %s93 = sshll.u32 [#allocation10], 4
      %s94 = int_to_ptr.vmem [resolvable:$true] %s93
      %99 = dma.hbm_to_vmem [thread:$0]  %s92, 4096, %s94, [#allocation11], 256, 256, 16
    $region53: #{decoder_v2_forward.1} parent=1 // pred_fallthru
      _
    // Predicated region
    $region54: #{decoder_v2_forward.1} parent=1 // pred_check
      _
    $region55: #{decoder_v2_forward.1} parent=1 // pred_check_branch
      %101 = sbr.rel (0) target = $region57
    $region56: #{decoder_v2_forward.1} parent=1 // pred_region
      %103 = vsyncadd [#allocation11], 0
      %s104 = sshll.u32 %s13, 4
      %s105 = int_to_ptr.hbm [resolvable:$true] %s104
      %s106 = sshll.u32 [#allocation12], 4
      %s107 = int_to_ptr.vmem [resolvable:$true] %s106
      %112 = dma.hbm_to_vmem [thread:$0]  %s105, 4096, %s107, [#allocation11], 256, 256, 16
    $region57: #{decoder_v2_forward.1} parent=1 // pred_fallthru
      _
    // Predicated region
    $region58: #{decoder_v2_forward.1} parent=1 // pred_check
      _
    $region59: #{decoder_v2_forward.1} parent=1 // pred_check_branch
      %114 = sbr.rel (0) target = $region61
    $region60: #{decoder_v2_forward.1} parent=1 // pred_region
      _
    $region61: #{decoder_v2_forward.1} parent=1 // pred_fallthru
      _
    // Predicated region
    $region62: #{decoder_v2_forward.1} parent=1 // pred_check
      _
    $region63: #{decoder_v2_forward.1} parent=1 // pred_check_branch
      %116 = sbr.rel (0) target = $region65
    $region64: #{decoder_v2_forward.1} parent=1 // pred_region
      _
    $region65: #{decoder_v2_forward.1} parent=1 // pred_fallthru
      _
    // Predicated region
    $region66: #{decoder_v2_forward.1} parent=1 // pred_check
      _
    $region67: #{decoder_v2_forward.1} parent=1 // pred_check_branch
      %118 = sbr.rel (0) target = $region69
    $region68: #{decoder_v2_forward.1} parent=1 // pred_region
      _
    $region69: #{decoder_v2_forward.1} parent=1 // pred_fallthru
      _
    // Predicated region
    $region70: #{decoder_v2_forward.1} parent=1 // pred_check
      _
    $region71: #{decoder_v2_forward.1} parent=1 // pred_check_branch
      %120 = sbr.rel (0) target = $region73
    $region72: #{decoder_v2_forward.1} parent=1 // pred_region
      %122 = vsyncadd [#allocation14], 0
      %s123 = sshll.u32 %s17, 4
      %s124 = int_to_ptr.hbm [resolvable:$true] %s123
      %s125 = sshll.u32 [#allocation13], 4
      %s126 = int_to_ptr.vmem [resolvable:$true] %s125
      %131 = dma.hbm_to_vmem [thread:$0]  %s124, 8192, %s126, [#allocation14], 256, 256, 16
    $region73: #{decoder_v2_forward.1} parent=1 // pred_fallthru
      _
    // Predicated region
    $region74: #{decoder_v2_forward.1} parent=1 // pred_check
      _
    $region75: #{decoder_v2_forward.1} parent=1 // pred_check_branch
      %133 = sbr.rel (0) target = $region77
    $region76: #{decoder_v2_forward.1} parent=1 // pred_region
      _
    $region77: #{decoder_v2_forward.1} parent=1 // pred_fallthru
      _
    // Predicated region
    $region78: #{decoder_v2_forward.1} parent=1 // pred_check
      _
    $region79: #{decoder_v2_forward.1} parent=1 // pred_check_branch
      %135 = sbr.rel (0) target = $region81
    $region80: #{decoder_v2_forward.1} parent=1 // pred_region
      _
    $region81: #{decoder_v2_forward.1} parent=1 // pred_fallthru
      _
    // Predicated region
    $region82: #{decoder_v2_forward.1} parent=1 // pred_check
      _
    $region83: #{decoder_v2_forward.1} parent=1 // pred_check_branch
      %137 = sbr.rel (0) target = $region85
    $region84: #{decoder_v2_forward.1} parent=1 // pred_region
      _
    $region85: #{decoder_v2_forward.1} parent=1 // pred_fallthru
      _
    // Predicated region
    $region86: #{decoder_v2_forward.1} parent=1 // pred_check
      _
    $region87: #{decoder_v2_forward.1} parent=1 // pred_check_branch
      %139 = sbr.rel (0) target = $region89
    $region88: #{decoder_v2_forward.1} parent=1 // pred_region
      %141 = dma.done [#allocation6], 8192
    $region89: #{decoder_v2_forward.1} parent=1 // pred_fallthru
      _
    // Predicated region
    $region90: #{decoder_v2_forward.1} parent=1 // pred_check
      _
    $region91: #{decoder_v2_forward.1} parent=1 // pred_check_branch
      %143 = sbr.rel (0) target = $region93
    $region92: #{decoder_v2_forward.1} parent=1 // pred_region
      %145 = dma.done [#allocation8], 4096
    $region93: #{decoder_v2_forward.1} parent=1 // pred_fallthru
      _
    // Predicated region
    $region94: #{decoder_v2_forward.1} parent=1 // pred_check
      _
    $region95: #{decoder_v2_forward.1} parent=1 // pred_check_branch
      %147 = sbr.rel (0) target = $region97
    $region96: #{decoder_v2_forward.1} parent=1 // pred_region
      %149 = dma.done [#allocation8], 8192
    $region97: #{decoder_v2_forward.1} parent=1 // pred_fallthru
      _
    // Predicated region
    $region98: #{decoder_v2_forward.1} parent=1 // pred_check
      _
    $region99: #{decoder_v2_forward.1} parent=1 // pred_check_branch
      %151 = sbr.rel (0) target = $region101
    $region100: #{decoder_v2_forward.1} parent=1 // pred_region
      %153 = dma.done [#allocation11], 4096
    $region101: #{decoder_v2_forward.1} parent=1 // pred_fallthru
      _
    // Predicated region
    $region102: #{decoder_v2_forward.1} parent=1 // pred_check
      _
    $region103: #{decoder_v2_forward.1} parent=1 // pred_check_branch
      %155 = sbr.rel (0) target = $region105
    $region104: #{decoder_v2_forward.1} parent=1 // pred_region
      %157 = dma.done [#allocation11], 4096
    $region105: #{decoder_v2_forward.1} parent=1 // pred_fallthru
      _
    // Predicated region
    $region106: #{decoder_v2_forward.1} parent=1 // pred_check
      _
    $region107: #{decoder_v2_forward.1} parent=1 // pred_check_branch
      %159 = sbr.rel (0) target = $region109
    $region108: #{decoder_v2_forward.1} parent=1 // pred_region
      %161 = dma.done [#allocation14], 8192
    $region109: #{decoder_v2_forward.1} parent=1 // pred_fallthru
      _
    %v162 = vld [vmem:[%s0] sm:$0x3]
    %v163 = vld [vmem:[%s1] sm:$0xff]
    %v164 = vld [vmem:[%s2] sm:$0x3]
    %166 = vst [vmem:[#allocation1] ss:$2 sm:$0xff] %v163
    %v167 = vld.sshfl [vmem:[#allocation1] sm:$0xff pattern:$0x75316420]
    %v168 = vld.sshfl [vmem:[#allocation1 + $0x8] sm:$0xff pattern:$0x75316420]
    %v170 = vperm.slane %v164, 0
    %v171 = vperm.slane %v164, 1
    %vm174 = vcmask 31744
    %v176 = vsel %vm174, %v162, 0
    %vm178 = vcmask 1043456
    %v179 = vsel %vm178, %v167, 0
    %v181 = vsel %vm178, %v168, 0
    %183 = vmatpush.msra.mxu0 0.0
    %184 = vmatpush.msra.mxu0 0.0
    %185 = vmatpush.msra.mxu0 0.0
    %186 = vmatpush.msra.mxu0 0.0
    %187 = vmatpush.msra.mxu0 0.0
    %188 = vmatpush.msra.mxu0 0.0
    %189 = vmatpush.msra.mxu0 0.0
    %190 = vmatpush.msra.mxu0 0.0
    %191 = vmatpush.msra.mxu0 0.0
    %192 = vmatpush.msra.mxu0 0.0
    %193 = vmatpush.msra.mxu0 0.0
    %194 = vmatpush.msra.mxu0 0.0
    %195 = vmatpush.msra.mxu0 0.0
    %196 = vmatpush.msra.mxu0 0.0
    %197 = vmatpush.msra.mxu0 0.0
    %198 = vmatpush.msra.mxu0 %v179
    %199 = vmatmul.f32.gmra.mxu0 %v176
    %v200 = vpop.f32.mrf.mxu0
    %v201 = vadd.f32 %v170, %v200
    %202 = vdwg.mxu0
    %203 = vmatpush.msra.mxu0 0.0
    %204 = vmatpush.msra.mxu0 0.0
    %205 = vmatpush.msra.mxu0 0.0
    %206 = vmatpush.msra.mxu0 0.0
    %207 = vmatpush.msra.mxu0 0.0
    %208 = vmatpush.msra.mxu0 0.0
    %209 = vmatpush.msra.mxu0 0.0
    %210 = vmatpush.msra.mxu0 0.0
    %211 = vmatpush.msra.mxu0 0.0
    %212 = vmatpush.msra.mxu0 0.0
    %213 = vmatpush.msra.mxu0 0.0
    %214 = vmatpush.msra.mxu0 0.0
    %215 = vmatpush.msra.mxu0 0.0
    %216 = vmatpush.msra.mxu0 0.0
    %217 = vmatpush.msra.mxu0 0.0
    %218 = vmatpush.msra.mxu0 %v181
    %219 = vmatmul.f32.gmra.mxu0 %v176
    %v220 = vpop.f32.mrf.mxu0
    %v221 = vadd.f32 %v171, %v220
    %222 = vdwg.mxu0
    %v223 = vrot.slane %v162, 1
    %224 = vst [vmem:[#allocation1] ss:$2 sm:$0xff] %v163
    %v225 = vld.sshfl [vmem:[#allocation1] sm:$0xff pattern:$0x75316420]
    %v226 = vld.sshfl [vmem:[#allocation1 + $0x8] sm:$0xff pattern:$0x75316420]
    %v227 = vsel %vm174, %v223, 0
    %v229 = vsel %vm178, %v225, 0
    %v231 = vsel %vm178, %v226, 0
    %233 = vmatpush.msra.mxu0 0.0
    %234 = vmatpush.msra.mxu0 0.0
    %235 = vmatpush.msra.mxu0 0.0
    %236 = vmatpush.msra.mxu0 0.0
    %237 = vmatpush.msra.mxu0 0.0
    %238 = vmatpush.msra.mxu0 0.0
    %239 = vmatpush.msra.mxu0 0.0
    %240 = vmatpush.msra.mxu0 0.0
    %241 = vmatpush.msra.mxu0 0.0
    %242 = vmatpush.msra.mxu0 0.0
    %243 = vmatpush.msra.mxu0 0.0
    %244 = vmatpush.msra.mxu0 0.0
    %245 = vmatpush.msra.mxu0 0.0
    %246 = vmatpush.msra.mxu0 0.0
    %247 = vmatpush.msra.mxu0 0.0
    %248 = vmatpush.msra.mxu0 %v229
    %249 = vmatmul.f32.gmra.mxu0 %v227
    %v250 = vpop.f32.mrf.mxu0
    %v251 = vadd.f32 %v170, %v250
    %252 = vdwg.mxu0
    %253 = vmatpush.msra.mxu0 0.0
    %254 = vmatpush.msra.mxu0 0.0
    %255 = vmatpush.msra.mxu0 0.0
    %256 = vmatpush.msra.mxu0 0.0
    %257 = vmatpush.msra.mxu0 0.0
    %258 = vmatpush.msra.mxu0 0.0
    %259 = vmatpush.msra.mxu0 0.0
    %260 = vmatpush.msra.mxu0 0.0
    %261 = vmatpush.msra.mxu0 0.0
    %262 = vmatpush.msra.mxu0 0.0
    %263 = vmatpush.msra.mxu0 0.0
    %264 = vmatpush.msra.mxu0 0.0
    %265 = vmatpush.msra.mxu0 0.0
    %266 = vmatpush.msra.mxu0 0.0
    %267 = vmatpush.msra.mxu0 0.0
    %268 = vmatpush.msra.mxu0 %v231
    %269 = vmatmul.f32.gmra.mxu0 %v227
    %v270 = vpop.f32.mrf.mxu0
    %v271 = vadd.f32 %v171, %v270
    %272 = vdwg.mxu0
    %v273 = vadd.f32 %v201, %v251
    %v274 = vadd.f32 %v221, %v271
    %v275 = vld [vmem:[#allocation5] sm:$0xff]
    %v276 = vld [vmem:[#allocation5 + $0x8] sm:$0xff]
    %v277 = vld [vmem:[#allocation5 + $0x10] sm:$0xff]
    %v278 = vld [vmem:[#allocation5 + $0x18] sm:$0xff]
    %v279 = vld [vmem:[#allocation5 + $0x20] sm:$0xff]
    %v280 = vld [vmem:[#allocation5 + $0x28] sm:$0xff]
    %v281 = vld [vmem:[#allocation5 + $0x30] sm:$0xff]
    %v282 = vld [vmem:[#allocation5 + $0x38] sm:$0xff]
    %v283 = vld [vmem:[#allocation5 + $0x40] sm:$0xff]
    %v284 = vld [vmem:[#allocation5 + $0x48] sm:$0xff]
    %v285 = vld [vmem:[#allocation5 + $0x50] sm:$0xff]
    %v286 = vld [vmem:[#allocation5 + $0x58] sm:$0xff]
    %v287 = vld [vmem:[#allocation5 + $0x60] sm:$0xff]
    %v288 = vld [vmem:[#allocation5 + $0x68] sm:$0xff]
    %v289 = vld [vmem:[#allocation5 + $0x70] sm:$0xff]
    %v290 = vld [vmem:[#allocation5 + $0x78] sm:$0xff]
    %v291 = vld [vmem:[#allocation5 + $0x80] sm:$0xff]
    %v292 = vld [vmem:[#allocation5 + $0x88] sm:$0xff]
    %v293 = vld [vmem:[#allocation5 + $0x90] sm:$0xff]
    %v294 = vld [vmem:[#allocation5 + $0x98] sm:$0xff]
    %v295 = vld [vmem:[#allocation5 + $0xa0] sm:$0xff]
    %v296 = vld [vmem:[#allocation5 + $0xa8] sm:$0xff]
    %v297 = vld [vmem:[#allocation5 + $0xb0] sm:$0xff]
    %v298 = vld [vmem:[#allocation5 + $0xb8] sm:$0xff]
    %v299 = vld [vmem:[#allocation5 + $0xc0] sm:$0xff]
    %v300 = vld [vmem:[#allocation5 + $0xc8] sm:$0xff]
    %v301 = vld [vmem:[#allocation5 + $0xd0] sm:$0xff]
    %v302 = vld [vmem:[#allocation5 + $0xd8] sm:$0xff]
    %v303 = vld [vmem:[#allocation5 + $0xe0] sm:$0xff]
    %v304 = vld [vmem:[#allocation5 + $0xe8] sm:$0xff]
    %v305 = vld [vmem:[#allocation5 + $0xf0] sm:$0xff]
    %v306 = vld [vmem:[#allocation5 + $0xf8] sm:$0xff]
    %v307 = vld [vmem:[#allocation5 + $0x100] sm:$0xff]
    %v308 = vld [vmem:[#allocation5 + $0x108] sm:$0xff]
    %v309 = vld [vmem:[#allocation5 + $0x110] sm:$0xff]
    %v310 = vld [vmem:[#allocation5 + $0x118] sm:$0xff]
    %v311 = vld [vmem:[#allocation5 + $0x120] sm:$0xff]
    %v312 = vld [vmem:[#allocation5 + $0x128] sm:$0xff]
    %v313 = vld [vmem:[#allocation5 + $0x130] sm:$0xff]
    %v314 = vld [vmem:[#allocation5 + $0x138] sm:$0xff]
    %v315 = vld [vmem:[#allocation5 + $0x140] sm:$0xff]
    %v316 = vld [vmem:[#allocation5 + $0x148] sm:$0xff]
    %v317 = vld [vmem:[#allocation5 + $0x150] sm:$0xff]
    %v318 = vld [vmem:[#allocation5 + $0x158] sm:$0xff]
    %v319 = vld [vmem:[#allocation5 + $0x160] sm:$0xff]
    %v320 = vld [vmem:[#allocation5 + $0x168] sm:$0xff]
    %v321 = vld [vmem:[#allocation5 + $0x170] sm:$0xff]
    %v322 = vld [vmem:[#allocation5 + $0x178] sm:$0xff]
    %v323 = vld [vmem:[#allocation5 + $0x180] sm:$0xff]
    %v324 = vld [vmem:[#allocation5 + $0x188] sm:$0xff]
    %v325 = vld [vmem:[#allocation5 + $0x190] sm:$0xff]
    %v326 = vld [vmem:[#allocation5 + $0x198] sm:$0xff]
    %v327 = vld [vmem:[#allocation5 + $0x1a0] sm:$0xff]
    %v328 = vld [vmem:[#allocation5 + $0x1a8] sm:$0xff]
    %v329 = vld [vmem:[#allocation5 + $0x1b0] sm:$0xff]
    %v330 = vld [vmem:[#allocation5 + $0x1b8] sm:$0xff]
    %v331 = vld [vmem:[#allocation5 + $0x1c0] sm:$0xff]
    %v332 = vld [vmem:[#allocation5 + $0x1c8] sm:$0xff]
    %v333 = vld [vmem:[#allocation5 + $0x1d0] sm:$0xff]
    %v334 = vld [vmem:[#allocation5 + $0x1d8] sm:$0xff]
    %v335 = vld [vmem:[#allocation5 + $0x1e0] sm:$0xff]
    %v336 = vld [vmem:[#allocation5 + $0x1e8] sm:$0xff]
    %v337 = vld [vmem:[#allocation5 + $0x1f0] sm:$0xff]
    %v338 = vld [vmem:[#allocation5 + $0x1f8] sm:$0xff]
    %339 = vmatpush.msra.mxu0 %v305
    %340 = vmatpush.msra.mxu0 %v303
    %341 = vmatpush.msra.mxu0 %v301
    %342 = vmatpush.msra.mxu0 %v299
    %343 = vmatpush.msra.mxu0 %v297
    %344 = vmatpush.msra.mxu0 %v295
    %345 = vmatpush.msra.mxu0 %v293
    %346 = vmatpush.msra.mxu0 %v291
    %347 = vmatpush.msra.mxu0 %v289
    %348 = vmatpush.msra.mxu0 %v287
    %349 = vmatpush.msra.mxu0 %v285
    %350 = vmatpush.msra.mxu0 %v283
    %351 = vmatpush.msra.mxu0 %v281
    %352 = vmatpush.msra.mxu0 %v279
    %353 = vmatpush.msra.mxu0 %v277
    %354 = vmatpush.msra.mxu0 %v275
    %355 = vmatmul.f32.gmra.mxu0 %v273
    %v356 = vpop.f32.mrf.mxu0
    %v357 = vadd.f32 0.0, %v356
    %358 = vdwg.mxu0
    %359 = vmatpush.msra.mxu0 %v337
    %360 = vmatpush.msra.mxu0 %v335
    %361 = vmatpush.msra.mxu0 %v333
    %362 = vmatpush.msra.mxu0 %v331
    %363 = vmatpush.msra.mxu0 %v329
    %364 = vmatpush.msra.mxu0 %v327
    %365 = vmatpush.msra.mxu0 %v325
    %366 = vmatpush.msra.mxu0 %v323
    %367 = vmatpush.msra.mxu0 %v321
    %368 = vmatpush.msra.mxu0 %v319
    %369 = vmatpush.msra.mxu0 %v317
    %370 = vmatpush.msra.mxu0 %v315
    %371 = vmatpush.msra.mxu0 %v313
    %372 = vmatpush.msra.mxu0 %v311
    %373 = vmatpush.msra.mxu0 %v309
    %374 = vmatpush.msra.mxu0 %v307
    %375 = vmatmul.f32.gmra.mxu0 %v274
    %v376 = vpop.f32.mrf.mxu0
    %v377 = vadd.f32 %v357, %v376
    %378 = vdwg.mxu0
    %379 = vmatpush.msra.mxu0 %v306
    %380 = vmatpush.msra.mxu0 %v304
    %381 = vmatpush.msra.mxu0 %v302
    %382 = vmatpush.msra.mxu0 %v300
    %383 = vmatpush.msra.mxu0 %v298
    %384 = vmatpush.msra.mxu0 %v296
    %385 = vmatpush.msra.mxu0 %v294
    %386 = vmatpush.msra.mxu0 %v292
    %387 = vmatpush.msra.mxu0 %v290
    %388 = vmatpush.msra.mxu0 %v288
    %389 = vmatpush.msra.mxu0 %v286
    %390 = vmatpush.msra.mxu0 %v284
    %391 = vmatpush.msra.mxu0 %v282
    %392 = vmatpush.msra.mxu0 %v280
    %393 = vmatpush.msra.mxu0 %v278
    %394 = vmatpush.msra.mxu0 %v276
    %395 = vmatmul.f32.gmra.mxu0 %v273
    %v396 = vpop.f32.mrf.mxu0
    %v397 = vadd.f32 0.0, %v396
    %398 = vdwg.mxu0
    %399 = vmatpush.msra.mxu0 %v338
    %400 = vmatpush.msra.mxu0 %v336
    %401 = vmatpush.msra.mxu0 %v334
    %402 = vmatpush.msra.mxu0 %v332
    %403 = vmatpush.msra.mxu0 %v330
    %404 = vmatpush.msra.mxu0 %v328
    %405 = vmatpush.msra.mxu0 %v326
    %406 = vmatpush.msra.mxu0 %v324
    %407 = vmatpush.msra.mxu0 %v322
    %408 = vmatpush.msra.mxu0 %v320
    %409 = vmatpush.msra.mxu0 %v318
    %410 = vmatpush.msra.mxu0 %v316
    %411 = vmatpush.msra.mxu0 %v314
    %412 = vmatpush.msra.mxu0 %v312
    %413 = vmatpush.msra.mxu0 %v310
    %414 = vmatpush.msra.mxu0 %v308
    %415 = vmatmul.f32.gmra.mxu0 %v274
    %v416 = vpop.f32.mrf.mxu0
    %v417 = vadd.f32 %v397, %v416
    %418 = vdwg.mxu0
    %v419 = vmul.f32 %v377, 0.125
    %v420 = vmul.f32 %v417, 0.125
    %v421 = vsub.f32 %v201, %v419
    %v422 = vsub.f32 %v221, %v420
    %v423 = vsub.f32 %v251, %v419
    %v424 = vsub.f32 %v271, %v420
    %v425 = vmul.f32 %v421, %v421
    %v426 = vmul.f32 %v422, %v422
    %v427 = vmul.f32 %v423, %v423
    %v428 = vmul.f32 %v424, %v424
    %v429 = vadd.f32 %v425, %v427
    %v430 = vadd.f32 %v426, %v428
    %431 = vmatpush.msra.mxu0 %v305
    %432 = vmatpush.msra.mxu0 %v303
    %433 = vmatpush.msra.mxu0 %v301
    %434 = vmatpush.msra.mxu0 %v299
    %435 = vmatpush.msra.mxu0 %v297
    %436 = vmatpush.msra.mxu0 %v295
    %437 = vmatpush.msra.mxu0 %v293
    %438 = vmatpush.msra.mxu0 %v291
    %439 = vmatpush.msra.mxu0 %v289
    %440 = vmatpush.msra.mxu0 %v287
    %441 = vmatpush.msra.mxu0 %v285
    %442 = vmatpush.msra.mxu0 %v283
    %443 = vmatpush.msra.mxu0 %v281
    %444 = vmatpush.msra.mxu0 %v279
    %445 = vmatpush.msra.mxu0 %v277
    %446 = vmatpush.msra.mxu0 %v275
    %447 = vmatmul.f32.gmra.mxu0 %v429
    %v448 = vpop.f32.mrf.mxu0
    %v449 = vadd.f32 0.0, %v448
    %450 = vdwg.mxu0
    %451 = vmatpush.msra.mxu0 %v337
    %452 = vmatpush.msra.mxu0 %v335
    %453 = vmatpush.msra.mxu0 %v333
    %454 = vmatpush.msra.mxu0 %v331
    %455 = vmatpush.msra.mxu0 %v329
    %456 = vmatpush.msra.mxu0 %v327
    %457 = vmatpush.msra.mxu0 %v325
    %458 = vmatpush.msra.mxu0 %v323
    %459 = vmatpush.msra.mxu0 %v321
    %460 = vmatpush.msra.mxu0 %v319
    %461 = vmatpush.msra.mxu0 %v317
    %462 = vmatpush.msra.mxu0 %v315
    %463 = vmatpush.msra.mxu0 %v313
    %464 = vmatpush.msra.mxu0 %v311
    %465 = vmatpush.msra.mxu0 %v309
    %466 = vmatpush.msra.mxu0 %v307
    %467 = vmatmul.f32.gmra.mxu0 %v430
    %v468 = vpop.f32.mrf.mxu0
    %v469 = vadd.f32 %v449, %v468
    %470 = vdwg.mxu0
    %471 = vmatpush.msra.mxu0 %v306
    %472 = vmatpush.msra.mxu0 %v304
    %473 = vmatpush.msra.mxu0 %v302
    %474 = vmatpush.msra.mxu0 %v300
    %475 = vmatpush.msra.mxu0 %v298
    %476 = vmatpush.msra.mxu0 %v296
    %477 = vmatpush.msra.mxu0 %v294
    %478 = vmatpush.msra.mxu0 %v292
    %479 = vmatpush.msra.mxu0 %v290
    %480 = vmatpush.msra.mxu0 %v288
    %481 = vmatpush.msra.mxu0 %v286
    %482 = vmatpush.msra.mxu0 %v284
    %483 = vmatpush.msra.mxu0 %v282
    %484 = vmatpush.msra.mxu0 %v280
    %485 = vmatpush.msra.mxu0 %v278
    %486 = vmatpush.msra.mxu0 %v276
    %487 = vmatmul.f32.gmra.mxu0 %v429
    %v488 = vpop.f32.mrf.mxu0
    %v489 = vadd.f32 0.0, %v488
    %490 = vdwg.mxu0
    %491 = vmatpush.msra.mxu0 %v338
    %492 = vmatpush.msra.mxu0 %v336
    %493 = vmatpush.msra.mxu0 %v334
    %494 = vmatpush.msra.mxu0 %v332
    %495 = vmatpush.msra.mxu0 %v330
    %496 = vmatpush.msra.mxu0 %v328
    %497 = vmatpush.msra.mxu0 %v326
    %498 = vmatpush.msra.mxu0 %v324
    %499 = vmatpush.msra.mxu0 %v322
    %500 = vmatpush.msra.mxu0 %v320
    %501 = vmatpush.msra.mxu0 %v318
    %502 = vmatpush.msra.mxu0 %v316
    %503 = vmatpush.msra.mxu0 %v314
    %504 = vmatpush.msra.mxu0 %v312
    %505 = vmatpush.msra.mxu0 %v310
    %506 = vmatpush.msra.mxu0 %v308
    %507 = vmatmul.f32.gmra.mxu0 %v430
    %v508 = vpop.f32.mrf.mxu0
    %v509 = vadd.f32 %v489, %v508
    %510 = vdwg.mxu0
    %v511 = vmul.f32 %v469, 0.125
    %v512 = vmul.f32 %v509, 0.125
    %v513 = vld [vmem:[%s3] sm:$0x3]
    %v514 = vadd.f32 %v511, 1e-05
    %v515 = vadd.f32 %v512, 1e-05
    %v516 = vrsqrt.pop %v514
    %v517 = vmul.f32 %v516, %v514
    %v518 = vmul.f32 %v517, %v516
    %v519 = vmul.f32 0.5, %v518
    %v520 = vsub.f32 1.5, %v519
    %v521 = vmul.f32 %v516, %v520
    %vm522 = vweird.f32 %v514
    %vm523 = vweird.f32 %v516
    %vm524 = vmor %vm522, %vm523
    %v525 = vsel %vm524, %v516, %v521
    %v526 = vrsqrt.pop %v515
    %v527 = vmul.f32 %v526, %v515
    %v528 = vmul.f32 %v527, %v526
    %v529 = vmul.f32 0.5, %v528
    %v530 = vsub.f32 1.5, %v529
    %v531 = vmul.f32 %v526, %v530
    %vm532 = vweird.f32 %v515
    %vm533 = vweird.f32 %v526
    %vm534 = vmor %vm532, %vm533
    %v535 = vsel %vm534, %v526, %v531
    %v538 = vrot.slane %v535, 7
    %vm539 = vcmask 1040384
    %v540 = vsel %vm539, %v525, %v538
    %v542 = vmul.f32 %v513, %v540
    %v543 = vld [vmem:[%s4] sm:$0x3]
    %v545 = vperm.slane %v542, 0
    %v546 = vperm.slane %v542, 1
    %v549 = vmul.f32 %v421, %v545
    %v550 = vmul.f32 %v422, %v546
    %v552 = vperm.slane %v543, 0
    %v553 = vperm.slane %v543, 1
    %v556 = vadd.f32 %v549, %v552
    %v557 = vadd.f32 %v550, %v553
    %vm558 = vcmp.ge.f32.partialorder %v556, 0.0
    %vm559 = vcmp.ge.f32.partialorder %v557, 0.0
    %v560 = vmul.f32 %v556, 0.01
    %v561 = vmul.f32 %v557, 0.01
    %v562 = vsel %vm558, %v556, %v560
    %v563 = vsel %vm559, %v557, %v561
    %v564 = vmul.f32 %v562, %v562
    %v565 = vmul.f32 %v563, %v563
    %v566 = vmul.f32 %v423, %v545
    %v567 = vmul.f32 %v424, %v546
    %v568 = vadd.f32 %v566, %v552
    %v569 = vadd.f32 %v567, %v553
    %vm570 = vcmp.ge.f32.partialorder %v568, 0.0
    %vm571 = vcmp.ge.f32.partialorder %v569, 0.0
    %v572 = vmul.f32 %v568, 0.01
    %v573 = vmul.f32 %v569, 0.01
    %v574 = vsel %vm570, %v568, %v572
    %v575 = vsel %vm571, %v569, %v573
    %v576 = vmul.f32 %v574, %v574
    %v577 = vmul.f32 %v575, %v575
    %578 = vst [vmem:[#allocation2 + $0x2] sm:$0x1] 0.0
    %579 = vst [vmem:[#allocation2] sm:$0x1] %v564
    %580 = vst [vmem:[#allocation2 + $0x1] sm:$0x1] %v565
    %s581 = scalar_lea.vmem [#allocation2], 4
    %582 = vst [vmem:[%s581 + $0x2] sm:$0x1] 0.0
    %583 = vst [vmem:[%s581] sm:$0x1] %v576
    %584 = vst [vmem:[%s581 + $0x1] sm:$0x1] %v577
    %v585 = vld [vmem:[#allocation2] sm:$0x3]
    %v586 = vld [vmem:[#allocation2 + $0x1] sm:$0x3]
    %v587 = vld [vmem:[%s6] sm:$0xff]
    %v588 = vld [vmem:[%s6 + $0x8] sm:$0xff]
    %v589 = vld [vmem:[%s6 + $0x10] sm:$0xff]
    %v590 = vld [vmem:[%s6 + $0x18] sm:$0xff]
    %v591 = vld [vmem:[%s6 + $0x20] sm:$0xff]
    %v592 = vld [vmem:[%s6 + $0x28] sm:$0xff]
    %v593 = vld [vmem:[%s6 + $0x30] sm:$0xff]
    %v594 = vld [vmem:[%s6 + $0x38] sm:$0xff]
    %v595 = vld [vmem:[%s6 + $0x40] sm:$0xff]
    %v596 = vld [vmem:[%s6 + $0x48] sm:$0xff]
    %v597 = vld [vmem:[%s6 + $0x50] sm:$0xff]
    %v598 = vld [vmem:[%s6 + $0x58] sm:$0xff]
    %v599 = vld [vmem:[%s6 + $0x60] sm:$0xff]
    %v600 = vld [vmem:[%s6 + $0x68] sm:$0xff]
    %v601 = vld [vmem:[%s6 + $0x70] sm:$0xff]
    %v602 = vld [vmem:[%s6 + $0x78] sm:$0xff]
    %v603 = vld [vmem:[%s6 + $0x80] sm:$0xff]
    %v604 = vld [vmem:[%s6 + $0x88] sm:$0xff]
    %v605 = vld [vmem:[%s6 + $0x90] sm:$0xff]
    %v606 = vld [vmem:[%s6 + $0x98] sm:$0xff]
    %v607 = vld [vmem:[%s6 + $0xa0] sm:$0xff]
    %v608 = vld [vmem:[%s6 + $0xa8] sm:$0xff]
    %v609 = vld [vmem:[%s6 + $0xb0] sm:$0xff]
    %v610 = vld [vmem:[%s6 + $0xb8] sm:$0xff]
    %v611 = vld [vmem:[%s6 + $0xc0] sm:$0xff]
    %v612 = vld [vmem:[%s6 + $0xc8] sm:$0xff]
    %v613 = vld [vmem:[%s6 + $0xd0] sm:$0xff]
    %v614 = vld [vmem:[%s6 + $0xd8] sm:$0xff]
    %v615 = vld [vmem:[%s6 + $0xe0] sm:$0xff]
    %v616 = vld [vmem:[%s6 + $0xe8] sm:$0xff]
    %v617 = vld [vmem:[%s6 + $0xf0] sm:$0xff]
    %v618 = vld [vmem:[%s6 + $0xf8] sm:$0xff]
    %v619 = vld [vmem:[#allocation7] sm:$0xff]
    %v620 = vld [vmem:[#allocation7 + $0x8] sm:$0xff]
    %v621 = vld [vmem:[#allocation7 + $0x10] sm:$0xff]
    %v622 = vld [vmem:[#allocation7 + $0x18] sm:$0xff]
    %v623 = vld [vmem:[#allocation7 + $0x20] sm:$0xff]
    %v624 = vld [vmem:[#allocation7 + $0x28] sm:$0xff]
    %v625 = vld [vmem:[#allocation7 + $0x30] sm:$0xff]
    %v626 = vld [vmem:[#allocation7 + $0x38] sm:$0xff]
    %v627 = vld [vmem:[#allocation7 + $0x40] sm:$0xff]
    %v628 = vld [vmem:[#allocation7 + $0x48] sm:$0xff]
    %v629 = vld [vmem:[#allocation7 + $0x50] sm:$0xff]
    %v630 = vld [vmem:[#allocation7 + $0x58] sm:$0xff]
    %v631 = vld [vmem:[#allocation7 + $0x60] sm:$0xff]
    %v632 = vld [vmem:[#allocation7 + $0x68] sm:$0xff]
    %v633 = vld [vmem:[#allocation7 + $0x70] sm:$0xff]
    %v634 = vld [vmem:[#allocation7 + $0x78] sm:$0xff]
    %v635 = vld [vmem:[#allocation7 + $0x80] sm:$0xff]
    %v636 = vld [vmem:[#allocation7 + $0x88] sm:$0xff]
    %v637 = vld [vmem:[#allocation7 + $0x90] sm:$0xff]
    %v638 = vld [vmem:[#allocation7 + $0x98] sm:$0xff]
    %v639 = vld [vmem:[#allocation7 + $0xa0] sm:$0xff]
    %v640 = vld [vmem:[#allocation7 + $0xa8] sm:$0xff]
    %v641 = vld [vmem:[#allocation7 + $0xb0] sm:$0xff]
    %v642 = vld [vmem:[#allocation7 + $0xb8] sm:$0xff]
    %v643 = vld [vmem:[#allocation7 + $0xc0] sm:$0xff]
    %v644 = vld [vmem:[#allocation7 + $0xc8] sm:$0xff]
    %v645 = vld [vmem:[#allocation7 + $0xd0] sm:$0xff]
    %v646 = vld [vmem:[#allocation7 + $0xd8] sm:$0xff]
    %v647 = vld [vmem:[#allocation7 + $0xe0] sm:$0xff]
    %v648 = vld [vmem:[#allocation7 + $0xe8] sm:$0xff]
    %v649 = vld [vmem:[#allocation7 + $0xf0] sm:$0xff]
    %v650 = vld [vmem:[#allocation7 + $0xf8] sm:$0xff]
    %651 = vmatpush.msra.mxu0 %v649
    %652 = vmatpush.msra.mxu0 %v647
    %653 = vmatpush.msra.mxu0 %v645
    %654 = vmatpush.msra.mxu0 %v643
    %655 = vmatpush.msra.mxu0 %v641
    %656 = vmatpush.msra.mxu0 %v639
    %657 = vmatpush.msra.mxu0 %v637
    %658 = vmatpush.msra.mxu0 %v635
    %659 = vmatpush.msra.mxu0 %v633
    %660 = vmatpush.msra.mxu0 %v631
    %661 = vmatpush.msra.mxu0 %v629
    %662 = vmatpush.msra.mxu0 %v627
    %663 = vmatpush.msra.mxu0 %v625
    %664 = vmatpush.msra.mxu0 %v623
    %665 = vmatpush.msra.mxu0 %v621
    %666 = vmatpush.msra.mxu0 %v619
    %667 = vmatmul.f32.gmra.mxu0 %v586
    %v668 = vpop.f32.mrf.mxu0
    %v669 = vadd.f32 0.0, %v668
    %670 = vdwg.mxu0
    %671 = vmatpush.msra.mxu0 %v650
    %672 = vmatpush.msra.mxu0 %v648
    %673 = vmatpush.msra.mxu0 %v646
    %674 = vmatpush.msra.mxu0 %v644
    %675 = vmatpush.msra.mxu0 %v642
    %676 = vmatpush.msra.mxu0 %v640
    %677 = vmatpush.msra.mxu0 %v638
    %678 = vmatpush.msra.mxu0 %v636
    %679 = vmatpush.msra.mxu0 %v634
    %680 = vmatpush.msra.mxu0 %v632
    %681 = vmatpush.msra.mxu0 %v630
    %682 = vmatpush.msra.mxu0 %v628
    %683 = vmatpush.msra.mxu0 %v626
    %684 = vmatpush.msra.mxu0 %v624
    %685 = vmatpush.msra.mxu0 %v622
    %686 = vmatpush.msra.mxu0 %v620
    %687 = vmatmul.f32.gmra.mxu0 %v586
    %v688 = vpop.f32.mrf.mxu0
    %v689 = vadd.f32 0.0, %v688
    %690 = vdwg.mxu0
    %691 = vmatpush.msra.mxu0 %v617
    %692 = vmatpush.msra.mxu0 %v615
    %693 = vmatpush.msra.mxu0 %v613
    %694 = vmatpush.msra.mxu0 %v611
    %695 = vmatpush.msra.mxu0 %v609
    %696 = vmatpush.msra.mxu0 %v607
    %697 = vmatpush.msra.mxu0 %v605
    %698 = vmatpush.msra.mxu0 %v603
    %699 = vmatpush.msra.mxu0 %v601
    %700 = vmatpush.msra.mxu0 %v599
    %701 = vmatpush.msra.mxu0 %v597
    %702 = vmatpush.msra.mxu0 %v595
    %703 = vmatpush.msra.mxu0 %v593
    %704 = vmatpush.msra.mxu0 %v591
    %705 = vmatpush.msra.mxu0 %v589
    %706 = vmatpush.msra.mxu0 %v587
    %707 = vmatmul.f32.gmra.mxu0 %v585
    %v708 = vpop.f32.mrf.mxu0
    %v709 = vadd.f32 %v669, %v708
    %710 = vdwg.mxu0
    %711 = vmatpush.msra.mxu0 %v618
    %712 = vmatpush.msra.mxu0 %v616
    %713 = vmatpush.msra.mxu0 %v614
    %714 = vmatpush.msra.mxu0 %v612
    %715 = vmatpush.msra.mxu0 %v610
    %716 = vmatpush.msra.mxu0 %v608
    %717 = vmatpush.msra.mxu0 %v606
    %718 = vmatpush.msra.mxu0 %v604
    %719 = vmatpush.msra.mxu0 %v602
    %720 = vmatpush.msra.mxu0 %v600
    %721 = vmatpush.msra.mxu0 %v598
    %722 = vmatpush.msra.mxu0 %v596
    %723 = vmatpush.msra.mxu0 %v594
    %724 = vmatpush.msra.mxu0 %v592
    %725 = vmatpush.msra.mxu0 %v590
    %726 = vmatpush.msra.mxu0 %v588
    %727 = vmatmul.f32.gmra.mxu0 %v585
    %v728 = vpop.f32.mrf.mxu0
    %v729 = vadd.f32 %v689, %v728
    %730 = vdwg.mxu0
    %v731 = vld [vmem:[%s8] sm:$0x3]
    %v733 = vperm.slane %v731, 0
    %v734 = vperm.slane %v731, 1
    %v737 = vadd.f32 %v709, %v733
    %v738 = vadd.f32 %v729, %v734
    %v739 = vld [vmem:[%s581] sm:$0x3]
    %v740 = vld [vmem:[%s581 + $0x1] sm:$0x3]
    %741 = vmatpush.msra.mxu0 %v649
    %742 = vmatpush.msra.mxu0 %v647
    %743 = vmatpush.msra.mxu0 %v645
    %744 = vmatpush.msra.mxu0 %v643
    %745 = vmatpush.msra.mxu0 %v641
    %746 = vmatpush.msra.mxu0 %v639
    %747 = vmatpush.msra.mxu0 %v637
    %748 = vmatpush.msra.mxu0 %v635
    %749 = vmatpush.msra.mxu0 %v633
    %750 = vmatpush.msra.mxu0 %v631
    %751 = vmatpush.msra.mxu0 %v629
    %752 = vmatpush.msra.mxu0 %v627
    %753 = vmatpush.msra.mxu0 %v625
    %754 = vmatpush.msra.mxu0 %v623
    %755 = vmatpush.msra.mxu0 %v621
    %756 = vmatpush.msra.mxu0 %v619
    %757 = vmatmul.f32.gmra.mxu0 %v740
    %v758 = vpop.f32.mrf.mxu0
    %v759 = vadd.f32 0.0, %v758
    %760 = vdwg.mxu0
    %761 = vmatpush.msra.mxu0 %v650
    %762 = vmatpush.msra.mxu0 %v648
    %763 = vmatpush.msra.mxu0 %v646
    %764 = vmatpush.msra.mxu0 %v644
    %765 = vmatpush.msra.mxu0 %v642
    %766 = vmatpush.msra.mxu0 %v640
    %767 = vmatpush.msra.mxu0 %v638
    %768 = vmatpush.msra.mxu0 %v636
    %769 = vmatpush.msra.mxu0 %v634
    %770 = vmatpush.msra.mxu0 %v632
    %771 = vmatpush.msra.mxu0 %v630
    %772 = vmatpush.msra.mxu0 %v628
    %773 = vmatpush.msra.mxu0 %v626
    %774 = vmatpush.msra.mxu0 %v624
    %775 = vmatpush.msra.mxu0 %v622
    %776 = vmatpush.msra.mxu0 %v620
    %777 = vmatmul.f32.gmra.mxu0 %v740
    %v778 = vpop.f32.mrf.mxu0
    %v779 = vadd.f32 0.0, %v778
    %780 = vdwg.mxu0
    %781 = vmatpush.msra.mxu0 %v617
    %782 = vmatpush.msra.mxu0 %v615
    %783 = vmatpush.msra.mxu0 %v613
    %784 = vmatpush.msra.mxu0 %v611
    %785 = vmatpush.msra.mxu0 %v609
    %786 = vmatpush.msra.mxu0 %v607
    %787 = vmatpush.msra.mxu0 %v605
    %788 = vmatpush.msra.mxu0 %v603
    %789 = vmatpush.msra.mxu0 %v601
    %790 = vmatpush.msra.mxu0 %v599
    %791 = vmatpush.msra.mxu0 %v597
    %792 = vmatpush.msra.mxu0 %v595
    %793 = vmatpush.msra.mxu0 %v593
    %794 = vmatpush.msra.mxu0 %v591
    %795 = vmatpush.msra.mxu0 %v589
    %796 = vmatpush.msra.mxu0 %v587
    %797 = vmatmul.f32.gmra.mxu0 %v739
    %v798 = vpop.f32.mrf.mxu0
    %v799 = vadd.f32 %v759, %v798
    %800 = vdwg.mxu0
    %801 = vmatpush.msra.mxu0 %v618
    %802 = vmatpush.msra.mxu0 %v616
    %803 = vmatpush.msra.mxu0 %v614
    %804 = vmatpush.msra.mxu0 %v612
    %805 = vmatpush.msra.mxu0 %v610
    %806 = vmatpush.msra.mxu0 %v608
    %807 = vmatpush.msra.mxu0 %v606
    %808 = vmatpush.msra.mxu0 %v604
    %809 = vmatpush.msra.mxu0 %v602
    %810 = vmatpush.msra.mxu0 %v600
    %811 = vmatpush.msra.mxu0 %v598
    %812 = vmatpush.msra.mxu0 %v596
    %813 = vmatpush.msra.mxu0 %v594
    %814 = vmatpush.msra.mxu0 %v592
    %815 = vmatpush.msra.mxu0 %v590
    %816 = vmatpush.msra.mxu0 %v588
    %817 = vmatmul.f32.gmra.mxu0 %v739
    %v818 = vpop.f32.mrf.mxu0
    %v819 = vadd.f32 %v779, %v818
    %820 = vdwg.mxu0
    %v821 = vadd.f32 %v799, %v733
    %v822 = vadd.f32 %v819, %v734
    %vm823 = vcmask 15360
    %v825 = vsel %vm823, 1.0, 0
    %vm827 = vcmask 1041408
    %v829 = vsel %vm827, %v821, 0
    %v832 = vsel %vm827, %v822, 0
    %834 = vmatpush.msra.mxu0 0.0
    %835 = vmatpush.msra.mxu0 0.0
    %836 = vmatpush.msra.mxu0 0.0
    %837 = vmatpush.msra.mxu0 0.0
    %838 = vmatpush.msra.mxu0 0.0
    %839 = vmatpush.msra.mxu0 0.0
    %840 = vmatpush.msra.mxu0 0.0
    %841 = vmatpush.msra.mxu0 0.0
    %842 = vmatpush.msra.mxu0 0.0
    %843 = vmatpush.msra.mxu0 0.0
    %844 = vmatpush.msra.mxu0 0.0
    %845 = vmatpush.msra.mxu0 0.0
    %846 = vmatpush.msra.mxu0 0.0
    %847 = vmatpush.msra.mxu0 0.0
    %848 = vmatpush.msra.mxu0 0.0
    %849 = vmatpush.msra.mxu0 %v829
    %850 = vmatmul.f32.gmra.mxu0 %v825
    %v851 = vpop.f32.mrf.mxu0
    %v852 = vadd.f32 0.0, %v851
    %853 = vdwg.mxu0
    %854 = vmatpush.msra.mxu0 0.0
    %855 = vmatpush.msra.mxu0 0.0
    %856 = vmatpush.msra.mxu0 0.0
    %857 = vmatpush.msra.mxu0 0.0
    %858 = vmatpush.msra.mxu0 0.0
    %859 = vmatpush.msra.mxu0 0.0
    %860 = vmatpush.msra.mxu0 0.0
    %861 = vmatpush.msra.mxu0 0.0
    %862 = vmatpush.msra.mxu0 0.0
    %863 = vmatpush.msra.mxu0 0.0
    %864 = vmatpush.msra.mxu0 0.0
    %865 = vmatpush.msra.mxu0 0.0
    %866 = vmatpush.msra.mxu0 0.0
    %867 = vmatpush.msra.mxu0 0.0
    %868 = vmatpush.msra.mxu0 0.0
    %869 = vmatpush.msra.mxu0 %v832
    %870 = vmatmul.f32.gmra.mxu0 %v825
    %v871 = vpop.f32.mrf.mxu0
    %v872 = vadd.f32 0.0, %v871
    %873 = vdwg.mxu0
    %v875 = vsel %vm827, %v737, 0
    %v878 = vsel %vm827, %v738, 0
    %880 = vmatpush.msra.mxu0 0.0
    %881 = vmatpush.msra.mxu0 0.0
    %882 = vmatpush.msra.mxu0 0.0
    %883 = vmatpush.msra.mxu0 0.0
    %884 = vmatpush.msra.mxu0 0.0
    %885 = vmatpush.msra.mxu0 0.0
    %886 = vmatpush.msra.mxu0 0.0
    %887 = vmatpush.msra.mxu0 0.0
    %888 = vmatpush.msra.mxu0 0.0
    %889 = vmatpush.msra.mxu0 0.0
    %890 = vmatpush.msra.mxu0 0.0
    %891 = vmatpush.msra.mxu0 0.0
    %892 = vmatpush.msra.mxu0 0.0
    %893 = vmatpush.msra.mxu0 0.0
    %894 = vmatpush.msra.mxu0 0.0
    %895 = vmatpush.msra.mxu0 %v875
    %896 = vmatmul.f32.gmra.mxu0 %v825
    %v897 = vpop.f32.mrf.mxu0
    %v898 = vadd.f32 %v852, %v897
    %899 = vdwg.mxu0
    %900 = vmatpush.msra.mxu0 0.0
    %901 = vmatpush.msra.mxu0 0.0
    %902 = vmatpush.msra.mxu0 0.0
    %903 = vmatpush.msra.mxu0 0.0
    %904 = vmatpush.msra.mxu0 0.0
    %905 = vmatpush.msra.mxu0 0.0
    %906 = vmatpush.msra.mxu0 0.0
    %907 = vmatpush.msra.mxu0 0.0
    %908 = vmatpush.msra.mxu0 0.0
    %909 = vmatpush.msra.mxu0 0.0
    %910 = vmatpush.msra.mxu0 0.0
    %911 = vmatpush.msra.mxu0 0.0
    %912 = vmatpush.msra.mxu0 0.0
    %913 = vmatpush.msra.mxu0 0.0
    %914 = vmatpush.msra.mxu0 0.0
    %915 = vmatpush.msra.mxu0 %v878
    %916 = vmatmul.f32.gmra.mxu0 %v825
    %v917 = vpop.f32.mrf.mxu0
    %v918 = vadd.f32 %v872, %v917
    %919 = vdwg.mxu0
    %v920 = vld [vmem:[#allocation9] sm:$0xff]
    %v921 = vld [vmem:[#allocation9 + $0x8] sm:$0xff]
    %v922 = vld [vmem:[#allocation9 + $0x10] sm:$0xff]
    %v923 = vld [vmem:[#allocation9 + $0x18] sm:$0xff]
    %v924 = vld [vmem:[#allocation9 + $0x20] sm:$0xff]
    %v925 = vld [vmem:[#allocation9 + $0x28] sm:$0xff]
    %v926 = vld [vmem:[#allocation9 + $0x30] sm:$0xff]
    %v927 = vld [vmem:[#allocation9 + $0x38] sm:$0xff]
    %v928 = vld [vmem:[#allocation9 + $0x40] sm:$0xff]
    %v929 = vld [vmem:[#allocation9 + $0x48] sm:$0xff]
    %v930 = vld [vmem:[#allocation9 + $0x50] sm:$0xff]
    %v931 = vld [vmem:[#allocation9 + $0x58] sm:$0xff]
    %v932 = vld [vmem:[#allocation9 + $0x60] sm:$0xff]
    %v933 = vld [vmem:[#allocation9 + $0x68] sm:$0xff]
    %v934 = vld [vmem:[#allocation9 + $0x70] sm:$0xff]
    %v935 = vld [vmem:[#allocation9 + $0x78] sm:$0xff]
    %v936 = vld [vmem:[#allocation9 + $0x80] sm:$0xff]
    %v937 = vld [vmem:[#allocation9 + $0x88] sm:$0xff]
    %v938 = vld [vmem:[#allocation9 + $0x90] sm:$0xff]
    %v939 = vld [vmem:[#allocation9 + $0x98] sm:$0xff]
    %v940 = vld [vmem:[#allocation9 + $0xa0] sm:$0xff]
    %v941 = vld [vmem:[#allocation9 + $0xa8] sm:$0xff]
    %v942 = vld [vmem:[#allocation9 + $0xb0] sm:$0xff]
    %v943 = vld [vmem:[#allocation9 + $0xb8] sm:$0xff]
    %v944 = vld [vmem:[#allocation9 + $0xc0] sm:$0xff]
    %v945 = vld [vmem:[#allocation9 + $0xc8] sm:$0xff]
    %v946 = vld [vmem:[#allocation9 + $0xd0] sm:$0xff]
    %v947 = vld [vmem:[#allocation9 + $0xd8] sm:$0xff]
    %v948 = vld [vmem:[#allocation9 + $0xe0] sm:$0xff]
    %v949 = vld [vmem:[#allocation9 + $0xe8] sm:$0xff]
    %v950 = vld [vmem:[#allocation9 + $0xf0] sm:$0xff]
    %v951 = vld [vmem:[#allocation9 + $0xf8] sm:$0xff]
    %v952 = vld [vmem:[#allocation9 + $0x100] sm:$0xff]
    %v953 = vld [vmem:[#allocation9 + $0x108] sm:$0xff]
    %v954 = vld [vmem:[#allocation9 + $0x110] sm:$0xff]
    %v955 = vld [vmem:[#allocation9 + $0x118] sm:$0xff]
    %v956 = vld [vmem:[#allocation9 + $0x120] sm:$0xff]
    %v957 = vld [vmem:[#allocation9 + $0x128] sm:$0xff]
    %v958 = vld [vmem:[#allocation9 + $0x130] sm:$0xff]
    %v959 = vld [vmem:[#allocation9 + $0x138] sm:$0xff]
    %v960 = vld [vmem:[#allocation9 + $0x140] sm:$0xff]
    %v961 = vld [vmem:[#allocation9 + $0x148] sm:$0xff]
    %v962 = vld [vmem:[#allocation9 + $0x150] sm:$0xff]
    %v963 = vld [vmem:[#allocation9 + $0x158] sm:$0xff]
    %v964 = vld [vmem:[#allocation9 + $0x160] sm:$0xff]
    %v965 = vld [vmem:[#allocation9 + $0x168] sm:$0xff]
    %v966 = vld [vmem:[#allocation9 + $0x170] sm:$0xff]
    %v967 = vld [vmem:[#allocation9 + $0x178] sm:$0xff]
    %v968 = vld [vmem:[#allocation9 + $0x180] sm:$0xff]
    %v969 = vld [vmem:[#allocation9 + $0x188] sm:$0xff]
    %v970 = vld [vmem:[#allocation9 + $0x190] sm:$0xff]
    %v971 = vld [vmem:[#allocation9 + $0x198] sm:$0xff]
    %v972 = vld [vmem:[#allocation9 + $0x1a0] sm:$0xff]
    %v973 = vld [vmem:[#allocation9 + $0x1a8] sm:$0xff]
    %v974 = vld [vmem:[#allocation9 + $0x1b0] sm:$0xff]
    %v975 = vld [vmem:[#allocation9 + $0x1b8] sm:$0xff]
    %v976 = vld [vmem:[#allocation9 + $0x1c0] sm:$0xff]
    %v977 = vld [vmem:[#allocation9 + $0x1c8] sm:$0xff]
    %v978 = vld [vmem:[#allocation9 + $0x1d0] sm:$0xff]
    %v979 = vld [vmem:[#allocation9 + $0x1d8] sm:$0xff]
    %v980 = vld [vmem:[#allocation9 + $0x1e0] sm:$0xff]
    %v981 = vld [vmem:[#allocation9 + $0x1e8] sm:$0xff]
    %v982 = vld [vmem:[#allocation9 + $0x1f0] sm:$0xff]
    %v983 = vld [vmem:[#allocation9 + $0x1f8] sm:$0xff]
    %984 = vmatpush.msra.mxu0 %v950
    %985 = vmatpush.msra.mxu0 %v948
    %986 = vmatpush.msra.mxu0 %v946
    %987 = vmatpush.msra.mxu0 %v944
    %988 = vmatpush.msra.mxu0 %v942
    %989 = vmatpush.msra.mxu0 %v940
    %990 = vmatpush.msra.mxu0 %v938
    %991 = vmatpush.msra.mxu0 %v936
    %992 = vmatpush.msra.mxu0 %v934
    %993 = vmatpush.msra.mxu0 %v932
    %994 = vmatpush.msra.mxu0 %v930
    %995 = vmatpush.msra.mxu0 %v928
    %996 = vmatpush.msra.mxu0 %v926
    %997 = vmatpush.msra.mxu0 %v924
    %998 = vmatpush.msra.mxu0 %v922
    %999 = vmatpush.msra.mxu0 %v920
    %1000 = vmatmul.f32.gmra.mxu0 %v898
    %v1001 = vpop.f32.mrf.mxu0
    %v1002 = vadd.f32 0.0, %v1001
    %1003 = vdwg.mxu0
    %1004 = vmatpush.msra.mxu0 %v982
    %1005 = vmatpush.msra.mxu0 %v980
    %1006 = vmatpush.msra.mxu0 %v978
    %1007 = vmatpush.msra.mxu0 %v976
    %1008 = vmatpush.msra.mxu0 %v974
    %1009 = vmatpush.msra.mxu0 %v972
    %1010 = vmatpush.msra.mxu0 %v970
    %1011 = vmatpush.msra.mxu0 %v968
    %1012 = vmatpush.msra.mxu0 %v966
    %1013 = vmatpush.msra.mxu0 %v964
    %1014 = vmatpush.msra.mxu0 %v962
    %1015 = vmatpush.msra.mxu0 %v960
    %1016 = vmatpush.msra.mxu0 %v958
    %1017 = vmatpush.msra.mxu0 %v956
    %1018 = vmatpush.msra.mxu0 %v954
    %1019 = vmatpush.msra.mxu0 %v952
    %1020 = vmatmul.f32.gmra.mxu0 %v918
    %v1021 = vpop.f32.mrf.mxu0
    %v1022 = vadd.f32 %v1002, %v1021
    %1023 = vdwg.mxu0
    %1024 = vmatpush.msra.mxu0 %v951
    %1025 = vmatpush.msra.mxu0 %v949
    %1026 = vmatpush.msra.mxu0 %v947
    %1027 = vmatpush.msra.mxu0 %v945
    %1028 = vmatpush.msra.mxu0 %v943
    %1029 = vmatpush.msra.mxu0 %v941
    %1030 = vmatpush.msra.mxu0 %v939
    %1031 = vmatpush.msra.mxu0 %v937
    %1032 = vmatpush.msra.mxu0 %v935
    %1033 = vmatpush.msra.mxu0 %v933
    %1034 = vmatpush.msra.mxu0 %v931
    %1035 = vmatpush.msra.mxu0 %v929
    %1036 = vmatpush.msra.mxu0 %v927
    %1037 = vmatpush.msra.mxu0 %v925
    %1038 = vmatpush.msra.mxu0 %v923
    %1039 = vmatpush.msra.mxu0 %v921
    %1040 = vmatmul.f32.gmra.mxu0 %v898
    %v1041 = vpop.f32.mrf.mxu0
    %v1042 = vadd.f32 0.0, %v1041
    %1043 = vdwg.mxu0
    %1044 = vmatpush.msra.mxu0 %v983
    %1045 = vmatpush.msra.mxu0 %v981
    %1046 = vmatpush.msra.mxu0 %v979
    %1047 = vmatpush.msra.mxu0 %v977
    %1048 = vmatpush.msra.mxu0 %v975
    %1049 = vmatpush.msra.mxu0 %v973
    %1050 = vmatpush.msra.mxu0 %v971
    %1051 = vmatpush.msra.mxu0 %v969
    %1052 = vmatpush.msra.mxu0 %v967
    %1053 = vmatpush.msra.mxu0 %v965
    %1054 = vmatpush.msra.mxu0 %v963
    %1055 = vmatpush.msra.mxu0 %v961
    %1056 = vmatpush.msra.mxu0 %v959
    %1057 = vmatpush.msra.mxu0 %v957
    %1058 = vmatpush.msra.mxu0 %v955
    %1059 = vmatpush.msra.mxu0 %v953
    %1060 = vmatmul.f32.gmra.mxu0 %v918
    %v1061 = vpop.f32.mrf.mxu0
    %v1062 = vadd.f32 %v1042, %v1061
    %1063 = vdwg.mxu0
    %v1064 = vmul.f32 %v1022, 0.03125
    %v1065 = vmul.f32 %v1062, 0.03125
    %v1066 = vperm.slane %v1064, 0
    %v1067 = vperm.slane %v1065, 0
    %v1068 = vsub.f32 %v737, %v1066
    %v1069 = vsub.f32 %v738, %v1067
    %v1070 = vsub.f32 %v821, %v1066
    %v1071 = vsub.f32 %v822, %v1067
    %v1072 = vmul.f32 %v1068, %v1068
    %v1073 = vmul.f32 %v1069, %v1069
    %v1074 = vmul.f32 %v1070, %v1070
    %v1075 = vmul.f32 %v1071, %v1071
    %v1077 = vsel %vm827, %v1074, 0
    %v1080 = vsel %vm827, %v1075, 0
    %1082 = vmatpush.msra.mxu0 0.0
    %1083 = vmatpush.msra.mxu0 0.0
    %1084 = vmatpush.msra.mxu0 0.0
    %1085 = vmatpush.msra.mxu0 0.0
    %1086 = vmatpush.msra.mxu0 0.0
    %1087 = vmatpush.msra.mxu0 0.0
    %1088 = vmatpush.msra.mxu0 0.0
    %1089 = vmatpush.msra.mxu0 0.0
    %1090 = vmatpush.msra.mxu0 0.0
    %1091 = vmatpush.msra.mxu0 0.0
    %1092 = vmatpush.msra.mxu0 0.0
    %1093 = vmatpush.msra.mxu0 0.0
    %1094 = vmatpush.msra.mxu0 0.0
    %1095 = vmatpush.msra.mxu0 0.0
    %1096 = vmatpush.msra.mxu0 0.0
    %1097 = vmatpush.msra.mxu0 %v1077
    %1098 = vmatmul.f32.gmra.mxu0 %v825
    %v1099 = vpop.f32.mrf.mxu0
    %v1100 = vadd.f32 0.0, %v1099
    %1101 = vdwg.mxu0
    %1102 = vmatpush.msra.mxu0 0.0
    %1103 = vmatpush.msra.mxu0 0.0
    %1104 = vmatpush.msra.mxu0 0.0
    %1105 = vmatpush.msra.mxu0 0.0
    %1106 = vmatpush.msra.mxu0 0.0
    %1107 = vmatpush.msra.mxu0 0.0
    %1108 = vmatpush.msra.mxu0 0.0
    %1109 = vmatpush.msra.mxu0 0.0
    %1110 = vmatpush.msra.mxu0 0.0
    %1111 = vmatpush.msra.mxu0 0.0
    %1112 = vmatpush.msra.mxu0 0.0
    %1113 = vmatpush.msra.mxu0 0.0
    %1114 = vmatpush.msra.mxu0 0.0
    %1115 = vmatpush.msra.mxu0 0.0
    %1116 = vmatpush.msra.mxu0 0.0
    %1117 = vmatpush.msra.mxu0 %v1080
    %1118 = vmatmul.f32.gmra.mxu0 %v825
    %v1119 = vpop.f32.mrf.mxu0
    %v1120 = vadd.f32 0.0, %v1119
    %1121 = vdwg.mxu0
    %v1123 = vsel %vm827, %v1072, 0
    %v1126 = vsel %vm827, %v1073, 0
    %1128 = vmatpush.msra.mxu0 0.0
    %1129 = vmatpush.msra.mxu0 0.0
    %1130 = vmatpush.msra.mxu0 0.0
    %1131 = vmatpush.msra.mxu0 0.0
    %1132 = vmatpush.msra.mxu0 0.0
    %1133 = vmatpush.msra.mxu0 0.0
    %1134 = vmatpush.msra.mxu0 0.0
    %1135 = vmatpush.msra.mxu0 0.0
    %1136 = vmatpush.msra.mxu0 0.0
    %1137 = vmatpush.msra.mxu0 0.0
    %1138 = vmatpush.msra.mxu0 0.0
    %1139 = vmatpush.msra.mxu0 0.0
    %1140 = vmatpush.msra.mxu0 0.0
    %1141 = vmatpush.msra.mxu0 0.0
    %1142 = vmatpush.msra.mxu0 0.0
    %1143 = vmatpush.msra.mxu0 %v1123
    %1144 = vmatmul.f32.gmra.mxu0 %v825
    %v1145 = vpop.f32.mrf.mxu0
    %v1146 = vadd.f32 %v1100, %v1145
    %1147 = vdwg.mxu0
    %1148 = vmatpush.msra.mxu0 0.0
    %1149 = vmatpush.msra.mxu0 0.0
    %1150 = vmatpush.msra.mxu0 0.0
    %1151 = vmatpush.msra.mxu0 0.0
    %1152 = vmatpush.msra.mxu0 0.0
    %1153 = vmatpush.msra.mxu0 0.0
    %1154 = vmatpush.msra.mxu0 0.0
    %1155 = vmatpush.msra.mxu0 0.0
    %1156 = vmatpush.msra.mxu0 0.0
    %1157 = vmatpush.msra.mxu0 0.0
    %1158 = vmatpush.msra.mxu0 0.0
    %1159 = vmatpush.msra.mxu0 0.0
    %1160 = vmatpush.msra.mxu0 0.0
    %1161 = vmatpush.msra.mxu0 0.0
    %1162 = vmatpush.msra.mxu0 0.0
    %1163 = vmatpush.msra.mxu0 %v1126
    %1164 = vmatmul.f32.gmra.mxu0 %v825
    %v1165 = vpop.f32.mrf.mxu0
    %v1166 = vadd.f32 %v1120, %v1165
    %1167 = vdwg.mxu0
    %1168 = vmatpush.msra.mxu0 %v950
    %1169 = vmatpush.msra.mxu0 %v948
    %1170 = vmatpush.msra.mxu0 %v946
    %1171 = vmatpush.msra.mxu0 %v944
    %1172 = vmatpush.msra.mxu0 %v942
    %1173 = vmatpush.msra.mxu0 %v940
    %1174 = vmatpush.msra.mxu0 %v938
    %1175 = vmatpush.msra.mxu0 %v936
    %1176 = vmatpush.msra.mxu0 %v934
    %1177 = vmatpush.msra.mxu0 %v932
    %1178 = vmatpush.msra.mxu0 %v930
    %1179 = vmatpush.msra.mxu0 %v928
    %1180 = vmatpush.msra.mxu0 %v926
    %1181 = vmatpush.msra.mxu0 %v924
    %1182 = vmatpush.msra.mxu0 %v922
    %1183 = vmatpush.msra.mxu0 %v920
    %1184 = vmatmul.f32.gmra.mxu0 %v1146
    %v1185 = vpop.f32.mrf.mxu0
    %v1186 = vadd.f32 0.0, %v1185
    %1187 = vdwg.mxu0
    %1188 = vmatpush.msra.mxu0 %v982
    %1189 = vmatpush.msra.mxu0 %v980
    %1190 = vmatpush.msra.mxu0 %v978
    %1191 = vmatpush.msra.mxu0 %v976
    %1192 = vmatpush.msra.mxu0 %v974
    %1193 = vmatpush.msra.mxu0 %v972
    %1194 = vmatpush.msra.mxu0 %v970
    %1195 = vmatpush.msra.mxu0 %v968
    %1196 = vmatpush.msra.mxu0 %v966
    %1197 = vmatpush.msra.mxu0 %v964
    %1198 = vmatpush.msra.mxu0 %v962
    %1199 = vmatpush.msra.mxu0 %v960
    %1200 = vmatpush.msra.mxu0 %v958
    %1201 = vmatpush.msra.mxu0 %v956
    %1202 = vmatpush.msra.mxu0 %v954
    %1203 = vmatpush.msra.mxu0 %v952
    %1204 = vmatmul.f32.gmra.mxu0 %v1166
    %v1205 = vpop.f32.mrf.mxu0
    %v1206 = vadd.f32 %v1186, %v1205
    %1207 = vdwg.mxu0
    %1208 = vmatpush.msra.mxu0 %v951
    %1209 = vmatpush.msra.mxu0 %v949
    %1210 = vmatpush.msra.mxu0 %v947
    %1211 = vmatpush.msra.mxu0 %v945
    %1212 = vmatpush.msra.mxu0 %v943
    %1213 = vmatpush.msra.mxu0 %v941
    %1214 = vmatpush.msra.mxu0 %v939
    %1215 = vmatpush.msra.mxu0 %v937
    %1216 = vmatpush.msra.mxu0 %v935
    %1217 = vmatpush.msra.mxu0 %v933
    %1218 = vmatpush.msra.mxu0 %v931
    %1219 = vmatpush.msra.mxu0 %v929
    %1220 = vmatpush.msra.mxu0 %v927
    %1221 = vmatpush.msra.mxu0 %v925
    %1222 = vmatpush.msra.mxu0 %v923
    %1223 = vmatpush.msra.mxu0 %v921
    %1224 = vmatmul.f32.gmra.mxu0 %v1146
    %v1225 = vpop.f32.mrf.mxu0
    %v1226 = vadd.f32 0.0, %v1225
    %1227 = vdwg.mxu0
    %1228 = vmatpush.msra.mxu0 %v983
    %1229 = vmatpush.msra.mxu0 %v981
    %1230 = vmatpush.msra.mxu0 %v979
    %1231 = vmatpush.msra.mxu0 %v977
    %1232 = vmatpush.msra.mxu0 %v975
    %1233 = vmatpush.msra.mxu0 %v973
    %1234 = vmatpush.msra.mxu0 %v971
    %1235 = vmatpush.msra.mxu0 %v969
    %1236 = vmatpush.msra.mxu0 %v967
    %1237 = vmatpush.msra.mxu0 %v965
    %1238 = vmatpush.msra.mxu0 %v963
    %1239 = vmatpush.msra.mxu0 %v961
    %1240 = vmatpush.msra.mxu0 %v959
    %1241 = vmatpush.msra.mxu0 %v957
    %1242 = vmatpush.msra.mxu0 %v955
    %1243 = vmatpush.msra.mxu0 %v953
    %1244 = vmatmul.f32.gmra.mxu0 %v1166
    %v1245 = vpop.f32.mrf.mxu0
    %v1246 = vadd.f32 %v1226, %v1245
    %1247 = vdwg.mxu0
    %v1248 = vmul.f32 %v1206, 0.03125
    %v1249 = vmul.f32 %v1246, 0.03125
    %v1250 = vld [vmem:[%s9] sm:$0x3]
    %v1251 = vadd.f32 %v1248, 1e-05
    %v1252 = vadd.f32 %v1249, 1e-05
    %v1253 = vrsqrt.pop %v1251
    %v1254 = vmul.f32 %v1253, %v1251
    %v1255 = vmul.f32 %v1254, %v1253
    %v1256 = vmul.f32 0.5, %v1255
    %v1257 = vsub.f32 1.5, %v1256
    %v1258 = vmul.f32 %v1253, %v1257
    %vm1259 = vweird.f32 %v1251
    %vm1260 = vweird.f32 %v1253
    %vm1261 = vmor %vm1259, %vm1260
    %v1262 = vsel %vm1261, %v1253, %v1258
    %v1263 = vrsqrt.pop %v1252
    %v1264 = vmul.f32 %v1263, %v1252
    %v1265 = vmul.f32 %v1264, %v1263
    %v1266 = vmul.f32 0.5, %v1265
    %v1267 = vsub.f32 1.5, %v1266
    %v1268 = vmul.f32 %v1263, %v1267
    %vm1269 = vweird.f32 %v1252
    %vm1270 = vweird.f32 %v1263
    %vm1271 = vmor %vm1269, %vm1270
    %v1272 = vsel %vm1271, %v1263, %v1268
    %v1275 = vrot.slane %v1272, 7
    %v1276 = vsel %vm539, %v1262, %v1275
    %v1278 = vmul.f32 %v1250, %v1276
    %v1279 = vld [vmem:[%s10] sm:$0x3]
    %v1281 = vperm.slane %v1278, 0
    %v1282 = vperm.slane %v1278, 1
    %v1285 = vmul.f32 %v1068, %v1281
    %v1286 = vmul.f32 %v1069, %v1282
    %v1288 = vperm.slane %v1279, 0
    %v1289 = vperm.slane %v1279, 1
    %v1292 = vadd.f32 %v1285, %v1288
    %v1293 = vadd.f32 %v1286, %v1289
    %vm1294 = vcmp.ge.f32.partialorder %v1292, 0.0
    %vm1295 = vcmp.ge.f32.partialorder %v1293, 0.0
    %v1296 = vmul.f32 %v1292, 0.01
    %v1297 = vmul.f32 %v1293, 0.01
    %v1298 = vsel %vm1294, %v1292, %v1296
    %v1299 = vsel %vm1295, %v1293, %v1297
    %v1300 = vmul.f32 %v1298, %v1298
    %v1301 = vmul.f32 %v1299, %v1299
    %v1302 = vmul.f32 %v1070, %v1281
    %v1303 = vmul.f32 %v1071, %v1282
    %v1304 = vadd.f32 %v1302, %v1288
    %v1305 = vadd.f32 %v1303, %v1289
    %vm1306 = vcmp.ge.f32.partialorder %v1304, 0.0
    %vm1307 = vcmp.ge.f32.partialorder %v1305, 0.0
    %v1308 = vmul.f32 %v1304, 0.01
    %v1309 = vmul.f32 %v1305, 0.01
    %v1310 = vsel %vm1306, %v1304, %v1308
    %v1311 = vsel %vm1307, %v1305, %v1309
    %v1312 = vmul.f32 %v1310, %v1310
    %v1313 = vmul.f32 %v1311, %v1311
    %1314 = vst [vmem:[#allocation3 + $0x4] sm:$0x1] 0.0
    %1315 = vst [vmem:[#allocation3] sm:$0x1] %v1300
    %1316 = vst [vmem:[#allocation3 + $0x1] sm:$0x1] %v1301
    %1317 = vst [vmem:[#allocation3 + $0x1] sm:$0x2] %v1300
    %1318 = vst [vmem:[#allocation3 + $0x2] sm:$0x2] %v1301
    %s1319 = scalar_lea.vmem [#allocation3], 8
    %1320 = vst [vmem:[%s1319 + $0x4] sm:$0x1] 0.0
    %1321 = vst [vmem:[%s1319] sm:$0x1] %v1312
    %1322 = vst [vmem:[%s1319 + $0x1] sm:$0x1] %v1313
    %1323 = vst [vmem:[%s1319 + $0x1] sm:$0x2] %v1312
    %1324 = vst [vmem:[%s1319 + $0x2] sm:$0x2] %v1313
    %v1325 = vld [vmem:[#allocation3] sm:$0xf]
    %v1326 = vld [vmem:[#allocation3 + $0x1] sm:$0xf]
    %v1327 = vld [vmem:[#allocation10] sm:$0xff]
    %v1328 = vld [vmem:[#allocation10 + $0x8] sm:$0xff]
    %v1329 = vld [vmem:[#allocation10 + $0x10] sm:$0xff]
    %v1330 = vld [vmem:[#allocation10 + $0x18] sm:$0xff]
    %v1331 = vld [vmem:[#allocation10 + $0x20] sm:$0xff]
    %v1332 = vld [vmem:[#allocation10 + $0x28] sm:$0xff]
    %v1333 = vld [vmem:[#allocation10 + $0x30] sm:$0xff]
    %v1334 = vld [vmem:[#allocation10 + $0x38] sm:$0xff]
    %v1335 = vld [vmem:[#allocation10 + $0x40] sm:$0xff]
    %v1336 = vld [vmem:[#allocation10 + $0x48] sm:$0xff]
    %v1337 = vld [vmem:[#allocation10 + $0x50] sm:$0xff]
    %v1338 = vld [vmem:[#allocation10 + $0x58] sm:$0xff]
    %v1339 = vld [vmem:[#allocation10 + $0x60] sm:$0xff]
    %v1340 = vld [vmem:[#allocation10 + $0x68] sm:$0xff]
    %v1341 = vld [vmem:[#allocation10 + $0x70] sm:$0xff]
    %v1342 = vld [vmem:[#allocation10 + $0x78] sm:$0xff]
    %v1343 = vld [vmem:[#allocation10 + $0x80] sm:$0xff]
    %v1344 = vld [vmem:[#allocation10 + $0x88] sm:$0xff]
    %v1345 = vld [vmem:[#allocation10 + $0x90] sm:$0xff]
    %v1346 = vld [vmem:[#allocation10 + $0x98] sm:$0xff]
    %v1347 = vld [vmem:[#allocation10 + $0xa0] sm:$0xff]
    %v1348 = vld [vmem:[#allocation10 + $0xa8] sm:$0xff]
    %v1349 = vld [vmem:[#allocation10 + $0xb0] sm:$0xff]
    %v1350 = vld [vmem:[#allocation10 + $0xb8] sm:$0xff]
    %v1351 = vld [vmem:[#allocation10 + $0xc0] sm:$0xff]
    %v1352 = vld [vmem:[#allocation10 + $0xc8] sm:$0xff]
    %v1353 = vld [vmem:[#allocation10 + $0xd0] sm:$0xff]
    %v1354 = vld [vmem:[#allocation10 + $0xd8] sm:$0xff]
    %v1355 = vld [vmem:[#allocation10 + $0xe0] sm:$0xff]
    %v1356 = vld [vmem:[#allocation10 + $0xe8] sm:$0xff]
    %v1357 = vld [vmem:[#allocation10 + $0xf0] sm:$0xff]
    %v1358 = vld [vmem:[#allocation10 + $0xf8] sm:$0xff]
    %v1359 = vld [vmem:[#allocation12] sm:$0xff]
    %v1360 = vld [vmem:[#allocation12 + $0x8] sm:$0xff]
    %v1361 = vld [vmem:[#allocation12 + $0x10] sm:$0xff]
    %v1362 = vld [vmem:[#allocation12 + $0x18] sm:$0xff]
    %v1363 = vld [vmem:[#allocation12 + $0x20] sm:$0xff]
    %v1364 = vld [vmem:[#allocation12 + $0x28] sm:$0xff]
    %v1365 = vld [vmem:[#allocation12 + $0x30] sm:$0xff]
    %v1366 = vld [vmem:[#allocation12 + $0x38] sm:$0xff]
    %v1367 = vld [vmem:[#allocation12 + $0x40] sm:$0xff]
    %v1368 = vld [vmem:[#allocation12 + $0x48] sm:$0xff]
    %v1369 = vld [vmem:[#allocation12 + $0x50] sm:$0xff]
    %v1370 = vld [vmem:[#allocation12 + $0x58] sm:$0xff]
    %v1371 = vld [vmem:[#allocation12 + $0x60] sm:$0xff]
    %v1372 = vld [vmem:[#allocation12 + $0x68] sm:$0xff]
    %v1373 = vld [vmem:[#allocation12 + $0x70] sm:$0xff]
    %v1374 = vld [vmem:[#allocation12 + $0x78] sm:$0xff]
    %v1375 = vld [vmem:[#allocation12 + $0x80] sm:$0xff]
    %v1376 = vld [vmem:[#allocation12 + $0x88] sm:$0xff]
    %v1377 = vld [vmem:[#allocation12 + $0x90] sm:$0xff]
    %v1378 = vld [vmem:[#allocation12 + $0x98] sm:$0xff]
    %v1379 = vld [vmem:[#allocation12 + $0xa0] sm:$0xff]
    %v1380 = vld [vmem:[#allocation12 + $0xa8] sm:$0xff]
    %v1381 = vld [vmem:[#allocation12 + $0xb0] sm:$0xff]
    %v1382 = vld [vmem:[#allocation12 + $0xb8] sm:$0xff]
    %v1383 = vld [vmem:[#allocation12 + $0xc0] sm:$0xff]
    %v1384 = vld [vmem:[#allocation12 + $0xc8] sm:$0xff]
    %v1385 = vld [vmem:[#allocation12 + $0xd0] sm:$0xff]
    %v1386 = vld [vmem:[#allocation12 + $0xd8] sm:$0xff]
    %v1387 = vld [vmem:[#allocation12 + $0xe0] sm:$0xff]
    %v1388 = vld [vmem:[#allocation12 + $0xe8] sm:$0xff]
    %v1389 = vld [vmem:[#allocation12 + $0xf0] sm:$0xff]
    %v1390 = vld [vmem:[#allocation12 + $0xf8] sm:$0xff]
    %1391 = vmatpush.msra.mxu0 %v1389
    %1392 = vmatpush.msra.mxu0 %v1387
    %1393 = vmatpush.msra.mxu0 %v1385
    %1394 = vmatpush.msra.mxu0 %v1383
    %1395 = vmatpush.msra.mxu0 %v1381
    %1396 = vmatpush.msra.mxu0 %v1379
    %1397 = vmatpush.msra.mxu0 %v1377
    %1398 = vmatpush.msra.mxu0 %v1375
    %1399 = vmatpush.msra.mxu0 %v1373
    %1400 = vmatpush.msra.mxu0 %v1371
    %1401 = vmatpush.msra.mxu0 %v1369
    %1402 = vmatpush.msra.mxu0 %v1367
    %1403 = vmatpush.msra.mxu0 %v1365
    %1404 = vmatpush.msra.mxu0 %v1363
    %1405 = vmatpush.msra.mxu0 %v1361
    %1406 = vmatpush.msra.mxu0 %v1359
    %1407 = vmatmul.f32.gmra.mxu0 %v1326
    %v1408 = vpop.f32.mrf.mxu0
    %v1409 = vadd.f32 0.0, %v1408
    %1410 = vdwg.mxu0
    %1411 = vmatpush.msra.mxu0 %v1390
    %1412 = vmatpush.msra.mxu0 %v1388
    %1413 = vmatpush.msra.mxu0 %v1386
    %1414 = vmatpush.msra.mxu0 %v1384
    %1415 = vmatpush.msra.mxu0 %v1382
    %1416 = vmatpush.msra.mxu0 %v1380
    %1417 = vmatpush.msra.mxu0 %v1378
    %1418 = vmatpush.msra.mxu0 %v1376
    %1419 = vmatpush.msra.mxu0 %v1374
    %1420 = vmatpush.msra.mxu0 %v1372
    %1421 = vmatpush.msra.mxu0 %v1370
    %1422 = vmatpush.msra.mxu0 %v1368
    %1423 = vmatpush.msra.mxu0 %v1366
    %1424 = vmatpush.msra.mxu0 %v1364
    %1425 = vmatpush.msra.mxu0 %v1362
    %1426 = vmatpush.msra.mxu0 %v1360
    %1427 = vmatmul.f32.gmra.mxu0 %v1326
    %v1428 = vpop.f32.mrf.mxu0
    %v1429 = vadd.f32 0.0, %v1428
    %1430 = vdwg.mxu0
    %1431 = vmatpush.msra.mxu0 %v1357
    %1432 = vmatpush.msra.mxu0 %v1355
    %1433 = vmatpush.msra.mxu0 %v1353
    %1434 = vmatpush.msra.mxu0 %v1351
    %1435 = vmatpush.msra.mxu0 %v1349
    %1436 = vmatpush.msra.mxu0 %v1347
    %1437 = vmatpush.msra.mxu0 %v1345
    %1438 = vmatpush.msra.mxu0 %v1343
    %1439 = vmatpush.msra.mxu0 %v1341
    %1440 = vmatpush.msra.mxu0 %v1339
    %1441 = vmatpush.msra.mxu0 %v1337
    %1442 = vmatpush.msra.mxu0 %v1335
    %1443 = vmatpush.msra.mxu0 %v1333
    %1444 = vmatpush.msra.mxu0 %v1331
    %1445 = vmatpush.msra.mxu0 %v1329
    %1446 = vmatpush.msra.mxu0 %v1327
    %1447 = vmatmul.f32.gmra.mxu0 %v1325
    %v1448 = vpop.f32.mrf.mxu0
    %v1449 = vadd.f32 %v1409, %v1448
    %1450 = vdwg.mxu0
    %1451 = vmatpush.msra.mxu0 %v1358
    %1452 = vmatpush.msra.mxu0 %v1356
    %1453 = vmatpush.msra.mxu0 %v1354
    %1454 = vmatpush.msra.mxu0 %v1352
    %1455 = vmatpush.msra.mxu0 %v1350
    %1456 = vmatpush.msra.mxu0 %v1348
    %1457 = vmatpush.msra.mxu0 %v1346
    %1458 = vmatpush.msra.mxu0 %v1344
    %1459 = vmatpush.msra.mxu0 %v1342
    %1460 = vmatpush.msra.mxu0 %v1340
    %1461 = vmatpush.msra.mxu0 %v1338
    %1462 = vmatpush.msra.mxu0 %v1336
    %1463 = vmatpush.msra.mxu0 %v1334
    %1464 = vmatpush.msra.mxu0 %v1332
    %1465 = vmatpush.msra.mxu0 %v1330
    %1466 = vmatpush.msra.mxu0 %v1328
    %1467 = vmatmul.f32.gmra.mxu0 %v1325
    %v1468 = vpop.f32.mrf.mxu0
    %v1469 = vadd.f32 %v1429, %v1468
    %1470 = vdwg.mxu0
    %v1471 = vld [vmem:[%s14] sm:$0x3]
    %v1473 = vperm.slane %v1471, 0
    %v1474 = vperm.slane %v1471, 1
    %v1477 = vadd.f32 %v1449, %v1473
    %v1478 = vadd.f32 %v1469, %v1474
    %v1479 = vld [vmem:[%s1319] sm:$0xf]
    %v1480 = vld [vmem:[%s1319 + $0x1] sm:$0xf]
    %1481 = vmatpush.msra.mxu0 %v1389
    %1482 = vmatpush.msra.mxu0 %v1387
    %1483 = vmatpush.msra.mxu0 %v1385
    %1484 = vmatpush.msra.mxu0 %v1383
    %1485 = vmatpush.msra.mxu0 %v1381
    %1486 = vmatpush.msra.mxu0 %v1379
    %1487 = vmatpush.msra.mxu0 %v1377
    %1488 = vmatpush.msra.mxu0 %v1375
    %1489 = vmatpush.msra.mxu0 %v1373
    %1490 = vmatpush.msra.mxu0 %v1371
    %1491 = vmatpush.msra.mxu0 %v1369
    %1492 = vmatpush.msra.mxu0 %v1367
    %1493 = vmatpush.msra.mxu0 %v1365
    %1494 = vmatpush.msra.mxu0 %v1363
    %1495 = vmatpush.msra.mxu0 %v1361
    %1496 = vmatpush.msra.mxu0 %v1359
    %1497 = vmatmul.f32.gmra.mxu0 %v1480
    %v1498 = vpop.f32.mrf.mxu0
    %v1499 = vadd.f32 0.0, %v1498
    %1500 = vdwg.mxu0
    %1501 = vmatpush.msra.mxu0 %v1390
    %1502 = vmatpush.msra.mxu0 %v1388
    %1503 = vmatpush.msra.mxu0 %v1386
    %1504 = vmatpush.msra.mxu0 %v1384
    %1505 = vmatpush.msra.mxu0 %v1382
    %1506 = vmatpush.msra.mxu0 %v1380
    %1507 = vmatpush.msra.mxu0 %v1378
    %1508 = vmatpush.msra.mxu0 %v1376
    %1509 = vmatpush.msra.mxu0 %v1374
    %1510 = vmatpush.msra.mxu0 %v1372
    %1511 = vmatpush.msra.mxu0 %v1370
    %1512 = vmatpush.msra.mxu0 %v1368
    %1513 = vmatpush.msra.mxu0 %v1366
    %1514 = vmatpush.msra.mxu0 %v1364
    %1515 = vmatpush.msra.mxu0 %v1362
    %1516 = vmatpush.msra.mxu0 %v1360
    %1517 = vmatmul.f32.gmra.mxu0 %v1480
    %v1518 = vpop.f32.mrf.mxu0
    %v1519 = vadd.f32 0.0, %v1518
    %1520 = vdwg.mxu0
    %1521 = vmatpush.msra.mxu0 %v1357
    %1522 = vmatpush.msra.mxu0 %v1355
    %1523 = vmatpush.msra.mxu0 %v1353
    %1524 = vmatpush.msra.mxu0 %v1351
    %1525 = vmatpush.msra.mxu0 %v1349
    %1526 = vmatpush.msra.mxu0 %v1347
    %1527 = vmatpush.msra.mxu0 %v1345
    %1528 = vmatpush.msra.mxu0 %v1343
    %1529 = vmatpush.msra.mxu0 %v1341
    %1530 = vmatpush.msra.mxu0 %v1339
    %1531 = vmatpush.msra.mxu0 %v1337
    %1532 = vmatpush.msra.mxu0 %v1335
    %1533 = vmatpush.msra.mxu0 %v1333
    %1534 = vmatpush.msra.mxu0 %v1331
    %1535 = vmatpush.msra.mxu0 %v1329
    %1536 = vmatpush.msra.mxu0 %v1327
    %1537 = vmatmul.f32.gmra.mxu0 %v1479
    %v1538 = vpop.f32.mrf.mxu0
    %v1539 = vadd.f32 %v1499, %v1538
    %1540 = vdwg.mxu0
    %1541 = vmatpush.msra.mxu0 %v1358
    %1542 = vmatpush.msra.mxu0 %v1356
    %1543 = vmatpush.msra.mxu0 %v1354
    %1544 = vmatpush.msra.mxu0 %v1352
    %1545 = vmatpush.msra.mxu0 %v1350
    %1546 = vmatpush.msra.mxu0 %v1348
    %1547 = vmatpush.msra.mxu0 %v1346
    %1548 = vmatpush.msra.mxu0 %v1344
    %1549 = vmatpush.msra.mxu0 %v1342
    %1550 = vmatpush.msra.mxu0 %v1340
    %1551 = vmatpush.msra.mxu0 %v1338
    %1552 = vmatpush.msra.mxu0 %v1336
    %1553 = vmatpush.msra.mxu0 %v1334
    %1554 = vmatpush.msra.mxu0 %v1332
    %1555 = vmatpush.msra.mxu0 %v1330
    %1556 = vmatpush.msra.mxu0 %v1328
    %1557 = vmatmul.f32.gmra.mxu0 %v1479
    %v1558 = vpop.f32.mrf.mxu0
    %v1559 = vadd.f32 %v1519, %v1558
    %1560 = vdwg.mxu0
    %v1561 = vadd.f32 %v1539, %v1473
    %v1562 = vadd.f32 %v1559, %v1474
    %v1563 = vsel %vm174, 1.0, 0
    %v1566 = vsel %vm178, %v1561, 0
    %v1569 = vsel %vm178, %v1562, 0
    %1571 = vmatpush.msra.mxu0 0.0
    %1572 = vmatpush.msra.mxu0 0.0
    %1573 = vmatpush.msra.mxu0 0.0
    %1574 = vmatpush.msra.mxu0 0.0
    %1575 = vmatpush.msra.mxu0 0.0
    %1576 = vmatpush.msra.mxu0 0.0
    %1577 = vmatpush.msra.mxu0 0.0
    %1578 = vmatpush.msra.mxu0 0.0
    %1579 = vmatpush.msra.mxu0 0.0
    %1580 = vmatpush.msra.mxu0 0.0
    %1581 = vmatpush.msra.mxu0 0.0
    %1582 = vmatpush.msra.mxu0 0.0
    %1583 = vmatpush.msra.mxu0 0.0
    %1584 = vmatpush.msra.mxu0 0.0
    %1585 = vmatpush.msra.mxu0 0.0
    %1586 = vmatpush.msra.mxu0 %v1566
    %1587 = vmatmul.f32.gmra.mxu0 %v1563
    %v1588 = vpop.f32.mrf.mxu0
    %v1589 = vadd.f32 0.0, %v1588
    %1590 = vdwg.mxu0
    %1591 = vmatpush.msra.mxu0 0.0
    %1592 = vmatpush.msra.mxu0 0.0
    %1593 = vmatpush.msra.mxu0 0.0
    %1594 = vmatpush.msra.mxu0 0.0
    %1595 = vmatpush.msra.mxu0 0.0
    %1596 = vmatpush.msra.mxu0 0.0
    %1597 = vmatpush.msra.mxu0 0.0
    %1598 = vmatpush.msra.mxu0 0.0
    %1599 = vmatpush.msra.mxu0 0.0
    %1600 = vmatpush.msra.mxu0 0.0
    %1601 = vmatpush.msra.mxu0 0.0
    %1602 = vmatpush.msra.mxu0 0.0
    %1603 = vmatpush.msra.mxu0 0.0
    %1604 = vmatpush.msra.mxu0 0.0
    %1605 = vmatpush.msra.mxu0 0.0
    %1606 = vmatpush.msra.mxu0 %v1569
    %1607 = vmatmul.f32.gmra.mxu0 %v1563
    %v1608 = vpop.f32.mrf.mxu0
    %v1609 = vadd.f32 0.0, %v1608
    %1610 = vdwg.mxu0
    %v1612 = vsel %vm178, %v1477, 0
    %v1615 = vsel %vm178, %v1478, 0
    %1617 = vmatpush.msra.mxu0 0.0
    %1618 = vmatpush.msra.mxu0 0.0
    %1619 = vmatpush.msra.mxu0 0.0
    %1620 = vmatpush.msra.mxu0 0.0
    %1621 = vmatpush.msra.mxu0 0.0
    %1622 = vmatpush.msra.mxu0 0.0
    %1623 = vmatpush.msra.mxu0 0.0
    %1624 = vmatpush.msra.mxu0 0.0
    %1625 = vmatpush.msra.mxu0 0.0
    %1626 = vmatpush.msra.mxu0 0.0
    %1627 = vmatpush.msra.mxu0 0.0
    %1628 = vmatpush.msra.mxu0 0.0
    %1629 = vmatpush.msra.mxu0 0.0
    %1630 = vmatpush.msra.mxu0 0.0
    %1631 = vmatpush.msra.mxu0 0.0
    %1632 = vmatpush.msra.mxu0 %v1612
    %1633 = vmatmul.f32.gmra.mxu0 %v1563
    %v1634 = vpop.f32.mrf.mxu0
    %v1635 = vadd.f32 %v1589, %v1634
    %1636 = vdwg.mxu0
    %1637 = vmatpush.msra.mxu0 0.0
    %1638 = vmatpush.msra.mxu0 0.0
    %1639 = vmatpush.msra.mxu0 0.0
    %1640 = vmatpush.msra.mxu0 0.0
    %1641 = vmatpush.msra.mxu0 0.0
    %1642 = vmatpush.msra.mxu0 0.0
    %1643 = vmatpush.msra.mxu0 0.0
    %1644 = vmatpush.msra.mxu0 0.0
    %1645 = vmatpush.msra.mxu0 0.0
    %1646 = vmatpush.msra.mxu0 0.0
    %1647 = vmatpush.msra.mxu0 0.0
    %1648 = vmatpush.msra.mxu0 0.0
    %1649 = vmatpush.msra.mxu0 0.0
    %1650 = vmatpush.msra.mxu0 0.0
    %1651 = vmatpush.msra.mxu0 0.0
    %1652 = vmatpush.msra.mxu0 %v1615
    %1653 = vmatmul.f32.gmra.mxu0 %v1563
    %v1654 = vpop.f32.mrf.mxu0
    %v1655 = vadd.f32 %v1609, %v1654
    %1656 = vdwg.mxu0
    %v1657 = vld [vmem:[#allocation13] sm:$0xff]
    %v1658 = vld [vmem:[#allocation13 + $0x8] sm:$0xff]
    %v1659 = vld [vmem:[#allocation13 + $0x10] sm:$0xff]
    %v1660 = vld [vmem:[#allocation13 + $0x18] sm:$0xff]
    %v1661 = vld [vmem:[#allocation13 + $0x20] sm:$0xff]
    %v1662 = vld [vmem:[#allocation13 + $0x28] sm:$0xff]
    %v1663 = vld [vmem:[#allocation13 + $0x30] sm:$0xff]
    %v1664 = vld [vmem:[#allocation13 + $0x38] sm:$0xff]
    %v1665 = vld [vmem:[#allocation13 + $0x40] sm:$0xff]
    %v1666 = vld [vmem:[#allocation13 + $0x48] sm:$0xff]
    %v1667 = vld [vmem:[#allocation13 + $0x50] sm:$0xff]
    %v1668 = vld [vmem:[#allocation13 + $0x58] sm:$0xff]
    %v1669 = vld [vmem:[#allocation13 + $0x60] sm:$0xff]
    %v1670 = vld [vmem:[#allocation13 + $0x68] sm:$0xff]
    %v1671 = vld [vmem:[#allocation13 + $0x70] sm:$0xff]
    %v1672 = vld [vmem:[#allocation13 + $0x78] sm:$0xff]
    %v1673 = vld [vmem:[#allocation13 + $0x80] sm:$0xff]
    %v1674 = vld [vmem:[#allocation13 + $0x88] sm:$0xff]
    %v1675 = vld [vmem:[#allocation13 + $0x90] sm:$0xff]
    %v1676 = vld [vmem:[#allocation13 + $0x98] sm:$0xff]
    %v1677 = vld [vmem:[#allocation13 + $0xa0] sm:$0xff]
    %v1678 = vld [vmem:[#allocation13 + $0xa8] sm:$0xff]
    %v1679 = vld [vmem:[#allocation13 + $0xb0] sm:$0xff]
    %v1680 = vld [vmem:[#allocation13 + $0xb8] sm:$0xff]
    %v1681 = vld [vmem:[#allocation13 + $0xc0] sm:$0xff]
    %v1682 = vld [vmem:[#allocation13 + $0xc8] sm:$0xff]
    %v1683 = vld [vmem:[#allocation13 + $0xd0] sm:$0xff]
    %v1684 = vld [vmem:[#allocation13 + $0xd8] sm:$0xff]
    %v1685 = vld [vmem:[#allocation13 + $0xe0] sm:$0xff]
    %v1686 = vld [vmem:[#allocation13 + $0xe8] sm:$0xff]
    %v1687 = vld [vmem:[#allocation13 + $0xf0] sm:$0xff]
    %v1688 = vld [vmem:[#allocation13 + $0xf8] sm:$0xff]
    %v1689 = vld [vmem:[#allocation13 + $0x100] sm:$0xff]
    %v1690 = vld [vmem:[#allocation13 + $0x108] sm:$0xff]
    %v1691 = vld [vmem:[#allocation13 + $0x110] sm:$0xff]
    %v1692 = vld [vmem:[#allocation13 + $0x118] sm:$0xff]
    %v1693 = vld [vmem:[#allocation13 + $0x120] sm:$0xff]
    %v1694 = vld [vmem:[#allocation13 + $0x128] sm:$0xff]
    %v1695 = vld [vmem:[#allocation13 + $0x130] sm:$0xff]
    %v1696 = vld [vmem:[#allocation13 + $0x138] sm:$0xff]
    %v1697 = vld [vmem:[#allocation13 + $0x140] sm:$0xff]
    %v1698 = vld [vmem:[#allocation13 + $0x148] sm:$0xff]
    %v1699 = vld [vmem:[#allocation13 + $0x150] sm:$0xff]
    %v1700 = vld [vmem:[#allocation13 + $0x158] sm:$0xff]
    %v1701 = vld [vmem:[#allocation13 + $0x160] sm:$0xff]
    %v1702 = vld [vmem:[#allocation13 + $0x168] sm:$0xff]
    %v1703 = vld [vmem:[#allocation13 + $0x170] sm:$0xff]
    %v1704 = vld [vmem:[#allocation13 + $0x178] sm:$0xff]
    %v1705 = vld [vmem:[#allocation13 + $0x180] sm:$0xff]
    %v1706 = vld [vmem:[#allocation13 + $0x188] sm:$0xff]
    %v1707 = vld [vmem:[#allocation13 + $0x190] sm:$0xff]
    %v1708 = vld [vmem:[#allocation13 + $0x198] sm:$0xff]
    %v1709 = vld [vmem:[#allocation13 + $0x1a0] sm:$0xff]
    %v1710 = vld [vmem:[#allocation13 + $0x1a8] sm:$0xff]
    %v1711 = vld [vmem:[#allocation13 + $0x1b0] sm:$0xff]
    %v1712 = vld [vmem:[#allocation13 + $0x1b8] sm:$0xff]
    %v1713 = vld [vmem:[#allocation13 + $0x1c0] sm:$0xff]
    %v1714 = vld [vmem:[#allocation13 + $0x1c8] sm:$0xff]
    %v1715 = vld [vmem:[#allocation13 + $0x1d0] sm:$0xff]
    %v1716 = vld [vmem:[#allocation13 + $0x1d8] sm:$0xff]
    %v1717 = vld [vmem:[#allocation13 + $0x1e0] sm:$0xff]
    %v1718 = vld [vmem:[#allocation13 + $0x1e8] sm:$0xff]
    %v1719 = vld [vmem:[#allocation13 + $0x1f0] sm:$0xff]
    %v1720 = vld [vmem:[#allocation13 + $0x1f8] sm:$0xff]
    %1721 = vmatpush.msra.mxu0 %v1687
    %1722 = vmatpush.msra.mxu0 %v1685
    %1723 = vmatpush.msra.mxu0 %v1683
    %1724 = vmatpush.msra.mxu0 %v1681
    %1725 = vmatpush.msra.mxu0 %v1679
    %1726 = vmatpush.msra.mxu0 %v1677
    %1727 = vmatpush.msra.mxu0 %v1675
    %1728 = vmatpush.msra.mxu0 %v1673
    %1729 = vmatpush.msra.mxu0 %v1671
    %1730 = vmatpush.msra.mxu0 %v1669
    %1731 = vmatpush.msra.mxu0 %v1667
    %1732 = vmatpush.msra.mxu0 %v1665
    %1733 = vmatpush.msra.mxu0 %v1663
    %1734 = vmatpush.msra.mxu0 %v1661
    %1735 = vmatpush.msra.mxu0 %v1659
    %1736 = vmatpush.msra.mxu0 %v1657
    %1737 = vmatmul.f32.gmra.mxu0 %v1635
    %v1738 = vpop.f32.mrf.mxu0
    %v1739 = vadd.f32 0.0, %v1738
    %1740 = vdwg.mxu0
    %1741 = vmatpush.msra.mxu0 %v1719
    %1742 = vmatpush.msra.mxu0 %v1717
    %1743 = vmatpush.msra.mxu0 %v1715
    %1744 = vmatpush.msra.mxu0 %v1713
    %1745 = vmatpush.msra.mxu0 %v1711
    %1746 = vmatpush.msra.mxu0 %v1709
    %1747 = vmatpush.msra.mxu0 %v1707
    %1748 = vmatpush.msra.mxu0 %v1705
    %1749 = vmatpush.msra.mxu0 %v1703
    %1750 = vmatpush.msra.mxu0 %v1701
    %1751 = vmatpush.msra.mxu0 %v1699
    %1752 = vmatpush.msra.mxu0 %v1697
    %1753 = vmatpush.msra.mxu0 %v1695
    %1754 = vmatpush.msra.mxu0 %v1693
    %1755 = vmatpush.msra.mxu0 %v1691
    %1756 = vmatpush.msra.mxu0 %v1689
    %1757 = vmatmul.f32.gmra.mxu0 %v1655
    %v1758 = vpop.f32.mrf.mxu0
    %v1759 = vadd.f32 %v1739, %v1758
    %1760 = vdwg.mxu0
    %1761 = vmatpush.msra.mxu0 %v1688
    %1762 = vmatpush.msra.mxu0 %v1686
    %1763 = vmatpush.msra.mxu0 %v1684
    %1764 = vmatpush.msra.mxu0 %v1682
    %1765 = vmatpush.msra.mxu0 %v1680
    %1766 = vmatpush.msra.mxu0 %v1678
    %1767 = vmatpush.msra.mxu0 %v1676
    %1768 = vmatpush.msra.mxu0 %v1674
    %1769 = vmatpush.msra.mxu0 %v1672
    %1770 = vmatpush.msra.mxu0 %v1670
    %1771 = vmatpush.msra.mxu0 %v1668
    %1772 = vmatpush.msra.mxu0 %v1666
    %1773 = vmatpush.msra.mxu0 %v1664
    %1774 = vmatpush.msra.mxu0 %v1662
    %1775 = vmatpush.msra.mxu0 %v1660
    %1776 = vmatpush.msra.mxu0 %v1658
    %1777 = vmatmul.f32.gmra.mxu0 %v1635
    %v1778 = vpop.f32.mrf.mxu0
    %v1779 = vadd.f32 0.0, %v1778
    %1780 = vdwg.mxu0
    %1781 = vmatpush.msra.mxu0 %v1720
    %1782 = vmatpush.msra.mxu0 %v1718
    %1783 = vmatpush.msra.mxu0 %v1716
    %1784 = vmatpush.msra.mxu0 %v1714
    %1785 = vmatpush.msra.mxu0 %v1712
    %1786 = vmatpush.msra.mxu0 %v1710
    %1787 = vmatpush.msra.mxu0 %v1708
    %1788 = vmatpush.msra.mxu0 %v1706
    %1789 = vmatpush.msra.mxu0 %v1704
    %1790 = vmatpush.msra.mxu0 %v1702
    %1791 = vmatpush.msra.mxu0 %v1700
    %1792 = vmatpush.msra.mxu0 %v1698
    %1793 = vmatpush.msra.mxu0 %v1696
    %1794 = vmatpush.msra.mxu0 %v1694
    %1795 = vmatpush.msra.mxu0 %v1692
    %1796 = vmatpush.msra.mxu0 %v1690
    %1797 = vmatmul.f32.gmra.mxu0 %v1655
    %v1798 = vpop.f32.mrf.mxu0
    %v1799 = vadd.f32 %v1779, %v1798
    %1800 = vdwg.mxu0
    %v1801 = vmul.f32 %v1759, 0.0078125
    %v1802 = vmul.f32 %v1799, 0.0078125
    %v1803 = vperm.slane %v1801, 0
    %v1804 = vperm.slane %v1802, 0
    %v1805 = vsub.f32 %v1477, %v1803
    %v1806 = vsub.f32 %v1478, %v1804
    %v1807 = vsub.f32 %v1561, %v1803
    %v1808 = vsub.f32 %v1562, %v1804
    %v1809 = vmul.f32 %v1805, %v1805
    %v1810 = vmul.f32 %v1806, %v1806
    %v1811 = vmul.f32 %v1807, %v1807
    %v1812 = vmul.f32 %v1808, %v1808
    %v1814 = vsel %vm178, %v1811, 0
    %v1817 = vsel %vm178, %v1812, 0
    %1819 = vmatpush.msra.mxu0 0.0
    %1820 = vmatpush.msra.mxu0 0.0
    %1821 = vmatpush.msra.mxu0 0.0
    %1822 = vmatpush.msra.mxu0 0.0
    %1823 = vmatpush.msra.mxu0 0.0
    %1824 = vmatpush.msra.mxu0 0.0
    %1825 = vmatpush.msra.mxu0 0.0
    %1826 = vmatpush.msra.mxu0 0.0
    %1827 = vmatpush.msra.mxu0 0.0
    %1828 = vmatpush.msra.mxu0 0.0
    %1829 = vmatpush.msra.mxu0 0.0
    %1830 = vmatpush.msra.mxu0 0.0
    %1831 = vmatpush.msra.mxu0 0.0
    %1832 = vmatpush.msra.mxu0 0.0
    %1833 = vmatpush.msra.mxu0 0.0
    %1834 = vmatpush.msra.mxu0 %v1814
    %1835 = vmatmul.f32.gmra.mxu0 %v1563
    %v1836 = vpop.f32.mrf.mxu0
    %v1837 = vadd.f32 0.0, %v1836
    %1838 = vdwg.mxu0
    %1839 = vmatpush.msra.mxu0 0.0
    %1840 = vmatpush.msra.mxu0 0.0
    %1841 = vmatpush.msra.mxu0 0.0
    %1842 = vmatpush.msra.mxu0 0.0
    %1843 = vmatpush.msra.mxu0 0.0
    %1844 = vmatpush.msra.mxu0 0.0
    %1845 = vmatpush.msra.mxu0 0.0
    %1846 = vmatpush.msra.mxu0 0.0
    %1847 = vmatpush.msra.mxu0 0.0
    %1848 = vmatpush.msra.mxu0 0.0
    %1849 = vmatpush.msra.mxu0 0.0
    %1850 = vmatpush.msra.mxu0 0.0
    %1851 = vmatpush.msra.mxu0 0.0
    %1852 = vmatpush.msra.mxu0 0.0
    %1853 = vmatpush.msra.mxu0 0.0
    %1854 = vmatpush.msra.mxu0 %v1817
    %1855 = vmatmul.f32.gmra.mxu0 %v1563
    %v1856 = vpop.f32.mrf.mxu0
    %v1857 = vadd.f32 0.0, %v1856
    %1858 = vdwg.mxu0
    %v1860 = vsel %vm178, %v1809, 0
    %v1863 = vsel %vm178, %v1810, 0
    %1865 = vmatpush.msra.mxu0 0.0
    %1866 = vmatpush.msra.mxu0 0.0
    %1867 = vmatpush.msra.mxu0 0.0
    %1868 = vmatpush.msra.mxu0 0.0
    %1869 = vmatpush.msra.mxu0 0.0
    %1870 = vmatpush.msra.mxu0 0.0
    %1871 = vmatpush.msra.mxu0 0.0
    %1872 = vmatpush.msra.mxu0 0.0
    %1873 = vmatpush.msra.mxu0 0.0
    %1874 = vmatpush.msra.mxu0 0.0
    %1875 = vmatpush.msra.mxu0 0.0
    %1876 = vmatpush.msra.mxu0 0.0
    %1877 = vmatpush.msra.mxu0 0.0
    %1878 = vmatpush.msra.mxu0 0.0
    %1879 = vmatpush.msra.mxu0 0.0
    %1880 = vmatpush.msra.mxu0 %v1860
    %1881 = vmatmul.f32.gmra.mxu0 %v1563
    %v1882 = vpop.f32.mrf.mxu0
    %v1883 = vadd.f32 %v1837, %v1882
    %1884 = vdwg.mxu0
    %1885 = vmatpush.msra.mxu0 0.0
    %1886 = vmatpush.msra.mxu0 0.0
    %1887 = vmatpush.msra.mxu0 0.0
    %1888 = vmatpush.msra.mxu0 0.0
    %1889 = vmatpush.msra.mxu0 0.0
    %1890 = vmatpush.msra.mxu0 0.0
    %1891 = vmatpush.msra.mxu0 0.0
    %1892 = vmatpush.msra.mxu0 0.0
    %1893 = vmatpush.msra.mxu0 0.0
    %1894 = vmatpush.msra.mxu0 0.0
    %1895 = vmatpush.msra.mxu0 0.0
    %1896 = vmatpush.msra.mxu0 0.0
    %1897 = vmatpush.msra.mxu0 0.0
    %1898 = vmatpush.msra.mxu0 0.0
    %1899 = vmatpush.msra.mxu0 0.0
    %1900 = vmatpush.msra.mxu0 %v1863
    %1901 = vmatmul.f32.gmra.mxu0 %v1563
    %v1902 = vpop.f32.mrf.mxu0
    %v1903 = vadd.f32 %v1857, %v1902
    %1904 = vdwg.mxu0
    %1905 = vmatpush.msra.mxu0 %v1687
    %1906 = vmatpush.msra.mxu0 %v1685
    %1907 = vmatpush.msra.mxu0 %v1683
    %1908 = vmatpush.msra.mxu0 %v1681
    %1909 = vmatpush.msra.mxu0 %v1679
    %1910 = vmatpush.msra.mxu0 %v1677
    %1911 = vmatpush.msra.mxu0 %v1675
    %1912 = vmatpush.msra.mxu0 %v1673
    %1913 = vmatpush.msra.mxu0 %v1671
    %1914 = vmatpush.msra.mxu0 %v1669
    %1915 = vmatpush.msra.mxu0 %v1667
    %1916 = vmatpush.msra.mxu0 %v1665
    %1917 = vmatpush.msra.mxu0 %v1663
    %1918 = vmatpush.msra.mxu0 %v1661
    %1919 = vmatpush.msra.mxu0 %v1659
    %1920 = vmatpush.msra.mxu0 %v1657
    %1921 = vmatmul.f32.gmra.mxu0 %v1883
    %v1922 = vpop.f32.mrf.mxu0
    %v1923 = vadd.f32 0.0, %v1922
    %1924 = vdwg.mxu0
    %1925 = vmatpush.msra.mxu0 %v1719
    %1926 = vmatpush.msra.mxu0 %v1717
    %1927 = vmatpush.msra.mxu0 %v1715
    %1928 = vmatpush.msra.mxu0 %v1713
    %1929 = vmatpush.msra.mxu0 %v1711
    %1930 = vmatpush.msra.mxu0 %v1709
    %1931 = vmatpush.msra.mxu0 %v1707
    %1932 = vmatpush.msra.mxu0 %v1705
    %1933 = vmatpush.msra.mxu0 %v1703
    %1934 = vmatpush.msra.mxu0 %v1701
    %1935 = vmatpush.msra.mxu0 %v1699
    %1936 = vmatpush.msra.mxu0 %v1697
    %1937 = vmatpush.msra.mxu0 %v1695
    %1938 = vmatpush.msra.mxu0 %v1693
    %1939 = vmatpush.msra.mxu0 %v1691
    %1940 = vmatpush.msra.mxu0 %v1689
    %1941 = vmatmul.f32.gmra.mxu0 %v1903
    %v1942 = vpop.f32.mrf.mxu0
    %v1943 = vadd.f32 %v1923, %v1942
    %1944 = vdwg.mxu0
    %1945 = vmatpush.msra.mxu0 %v1688
    %1946 = vmatpush.msra.mxu0 %v1686
    %1947 = vmatpush.msra.mxu0 %v1684
    %1948 = vmatpush.msra.mxu0 %v1682
    %1949 = vmatpush.msra.mxu0 %v1680
    %1950 = vmatpush.msra.mxu0 %v1678
    %1951 = vmatpush.msra.mxu0 %v1676
    %1952 = vmatpush.msra.mxu0 %v1674
    %1953 = vmatpush.msra.mxu0 %v1672
    %1954 = vmatpush.msra.mxu0 %v1670
    %1955 = vmatpush.msra.mxu0 %v1668
    %1956 = vmatpush.msra.mxu0 %v1666
    %1957 = vmatpush.msra.mxu0 %v1664
    %1958 = vmatpush.msra.mxu0 %v1662
    %1959 = vmatpush.msra.mxu0 %v1660
    %1960 = vmatpush.msra.mxu0 %v1658
    %1961 = vmatmul.f32.gmra.mxu0 %v1883
    %v1962 = vpop.f32.mrf.mxu0
    %v1963 = vadd.f32 0.0, %v1962
    %1964 = vdwg.mxu0
    %1965 = vmatpush.msra.mxu0 %v1720
    %1966 = vmatpush.msra.mxu0 %v1718
    %1967 = vmatpush.msra.mxu0 %v1716
    %1968 = vmatpush.msra.mxu0 %v1714
    %1969 = vmatpush.msra.mxu0 %v1712
    %1970 = vmatpush.msra.mxu0 %v1710
    %1971 = vmatpush.msra.mxu0 %v1708
    %1972 = vmatpush.msra.mxu0 %v1706
    %1973 = vmatpush.msra.mxu0 %v1704
    %1974 = vmatpush.msra.mxu0 %v1702
    %1975 = vmatpush.msra.mxu0 %v1700
    %1976 = vmatpush.msra.mxu0 %v1698
    %1977 = vmatpush.msra.mxu0 %v1696
    %1978 = vmatpush.msra.mxu0 %v1694
    %1979 = vmatpush.msra.mxu0 %v1692
    %1980 = vmatpush.msra.mxu0 %v1690
    %1981 = vmatmul.f32.gmra.mxu0 %v1903
    %v1982 = vpop.f32.mrf.mxu0
    %v1983 = vadd.f32 %v1963, %v1982
    %1984 = vdwg.mxu0
    %v1985 = vmul.f32 %v1943, 0.0078125
    %v1986 = vmul.f32 %v1983, 0.0078125
    %v1987 = vld [vmem:[%s15] sm:$0x3]
    %v1988 = vadd.f32 %v1985, 1e-05
    %v1989 = vadd.f32 %v1986, 1e-05
    %v1990 = vrsqrt.pop %v1988
    %v1991 = vmul.f32 %v1990, %v1988
    %v1992 = vmul.f32 %v1991, %v1990
    %v1993 = vmul.f32 0.5, %v1992
    %v1994 = vsub.f32 1.5, %v1993
    %v1995 = vmul.f32 %v1990, %v1994
    %vm1996 = vweird.f32 %v1988
    %vm1997 = vweird.f32 %v1990
    %vm1998 = vmor %vm1996, %vm1997
    %v1999 = vsel %vm1998, %v1990, %v1995
    %v2000 = vrsqrt.pop %v1989
    %v2001 = vmul.f32 %v2000, %v1989
    %v2002 = vmul.f32 %v2001, %v2000
    %v2003 = vmul.f32 0.5, %v2002
    %v2004 = vsub.f32 1.5, %v2003
    %v2005 = vmul.f32 %v2000, %v2004
    %vm2006 = vweird.f32 %v1989
    %vm2007 = vweird.f32 %v2000
    %vm2008 = vmor %vm2006, %vm2007
    %v2009 = vsel %vm2008, %v2000, %v2005
    %v2012 = vrot.slane %v2009, 7
    %v2013 = vsel %vm539, %v1999, %v2012
    %v2015 = vmul.f32 %v1987, %v2013
    %v2016 = vld [vmem:[%s16] sm:$0x3]
    %v2018 = vperm.slane %v2015, 0
    %v2019 = vperm.slane %v2015, 1
    %v2022 = vmul.f32 %v1805, %v2018
    %v2023 = vmul.f32 %v1806, %v2019
    %v2025 = vperm.slane %v2016, 0
    %v2026 = vperm.slane %v2016, 1
    %v2029 = vadd.f32 %v2022, %v2025
    %v2030 = vadd.f32 %v2023, %v2026
    %vm2031 = vcmp.ge.f32.partialorder %v2029, 0.0
    %vm2032 = vcmp.ge.f32.partialorder %v2030, 0.0
    %v2033 = vmul.f32 %v2029, 0.01
    %v2034 = vmul.f32 %v2030, 0.01
    %v2035 = vsel %vm2031, %v2029, %v2033
    %v2036 = vsel %vm2032, %v2030, %v2034
    %v2037 = vmul.f32 %v2035, %v2035
    %v2038 = vmul.f32 %v2036, %v2036
    %v2039 = vmul.f32 %v1807, %v2018
    %v2040 = vmul.f32 %v1808, %v2019
    %v2041 = vadd.f32 %v2039, %v2025
    %v2042 = vadd.f32 %v2040, %v2026
    %vm2043 = vcmp.ge.f32.partialorder %v2041, 0.0
    %vm2044 = vcmp.ge.f32.partialorder %v2042, 0.0
    %v2045 = vmul.f32 %v2041, 0.01
    %v2046 = vmul.f32 %v2042, 0.01
    %v2047 = vsel %vm2043, %v2041, %v2045
    %v2048 = vsel %vm2044, %v2042, %v2046
    %v2049 = vmul.f32 %v2047, %v2047
    %v2050 = vmul.f32 %v2048, %v2048
    %2051 = vst [vmem:[#allocation4 + $0x8] sm:$0x1] 0.0
    %2052 = vst [vmem:[#allocation4] sm:$0x1] %v2037
    %2053 = vst [vmem:[#allocation4 + $0x1] sm:$0x1] %v2038
    %2054 = vst [vmem:[#allocation4 + $0x1] sm:$0x2] %v2037
    %2055 = vst [vmem:[#allocation4 + $0x2] sm:$0x2] %v2038
    %2056 = vst [vmem:[#allocation4 + $0x2] sm:$0x4] %v2037
    %2057 = vst [vmem:[#allocation4 + $0x3] sm:$0x4] %v2038
    %2058 = vst [vmem:[#allocation4 + $0x3] sm:$0x8] %v2037
    %2059 = vst [vmem:[#allocation4 + $0x4] sm:$0x8] %v2038
    %s2060 = scalar_lea.vmem [#allocation4], 16
    %2061 = vst [vmem:[%s2060 + $0x8] sm:$0x1] 0.0
    %2062 = vst [vmem:[%s2060] sm:$0x1] %v2049
    %2063 = vst [vmem:[%s2060 + $0x1] sm:$0x1] %v2050
    %2064 = vst [vmem:[%s2060 + $0x1] sm:$0x2] %v2049
    %2065 = vst [vmem:[%s2060 + $0x2] sm:$0x2] %v2050
    %2066 = vst [vmem:[%s2060 + $0x2] sm:$0x4] %v2049
    %2067 = vst [vmem:[%s2060 + $0x3] sm:$0x4] %v2050
    %2068 = vst [vmem:[%s2060 + $0x3] sm:$0x8] %v2049
    %2069 = vst [vmem:[%s2060 + $0x4] sm:$0x8] %v2050
    %v2070 = vld [vmem:[#allocation4] sm:$0xff]
    %v2071 = vld [vmem:[#allocation4 + $0x1] sm:$0xff]
    %v2072 = vld [vmem:[%s18] sm:$0xff]
    %v2073 = vld [vmem:[%s18 + $0x8] sm:$0xff]
    %v2074 = vld [vmem:[%s18 + $0x10] sm:$0xff]
    %v2075 = vld [vmem:[%s18 + $0x18] sm:$0xff]
    %v2076 = vld [vmem:[%s18 + $0x20] sm:$0xff]
    %v2077 = vld [vmem:[%s18 + $0x28] sm:$0xff]
    %v2078 = vld [vmem:[%s18 + $0x30] sm:$0xff]
    %v2079 = vld [vmem:[%s18 + $0x38] sm:$0xff]
    %v2080 = vld [vmem:[%s18 + $0x40] sm:$0xff]
    %v2081 = vld [vmem:[%s18 + $0x48] sm:$0xff]
    %v2082 = vld [vmem:[%s18 + $0x50] sm:$0xff]
    %v2083 = vld [vmem:[%s18 + $0x58] sm:$0xff]
    %v2084 = vld [vmem:[%s18 + $0x60] sm:$0xff]
    %v2085 = vld [vmem:[%s18 + $0x68] sm:$0xff]
    %v2086 = vld [vmem:[%s18 + $0x70] sm:$0xff]
    %v2087 = vld [vmem:[%s18 + $0x78] sm:$0xff]
    %v2088 = vld [vmem:[%s19] sm:$0xff]
    %v2089 = vld [vmem:[%s19 + $0x8] sm:$0xff]
    %v2090 = vld [vmem:[%s19 + $0x10] sm:$0xff]
    %v2091 = vld [vmem:[%s19 + $0x18] sm:$0xff]
    %v2092 = vld [vmem:[%s19 + $0x20] sm:$0xff]
    %v2093 = vld [vmem:[%s19 + $0x28] sm:$0xff]
    %v2094 = vld [vmem:[%s19 + $0x30] sm:$0xff]
    %v2095 = vld [vmem:[%s19 + $0x38] sm:$0xff]
    %v2096 = vld [vmem:[%s19 + $0x40] sm:$0xff]
    %v2097 = vld [vmem:[%s19 + $0x48] sm:$0xff]
    %v2098 = vld [vmem:[%s19 + $0x50] sm:$0xff]
    %v2099 = vld [vmem:[%s19 + $0x58] sm:$0xff]
    %v2100 = vld [vmem:[%s19 + $0x60] sm:$0xff]
    %v2101 = vld [vmem:[%s19 + $0x68] sm:$0xff]
    %v2102 = vld [vmem:[%s19 + $0x70] sm:$0xff]
    %v2103 = vld [vmem:[%s19 + $0x78] sm:$0xff]
    %2104 = vmatpush.msra.mxu0 %v2103
    %2105 = vmatpush.msra.mxu0 %v2102
    %2106 = vmatpush.msra.mxu0 %v2101
    %2107 = vmatpush.msra.mxu0 %v2100
    %2108 = vmatpush.msra.mxu0 %v2099
    %2109 = vmatpush.msra.mxu0 %v2098
    %2110 = vmatpush.msra.mxu0 %v2097
    %2111 = vmatpush.msra.mxu0 %v2096
    %2112 = vmatpush.msra.mxu0 %v2095
    %2113 = vmatpush.msra.mxu0 %v2094
    %2114 = vmatpush.msra.mxu0 %v2093
    %2115 = vmatpush.msra.mxu0 %v2092
    %2116 = vmatpush.msra.mxu0 %v2091
    %2117 = vmatpush.msra.mxu0 %v2090
    %2118 = vmatpush.msra.mxu0 %v2089
    %2119 = vmatpush.msra.mxu0 %v2088
    %2120 = vmatmul.f32.gmra.mxu0 %v2071
    %v2121 = vpop.f32.mrf.mxu0
    %v2122 = vadd.f32 0.0, %v2121
    %2123 = vdwg.mxu0
    %2124 = vmatpush.msra.mxu0 %v2087
    %2125 = vmatpush.msra.mxu0 %v2086
    %2126 = vmatpush.msra.mxu0 %v2085
    %2127 = vmatpush.msra.mxu0 %v2084
    %2128 = vmatpush.msra.mxu0 %v2083
    %2129 = vmatpush.msra.mxu0 %v2082
    %2130 = vmatpush.msra.mxu0 %v2081
    %2131 = vmatpush.msra.mxu0 %v2080
    %2132 = vmatpush.msra.mxu0 %v2079
    %2133 = vmatpush.msra.mxu0 %v2078
    %2134 = vmatpush.msra.mxu0 %v2077
    %2135 = vmatpush.msra.mxu0 %v2076
    %2136 = vmatpush.msra.mxu0 %v2075
    %2137 = vmatpush.msra.mxu0 %v2074
    %2138 = vmatpush.msra.mxu0 %v2073
    %2139 = vmatpush.msra.mxu0 %v2072
    %2140 = vmatmul.f32.gmra.mxu0 %v2070
    %v2141 = vpop.f32.mrf.mxu0
    %v2142 = vadd.f32 %v2122, %v2141
    %2143 = vdwg.mxu0
    %v2144 = vld [vmem:[%s20] sm:$0x1]
    %v2146 = vperm.slane %v2144, 0
    %v2148 = vadd.f32 %v2142, %v2146
    %v2149 = vld [vmem:[%s2060] sm:$0xff]
    %v2150 = vld [vmem:[%s2060 + $0x1] sm:$0xff]
    %2151 = vmatpush.msra.mxu0 %v2103
    %2152 = vmatpush.msra.mxu0 %v2102
    %2153 = vmatpush.msra.mxu0 %v2101
    %2154 = vmatpush.msra.mxu0 %v2100
    %2155 = vmatpush.msra.mxu0 %v2099
    %2156 = vmatpush.msra.mxu0 %v2098
    %2157 = vmatpush.msra.mxu0 %v2097
    %2158 = vmatpush.msra.mxu0 %v2096
    %2159 = vmatpush.msra.mxu0 %v2095
    %2160 = vmatpush.msra.mxu0 %v2094
    %2161 = vmatpush.msra.mxu0 %v2093
    %2162 = vmatpush.msra.mxu0 %v2092
    %2163 = vmatpush.msra.mxu0 %v2091
    %2164 = vmatpush.msra.mxu0 %v2090
    %2165 = vmatpush.msra.mxu0 %v2089
    %2166 = vmatpush.msra.mxu0 %v2088
    %2167 = vmatmul.f32.gmra.mxu0 %v2150
    %v2168 = vpop.f32.mrf.mxu0
    %v2169 = vadd.f32 0.0, %v2168
    %2170 = vdwg.mxu0
    %2171 = vmatpush.msra.mxu0 %v2087
    %2172 = vmatpush.msra.mxu0 %v2086
    %2173 = vmatpush.msra.mxu0 %v2085
    %2174 = vmatpush.msra.mxu0 %v2084
    %2175 = vmatpush.msra.mxu0 %v2083
    %2176 = vmatpush.msra.mxu0 %v2082
    %2177 = vmatpush.msra.mxu0 %v2081
    %2178 = vmatpush.msra.mxu0 %v2080
    %2179 = vmatpush.msra.mxu0 %v2079
    %2180 = vmatpush.msra.mxu0 %v2078
    %2181 = vmatpush.msra.mxu0 %v2077
    %2182 = vmatpush.msra.mxu0 %v2076
    %2183 = vmatpush.msra.mxu0 %v2075
    %2184 = vmatpush.msra.mxu0 %v2074
    %2185 = vmatpush.msra.mxu0 %v2073
    %2186 = vmatpush.msra.mxu0 %v2072
    %2187 = vmatmul.f32.gmra.mxu0 %v2149
    %v2188 = vpop.f32.mrf.mxu0
    %v2189 = vadd.f32 %v2169, %v2188
    %2190 = vdwg.mxu0
    %v2191 = vadd.f32 %v2189, %v2146
    %vm2192 = vcmp.ge.f32.partialorder %v2148, 0.0
    %v2193 = vmul.f32 %v2148, 0.01
    %v2194 = vsel %vm2192, %v2148, %v2193
    %v2195 = vmul.f32 %v2194, %v2194
    %vm2196 = vcmask 785408
    %2197 = vst.msk [vmem:[%s21] sm:$0xff] %vm2196, %v2195
    %vm2198 = vcmp.ge.f32.partialorder %v2191, 0.0
    %v2199 = vmul.f32 %v2191, 0.01
    %v2200 = vsel %vm2198, %v2191, %v2199
    %v2201 = vmul.f32 %v2200, %v2200
    %2202 = vst.msk [vmem:[%s21 + $0x8] sm:$0xff] %vm2196, %v2201
    // Predicated region
    $region110: #{decoder_v2_forward.1} parent=1 // pred_check
      _
    $region111: #{decoder_v2_forward.1} parent=1 // pred_check_branch
      %2204 = sbr.rel (0) target = $region113
    $region112: #{decoder_v2_forward.1} parent=1 // pred_region
      _
    $region113: #{decoder_v2_forward.1} parent=1 // pred_fallthru
      _
    // Predicated region
    $region114: #{decoder_v2_forward.1} parent=1 // pred_check
      _
    $region115: #{decoder_v2_forward.1} parent=1 // pred_check_branch
      %2206 = sbr.rel (0) target = $region117
    $region116: #{decoder_v2_forward.1} parent=1 // pred_region
      _
    $region117: #{decoder_v2_forward.1} parent=1 // pred_fallthru
      _
    %2207 = vsyncpa [#allocation6], 1
    %2208 = vsyncpa [#allocation8], 1
    %2209 = vsyncpa [#allocation11], 1
    %2210 = vsyncpa [#allocation14], 1

</llo_original>
